<compile_context>
chip_gen: v5e
topology: v5e:2x2
jax: 0.10.0
libtpu: 0.0.40
codegen_flags: <defaults>
</compile_context>

<pallas_src>
import jax
import jax.numpy as jnp
from jax import lax
from jax.experimental import pallas as pl
from jax.experimental.pallas import tpu as pltpu


def _round_up(x, m):
    return -(-x // m) * m


# ---------------------------------------------------------------------------
# Fused kernel: patch-embed matmul (+ folded CLIP normalization) + InstanceNorm2d
#               + mean-pool + global projection, per image.
#
# Grid: (B, K // tk).  Per-image blocks:
#   x_ref    : (L,  tk)  bf16   raw patch pixels (normalization folded into weights)
#   wp_ref   : (tk, C)   bf16   patch-embed weights pre-scaled by 1/std
#   bias_ref : (1,  C)   f32    (-mean/std)_expanded @ W_patch
#   wg_ref   : (C,  C)   bf16   global projection weights
#   pf_ref   : (L,  C)   f32    patch features   (resident accumulator across K)
#   nf_ref   : (L,  C)   f32    instance-normalized patch features
#   gf_ref   : (1,  C)   f32    global feature (mean-pool @ w_global)
# ---------------------------------------------------------------------------
def _encode_kernel(x_ref, wp_ref, bias_ref, wg_ref, pf_ref, nf_ref, gf_ref):
    k = pl.program_id(1)
    nk = pl.num_programs(1)

    @pl.when(k == 0)
    def _init():
        # Seed the accumulator with the folded CLIP-normalization bias so no
        # separate bias-add pass is needed at finalize.
        pf_ref[...] = jnp.broadcast_to(bias_ref[...], pf_ref.shape)

    # Accumulate directly into the resident f32 output block (no scratch, no per-step
    # writeback copy).  bf16 operands, f32 accumulation on the MXU.
    pf_ref[...] += jnp.dot(x_ref[...], wp_ref[...],
                           preferred_element_type=jnp.float32)

    @pl.when(k == nk - 1)
    def _finalize():
        pf = pf_ref[...]                                        # (L, C), bias included
        # InstanceNorm2d(C, affine=False): biased variance over spatial (L), eps=1e-5.
        mu = jnp.mean(pf, axis=0, keepdims=True)                # (1, C) == mean pool
        var = jnp.mean((pf - mu) ** 2, axis=0, keepdims=True)
        nf_ref[...] = (pf - mu) * lax.rsqrt(var + 1e-5)
        # Global feature: mean-pooled patch feature projected by w_global.
        gf_ref[...] = jnp.dot(mu.astype(wg_ref.dtype), wg_ref[...],
                              preferred_element_type=jnp.float32)


def fused_clip_encode(patches, w_patch_folded, bias, w_global,
                      *, w_block_budget_bytes=4 * 1024 * 1024):
    """patches: (B, L, K) bf16; w_patch_folded: (K, C) bf16; bias: (1, C) f32;
    w_global: (C, C) bf16 -> (patch_feats (B,L,C) f32, norm_feats (B,L,C) f32,
                              global_feats (B,1,C) f32)."""
    B, L, K = patches.shape
    Kw, C = w_patch_folded.shape
    assert K == Kw

    # VMEM-budgeted K-tile: largest 128-multiple whose (tk, C) bf16 weight block
    # stays under the budget (double-buffered by Pallas), capped at the full K.
    Kp = _round_up(K, 128)
    tk_budget = max(128, (w_block_budget_bytes // (C * 2)) // 128 * 128)
    tk = min(Kp, tk_budget)
    Kp = _round_up(K, tk)
    if Kp != K:
        # Zero rows/cols contribute nothing to the matmul.
        patches = jnp.pad(patches, ((0, 0), (0, 0), (0, Kp - K)))
        w_patch_folded = jnp.pad(w_patch_folded, ((0, Kp - K), (0, 0)))
    nk = Kp // tk

    out_shapes = (
        jax.ShapeDtypeStruct((B, L, C), jnp.float32),   # patch features
        jax.ShapeDtypeStruct((B, L, C), jnp.float32),   # instance-normalized features
        jax.ShapeDtypeStruct((B, 1, C), jnp.float32),   # global features
    )
    return pl.pallas_call(
        _encode_kernel,
        out_shape=out_shapes,
        grid=(B, nk),
        in_specs=[
            pl.BlockSpec((None, L, tk), lambda b, k: (b, 0, k)),   # patches
            pl.BlockSpec((tk, C), lambda b, k: (k, 0)),            # folded W_patch
            pl.BlockSpec((1, C), lambda b, k: (0, 0)),             # folded bias
            pl.BlockSpec((C, C), lambda b, k: (0, 0)),             # W_global
        ],
        out_specs=(
            pl.BlockSpec((None, L, C), lambda b, k: (b, 0, 0)),
            pl.BlockSpec((None, L, C), lambda b, k: (b, 0, 0)),
            pl.BlockSpec((None, 1, C), lambda b, k: (b, 0, 0)),
        ),
        compiler_params=pltpu.CompilerParams(
            dimension_semantics=("parallel", "arbitrary")),
    )(patches, w_patch_folded, bias, w_global)


# ---------------------------------------------------------------------------
# Host-side glue: transform_preds (use_udp=True) box rescale of postprocess.
# ---------------------------------------------------------------------------
def transform_preds_udp(coords, center, scale, output_size):
    scale = scale * 200.0
    scale_x = scale[0] / (output_size[0] - 1.0)
    scale_y = scale[1] / (output_size[1] - 1.0)
    x = coords[:, 0] * scale_x + center[0] - scale[0] * 0.5
    y = coords[:, 1] * scale_y + center[1] - scale[1] * 0.5
    return jnp.stack([x, y], axis=-1)


# ---------------------------------------------------------------------------
# The module
# ---------------------------------------------------------------------------
class GenericHOINetworkPallas:
    """CLIP-backbone path of GenericHOINetwork.forward, hot path in one fused kernel."""

    CLIP_MEAN = jnp.array([0.48145466, 0.4578275, 0.40821073], jnp.float32)
    CLIP_STD = jnp.array([0.26862954, 0.26130258, 0.27577711], jnp.float32)

    def __init__(self, n_px=128, patch_size=32, feat_dim=256, postprocess=True):
        self.n_px = n_px
        self.patch_size = patch_size
        self.feat_dim = feat_dim
        self.postprocess = postprocess

        # Deterministic synthetic weights for the injected backbone stand-in.
        k1, k2 = jax.random.split(jax.random.PRNGKey(42))
        P = patch_size
        patch_dim = 3 * P * P
        w_patch = (jax.random.normal(k1, (patch_dim, feat_dim), jnp.float32)
                   * (patch_dim ** -0.5))
        w_global = (jax.random.normal(k2, (feat_dim, feat_dim), jnp.float32)
                    * (feat_dim ** -0.5))

        # Fold CLIP normalization (x - mean) / std into the patch-embed weights:
        #   x_norm @ W == x @ (W * (1/std)_expanded) + ((-mean/std)_expanded @ W)
        # Patch vectors are channel-major (c, pi, pj), so repeat per-channel scalars P*P.
        inv_std = 1.0 / self.CLIP_STD
        scale_vec = jnp.repeat(inv_std, P * P)                       # (3*P*P,)
        shift_vec = jnp.repeat(-self.CLIP_MEAN * inv_std, P * P)     # (3*P*P,)
        self.w_patch_folded = (w_patch * scale_vec[:, None]).astype(jnp.bfloat16)
        self.bias = (shift_vec[None, :] @ w_patch).astype(jnp.float32)   # (1, C)
        self.w_global = w_global.astype(jnp.bfloat16)

    # -- preprocess ----------------------------------------------------------
    def preprocess(self, images, detections):
        # TODO(synk): warpaffine_image / ToPILImage (PIL, host-side resampling) has no
        # Pallas equivalent; inputs are assumed already warped to n_px x n_px.
        # The CLIP mean/std normalization is folded into the patch-embed weights,
        # so the image itself is passed through untouched (one HBM read total).
        original_image_sizes = [img.shape[-2:] for img in images]
        img_metas = [
            {"center": jnp.array([self.n_px / 2.0, self.n_px / 2.0], jnp.float32),
             "scale": jnp.array([self.n_px / 200.0, self.n_px / 200.0], jnp.float32),
             "n_px": self.n_px}
            for _ in range(images.shape[0])
        ]
        return images, detections, original_image_sizes, img_metas

    # -- backbone.encode_image stand-in + interaction-head InstanceNorm -------
    def encode_image(self, images):
        # TODO(synk): the real CLIP ViT backbone is an injected nn.Module; this is a
        # deterministic patch-embedding projection with the same output shapes.
        B, C, H, W = images.shape
        P = self.patch_size
        gh, gw = H // P, W // P
        L = gh * gw
        patches = images.reshape(B, C, gh, P, gw, P)
        patches = patches.transpose(0, 2, 4, 1, 3, 5).reshape(B, L, C * P * P)
        patches = patches.astype(jnp.bfloat16)          # halve DMA into the kernel

        pf, nf, gf = fused_clip_encode(
            patches, self.w_patch_folded, self.bias, self.w_global)
        return gf.reshape(B, self.feat_dim), pf, nf

    # -- forward ---------------------------------------------------------------
    def __call__(self, images, detections):
        images, detections, original_image_sizes, img_metas = self.preprocess(
            images, detections)
        image_sizes = [img.shape[-2:] for img in images]

        global_features, patch_features, norm_features = self.encode_image(images)
        B, L, C = patch_features.shape
        s = int(round(L ** 0.5))
        assert s * s == L, "patch grid must be square"

        features = {}
        features["0"] = patch_features.transpose(0, 2, 1).reshape(B, C, s, s)
        features["3"] = global_features

        # TODO(synk): the real interaction_head is an injected nn.Module; stand-in uses
        # the module's own InstanceNorm2d(256) (computed inside the fused kernel) and
        # passes boxes through.
        norm_feat = norm_features.transpose(0, 2, 1).reshape(B, C, s, s)

        results = []
        for b in range(B):
            results.append({
                "features_0": norm_feat[b],
                "global": features["3"][b],
                "boxes_h": detections[b]["boxes"],
                "boxes_o": detections[b]["boxes"],
            })

        if self.postprocess:
            for pred, meta in zip(results, img_metas):
                out_sz = jnp.array([meta["n_px"], meta["n_px"]], jnp.float32)
                for key in ("boxes_h", "boxes_o"):
                    bx = pred[key].reshape(-1, 2)
                    bx = transform_preds_udp(bx, meta["center"], meta["scale"], out_sz)
                    pred[key] = bx.reshape(-1, 4)
        return results


# ---------------------------------------------------------------------------
if __name__ == "__main__":
    key = jax.random.PRNGKey(0)
    B, n_px, P = 2, 128, 32                       # -> L = 16 patches, s = 4
    k_img, k_box = jax.random.split(key)
    images = jax.random.uniform(k_img, (B, 3, n_px, n_px), jnp.float32)
    box_keys = jax.random.split(k_box, B)
    detections = [{"boxes": jax.random.uniform(bk, (5, 4), jnp.float32) * n_px}
                  for bk in box_keys]

    model = GenericHOINetworkPallas(n_px=n_px, patch_size=P, feat_dim=256)
    results = model(images, detections)

    for r in results:
        for v in r.values():
            jax.block_until_ready(v)
    print("KERNEL_OK")
</pallas_src>

<mosaic_0001>
module attributes {stable_mosaic.version = 11 : i64} {
  func.func @_encode_kernel(%arg0: i32, %arg1: i32, %arg2: memref<1x16x3072xbf16, #tpu.memory_space<vmem>>, %arg3: memref<3072x256xbf16, #tpu.memory_space<vmem>>, %arg4: memref<1x256xf32, #tpu.memory_space<vmem>>, %arg5: memref<256x256xbf16, #tpu.memory_space<vmem>>, %arg6: memref<1x16x256xf32, #tpu.memory_space<vmem>>, %arg7: memref<1x16x256xf32, #tpu.memory_space<vmem>>, %arg8: memref<1x1x256xf32, #tpu.memory_space<vmem>>) attributes {dimension_semantics = [#tpu.dimension_semantics<parallel>, #tpu.dimension_semantics<arbitrary>], iteration_bounds = array<i64: 2, 1>, scalar_prefetch = 0 : i64, scratch_operands = 0 : i64, tpu.core_type = #tpu.core_type<tc>, window_params = [{transform_indices = @transform_0, window_bounds = array<i64: 1, 16, 3072>}, {transform_indices = @transform_1, window_bounds = array<i64: 3072, 256>}, {pipeline_mode = #tpu.pipeline_mode<synchronous>, transform_indices = @transform_2, window_bounds = array<i64: 1, 256>}, {pipeline_mode = #tpu.pipeline_mode<synchronous>, transform_indices = @transform_3, window_bounds = array<i64: 256, 256>}, {transform_indices = @transform_4, window_bounds = array<i64: 1, 16, 256>}, {transform_indices = @transform_5, window_bounds = array<i64: 1, 16, 256>}, {transform_indices = @transform_6, window_bounds = array<i64: 1, 1, 256>}]} {
    %c0_i32 = arith.constant 0 : i32
    %0 = arith.cmpi eq, %arg1, %c0_i32 : i32
    %1 = arith.extui %0 : i1 to i32
    %c0_i32_0 = arith.constant 0 : i32
    %2 = arith.cmpi ne, %1, %c0_i32_0 : i32
    scf.if %2 {
      %c0_13 = arith.constant 0 : index
      %c0_14 = arith.constant 0 : index
      %16 = vector.load %arg4[%c0_13, %c0_14] : memref<1x256xf32, #tpu.memory_space<vmem>>, vector<1x256xf32>
      %17 = vector.shape_cast %16 : vector<1x256xf32> to vector<1x256xf32>
      %18 = vector.broadcast %17 : vector<1x256xf32> to vector<16x256xf32>
      %c0_15 = arith.constant 0 : index
      %c0_16 = arith.constant 0 : index
      %c0_17 = arith.constant 0 : index
      %19 = vector.load %arg6[%c0_15, %c0_16, %c0_17] : memref<1x16x256xf32, #tpu.memory_space<vmem>>, vector<1x16x256xf32>
      %20 = vector.shape_cast %19 : vector<1x16x256xf32> to vector<16x256xf32>
      %21 = vector.shape_cast %18 : vector<16x256xf32> to vector<1x16x256xf32>
      tpu.vector_store %arg6[%c0_15, %c0_16, %c0_17], %21 {strides = array<i32>} : memref<1x16x256xf32, #tpu.memory_space<vmem>>, vector<1x16x256xf32>,
    } else {
    }
    %c0 = arith.constant 0 : index
    %c0_1 = arith.constant 0 : index
    %c0_2 = arith.constant 0 : index
    %3 = vector.load %arg6[%c0, %c0_1, %c0_2] : memref<1x16x256xf32, #tpu.memory_space<vmem>>, vector<1x16x256xf32>
    %4 = vector.shape_cast %3 : vector<1x16x256xf32> to vector<16x256xf32>
    %c0_3 = arith.constant 0 : index
    %c0_4 = arith.constant 0 : index
    %c0_5 = arith.constant 0 : index
    %5 = vector.load %arg2[%c0_3, %c0_4, %c0_5] : memref<1x16x3072xbf16, #tpu.memory_space<vmem>>, vector<1x16x3072xbf16>
    %6 = vector.shape_cast %5 : vector<1x16x3072xbf16> to vector<16x3072xbf16>
    %c0_6 = arith.constant 0 : index
    %c0_7 = arith.constant 0 : index
    %7 = vector.load %arg3[%c0_6, %c0_7] : memref<3072x256xbf16, #tpu.memory_space<vmem>>, vector<3072x256xbf16>
    %cst = arith.constant dense<0.000000e+00> : vector<16x256xf32>
    %8 = tpu.matmul %6, %7, %cst {dimension_numbers = #tpu.dot_dimension_numbers<[1], [0], [0], [1], [0, 0, 1, 1], [], []>} : vector<16x3072xbf16>, vector<3072x256xbf16>, vector<16x256xf32> -> vector<16x256xf32>
    %9 = arith.addf %4, %8 : vector<16x256xf32>
    %c0_8 = arith.constant 0 : index
    %c0_9 = arith.constant 0 : index
    %c0_10 = arith.constant 0 : index
    %10 = vector.load %arg6[%c0_8, %c0_9, %c0_10] : memref<1x16x256xf32, #tpu.memory_space<vmem>>, vector<1x16x256xf32>
    %11 = vector.shape_cast %10 : vector<1x16x256xf32> to vector<16x256xf32>
    %12 = vector.shape_cast %9 : vector<16x256xf32> to vector<1x16x256xf32>
    tpu.vector_store %arg6[%c0_8, %c0_9, %c0_10], %12 {strides = array<i32>} : memref<1x16x256xf32, #tpu.memory_space<vmem>>, vector<1x16x256xf32>,
    %c0_i32_11 = arith.constant 0 : i32
    %13 = arith.cmpi eq, %arg1, %c0_i32_11 : i32
    %14 = arith.extui %13 : i1 to i32
    %c0_i32_12 = arith.constant 0 : i32
    %15 = arith.cmpi ne, %14, %c0_i32_12 : i32
    scf.if %15 {
      %c0_13 = arith.constant 0 : index
      %c0_14 = arith.constant 0 : index
      %c0_15 = arith.constant 0 : index
      %16 = vector.load %arg6[%c0_13, %c0_14, %c0_15] : memref<1x16x256xf32, #tpu.memory_space<vmem>>, vector<1x16x256xf32>
      %17 = vector.shape_cast %16 : vector<1x16x256xf32> to vector<16x256xf32>
      %cst_16 = arith.constant dense<0.000000e+00> : vector<256xf32>
      %18 = vector.multi_reduction <add>, %17, %cst_16 [0] : vector<16x256xf32> to vector<256xf32>
      %19 = vector.shape_cast %18 : vector<256xf32> to vector<1x256xf32>
      %cst_17 = arith.constant 1.600000e+01 : f32
      %20 = vector.broadcast %cst_17 : f32 to vector<1x256xf32>
      %21 = arith.divf %19, %20 : vector<1x256xf32>
      %22 = vector.broadcast %21 : vector<1x256xf32> to vector<16x256xf32>
      %23 = arith.subf %17, %22 : vector<16x256xf32>
      %24 = arith.mulf %23, %23 : vector<16x256xf32>
      %cst_18 = arith.constant dense<0.000000e+00> : vector<256xf32>
      %25 = vector.multi_reduction <add>, %24, %cst_18 [0] : vector<16x256xf32> to vector<256xf32>
      %26 = vector.shape_cast %25 : vector<256xf32> to vector<1x256xf32>
      %cst_19 = arith.constant 1.600000e+01 : f32
      %27 = vector.broadcast %cst_19 : f32 to vector<1x256xf32>
      %28 = arith.divf %26, %27 : vector<1x256xf32>
      %29 = vector.broadcast %21 : vector<1x256xf32> to vector<16x256xf32>
      %30 = arith.subf %17, %29 : vector<16x256xf32>
      %cst_20 = arith.constant 9.99999974E-6 : f32
      %31 = vector.broadcast %cst_20 : f32 to vector<1x256xf32>
      %32 = arith.addf %28, %31 : vector<1x256xf32>
      %33 = math.rsqrt %32 : vector<1x256xf32>
      %34 = vector.broadcast %33 : vector<1x256xf32> to vector<16x256xf32>
      %35 = arith.mulf %30, %34 : vector<16x256xf32>
      %c0_21 = arith.constant 0 : index
      %c0_22 = arith.constant 0 : index
      %c0_23 = arith.constant 0 : index
      %36 = vector.load %arg7[%c0_21, %c0_22, %c0_23] : memref<1x16x256xf32, #tpu.memory_space<vmem>>, vector<1x16x256xf32>
      %37 = vector.shape_cast %36 : vector<1x16x256xf32> to vector<16x256xf32>
      %38 = vector.shape_cast %35 : vector<16x256xf32> to vector<1x16x256xf32>
      tpu.vector_store %arg7[%c0_21, %c0_22, %c0_23], %38 {strides = array<i32>} : memref<1x16x256xf32, #tpu.memory_space<vmem>>, vector<1x16x256xf32>,
      %39 = arith.truncf %21 : vector<1x256xf32> to vector<1x256xbf16>
      %c0_24 = arith.constant 0 : index
      %c0_25 = arith.constant 0 : index
      %40 = vector.load %arg5[%c0_24, %c0_25] : memref<256x256xbf16, #tpu.memory_space<vmem>>, vector<256x256xbf16>
      %cst_26 = arith.constant dense<0.000000e+00> : vector<1x256xf32>
      %41 = tpu.matmul %39, %40, %cst_26 {dimension_numbers = #tpu.dot_dimension_numbers<[1], [0], [0], [1], [0, 0, 1, 1], [], []>} : vector<1x256xbf16>, vector<256x256xbf16>, vector<1x256xf32> -> vector<1x256xf32>
      %c0_27 = arith.constant 0 : index
      %c0_28 = arith.constant 0 : index
      %c0_29 = arith.constant 0 : index
      %42 = vector.load %arg8[%c0_27, %c0_28, %c0_29] : memref<1x1x256xf32, #tpu.memory_space<vmem>>, vector<1x1x256xf32>
      %43 = vector.shape_cast %42 : vector<1x1x256xf32> to vector<1x256xf32>
      %44 = vector.shape_cast %41 : vector<1x256xf32> to vector<1x1x256xf32>
      tpu.vector_store %arg8[%c0_27, %c0_28, %c0_29], %44 {strides = array<i32>} : memref<1x1x256xf32, #tpu.memory_space<vmem>>, vector<1x1x256xf32>,
    } else {
    }
    return
  }
  func.func @transform_0(%arg0: i32, %arg1: i32) -> (i32, i32, i32) {
    %c0_i32 = arith.constant 0 : i32
    %c0_i32_0 = arith.constant 0 : i32
    return %arg0, %c0_i32, %arg1 : i32, i32, i32
  }
  func.func @transform_1(%arg0: i32, %arg1: i32) -> (i32, i32) {
    %c0_i32 = arith.constant 0 : i32
    %c0_i32_0 = arith.constant 0 : i32
    return %arg1, %c0_i32 : i32, i32
  }
  func.func @transform_2(%arg0: i32, %arg1: i32) -> (i32, i32) {
    %c0_i32 = arith.constant 0 : i32
    %c0_i32_0 = arith.constant 0 : i32
    %c0_i32_1 = arith.constant 0 : i32
    return %c0_i32, %c0_i32_0 : i32, i32
  }
  func.func @transform_3(%arg0: i32, %arg1: i32) -> (i32, i32) {
    %c0_i32 = arith.constant 0 : i32
    %c0_i32_0 = arith.constant 0 : i32
    %c0_i32_1 = arith.constant 0 : i32
    return %c0_i32, %c0_i32_0 : i32, i32
  }
  func.func @transform_4(%arg0: i32, %arg1: i32) -> (i32, i32, i32) {
    %c0_i32 = arith.constant 0 : i32
    %c0_i32_0 = arith.constant 0 : i32
    %c0_i32_1 = arith.constant 0 : i32
    return %arg0, %c0_i32, %c0_i32_0 : i32, i32, i32
  }
  func.func @transform_5(%arg0: i32, %arg1: i32) -> (i32, i32, i32) {
    %c0_i32 = arith.constant 0 : i32
    %c0_i32_0 = arith.constant 0 : i32
    %c0_i32_1 = arith.constant 0 : i32
    return %arg0, %c0_i32, %c0_i32_0 : i32, i32, i32
  }
  func.func @transform_6(%arg0: i32, %arg1: i32) -> (i32, i32, i32) {
    %c0_i32 = arith.constant 0 : i32
    %c0_i32_0 = arith.constant 0 : i32
    %c0_i32_1 = arith.constant 0 : i32
    return %arg0, %c0_i32, %c0_i32_0 : i32, i32, i32
  }
}

</mosaic_0001>

<llo_original>
// kernel: tpu_custom_call.1
$region0: #{tpu_custom_call.1}
  #allocation0 [shape = 'u32[]', space=smem, size = 0x4, offset = 0x4, fixed_abs, tag = 'smem constant byte address 0x4 - core index']
  #allocation1 [shape = 'u32[72,128]{1,0:T(1,128)}', space=vmem, size = 0x9000, scoped, tag = 'internal scratch']
  %s0 = inlined_call_operand.hbm [shape: bf16[2,16,3072], index: 0, kind: input, shape index: {}]
  %s1 = inlined_call_operand.hbm [shape: bf16[3072,256], index: 1, kind: input, shape index: {}]
  %s2 = inlined_call_operand.hbm [shape: f32[1,256], index: 2, kind: input, shape index: {}]
  %s3 = inlined_call_operand.hbm [shape: bf16[256,256], index: 3, kind: input, shape index: {}]
  %s4 = inlined_call_operand.hbm [shape: f32[2,16,256], index: 4, kind: output, shape index: {0}]
  %s5 = inlined_call_operand.hbm [shape: f32[2,16,256], index: 5, kind: output, shape index: {1}]
  %s6 = inlined_call_operand.hbm [shape: f32[2,1,256], index: 6, kind: output, shape index: {2}]
  %7 = xla_tuple %s4, %s5, %s6
  %s8 = sld [smem:[#allocation0]]
  $region89: #{tpu_custom_call.1} parent=0
    _
  %s10 = ssub.s32 1, %s8
  %s11 = scalar_select 0, %s10, %s8
  $region1: #{tpu_custom_call.1} parent=0
    #allocation2 [shape = 'u8[196608]{0}', space=vmem, size = 0x30000, scoped, tag = 'input window, operand 0']
    #allocation3 [shape = 's32[2]{0}', space=sflag, size = 0x8, scoped, tag = 'scoped memory for tpu_custom_call.1']
    #allocation4 [shape = 's32[2]{0}', space=sflag, size = 0x8, scoped, tag = 'scoped memory for tpu_custom_call.1']
    #allocation5 [shape = 'u8[1572864]{0}', space=vmem, size = 0x180000, scoped, tag = 'input window, operand 1, single buffered']
    #allocation6 [shape = 's32[1]{0}', space=sflag, size = 0x4, scoped, tag = 'scoped memory for tpu_custom_call.1']
    #allocation7 [shape = 'u8[1024]{0}', space=vmem, size = 0x400, scoped, tag = 'input window, operand 2, single buffered']
    #allocation8 [shape = 'u8[131072]{0}', space=vmem, size = 0x20000, scoped, tag = 'input window, operand 3, single buffered']
    #allocation9 [shape = 's32[1]{0}', space=sflag, size = 0x4, scoped, tag = 'scoped memory for tpu_custom_call.1']
    #allocation10 [shape = 'u8[32768]{0}', space=vmem, size = 0x8000, scoped, tag = 'output window, operand 0']
    #allocation11 [shape = 'u8[32768]{0}', space=vmem, size = 0x8000, scoped, tag = 'output window, operand 1']
    #allocation12 [shape = 's32[2]{0}', space=sflag, size = 0x8, scoped, tag = 'scoped memory for tpu_custom_call.1']
    #allocation13 [shape = 'u8[2048]{0}', space=vmem, size = 0x800, scoped, tag = 'output window, operand 2']
    %12 = vsyncpa [#allocation3], 0
    %s13 = scalar_lea.sflag [#allocation3], 1
    %14 = vsyncpa %s13, 0
    %15 = vsyncpa [#allocation6], 0
    %16 = vsyncpa [#allocation9], 0
    %17 = vsyncpa [#allocation4], 0
    %s18 = scalar_lea.sflag [#allocation4], 1
    %19 = vsyncpa %s18, 0
    %20 = vsyncpa [#allocation12], 0
    %s21 = scalar_lea.sflag [#allocation12], 1
    %22 = vsyncpa %s21, 0
    loop: start=0, step=1, limit=4
    $region2: #{tpu_custom_call.1} parent=1 // loop_pre_header
      _
    $region3: #{tpu_custom_call.1} parent=1 // loop_header
      %s24 = sphi 0, %s28
      %p25 = scmp.ge.s32.totalorder %s24, 4
      %s31 = sphi 0, %s43
      %s32 = sphi 0, %s39
      %s33 = sphi 0, %s31
      %s34 = sphi 0, %s32
      %s35 = sphi 0, %s33
      %s36 = sphi 0, %s34
      %s48 = sphi 0, %s50
      %s51 = sphi 0, %s48
      %s52 = sphi 0, %s51
      %s68 = sphi 0, %s52
      %s74 = sphi 0, %s76
      %s77 = sphi 0, %s74
      %s78 = sphi 0, %s77
      %s94 = sphi 0, %s78
      %s98 = sphi 0, %s98
      %s100 = sphi 0, %s98
      %s101 = sphi 0, %s100
      %s115 = sphi 0, %s101
      %s119 = sphi 0, %s119
      %s121 = sphi 0, %s119
      %s122 = sphi 0, %s121
      %s136 = sphi 0, %s122
      %s142 = sphi 0, %s144
      %s145 = sphi 0, %s142
      %s146 = sphi 0, %s145
      %s162 = sphi 0, %s146
      %s168 = sphi 0, %s170
      %s171 = sphi 0, %s168
      %s172 = sphi 0, %s171
      %s188 = sphi 0, %s172
      %s194 = sphi 0, %s196
      %s197 = sphi 0, %s194
      %s198 = sphi 0, %s197
      %s214 = sphi 0, %s198
    $region4: #{tpu_custom_call.1} parent=1 // loop_header_branch
      %27 = sbr.rel (%p25) target = $region8
    $region5: #{tpu_custom_call.1} parent=1 // loop_body
      %s29 = ssub.s32 %s24, 1
      %s30 = ssub.s32 %s24, 2
      %s37 = sadd.s32 1, %s32
      %p38 = scmp.ge.s32.totalorder %s37, 1
      %s39 = scalar_select %p38, 0, %s37
      %s40 = sadd.s32 1, %s31
      %s41 = scalar_select %p38, %s40, %s31
      %p42 = scmp.ge.s32.totalorder %s41, 2
      %s43 = scalar_select %p42, 0, %s41
      %s44 = ssub.s32 %s31, %s43
      %s45 = ssub.s32 %s32, %s39
      %s46 = sor.u32 %s44, %s45
      %p47 = scmp.eq.s32.totalorder %s46, 0
      %s49 = sadd.s32 %s48, 1
      %s50 = scalar_select %p47, %s48, %s49
      %p53 = pneg %p47
      %p54 = scmp.eq.s32.totalorder %s24, 1
      %p55 = por %p53, %p54
      %p56 = scmp.ne.s32.totalorder %s48, %s51
      %p57 = scmp.eq.s32.totalorder %s24, 0
      %p58 = por %p56, %p57
      %p59 = scmp.ne.s32.totalorder %s48, %s51
      %p60 = scmp.eq.s32.totalorder %s29, 1
      %p61 = por %p59, %p60
      %p62 = scmp.ne.s32.totalorder %s51, %s52
      %p63 = scmp.eq.s32.totalorder %s29, 0
      %p64 = por %p62, %p63
      %p65 = scmp.ne.s32.totalorder %s51, %s52
      %p66 = scmp.eq.s32.totalorder %s30, 1
      %p67 = por %p65, %p66
      %p69 = scmp.ne.s32.totalorder %s52, %s68
      %p70 = scmp.eq.s32.totalorder %s30, 0
      %p71 = por %p69, %p70
      %s72 = ssub.s32 %s32, %s39
      %p73 = scmp.eq.s32.totalorder %s72, 0
      %s75 = sadd.s32 %s74, 1
      %s76 = scalar_select %p73, %s74, %s75
      %p79 = pneg %p73
      %p80 = scmp.eq.s32.totalorder %s24, 1
      %p81 = por %p79, %p80
      %p82 = scmp.ne.s32.totalorder %s74, %s77
      %p83 = scmp.eq.s32.totalorder %s24, 0
      %p84 = por %p82, %p83
      %p85 = scmp.ne.s32.totalorder %s74, %s77
      %p86 = scmp.eq.s32.totalorder %s29, 1
      %p87 = por %p85, %p86
      %p88 = scmp.ne.s32.totalorder %s77, %s78
      %p89 = scmp.eq.s32.totalorder %s29, 0
      %p90 = por %p88, %p89
      %p91 = scmp.ne.s32.totalorder %s77, %s78
      %p92 = scmp.eq.s32.totalorder %s30, 1
      %p93 = por %p91, %p92
      %p95 = scmp.ne.s32.totalorder %s78, %s94
      %p96 = scmp.eq.s32.totalorder %s30, 0
      %p97 = por %p95, %p96
      %s99 = sadd.s32 %s98, 1
      %p102 = scmp.eq.s32.totalorder %s24, 1
      %p103 = scmp.ne.s32.totalorder %s98, %s100
      %p104 = scmp.eq.s32.totalorder %s24, 0
      %p105 = por %p103, %p104
      %p106 = scmp.ne.s32.totalorder %s98, %s100
      %p107 = scmp.eq.s32.totalorder %s29, 1
      %p108 = por %p106, %p107
      %p109 = scmp.ne.s32.totalorder %s100, %s101
      %p110 = scmp.eq.s32.totalorder %s29, 0
      %p111 = por %p109, %p110
      %p112 = scmp.ne.s32.totalorder %s100, %s101
      %p113 = scmp.eq.s32.totalorder %s30, 1
      %p114 = por %p112, %p113
      %p116 = scmp.ne.s32.totalorder %s101, %s115
      %p117 = scmp.eq.s32.totalorder %s30, 0
      %p118 = por %p116, %p117
      %s120 = sadd.s32 %s119, 1
      %p123 = scmp.eq.s32.totalorder %s24, 1
      %p124 = scmp.ne.s32.totalorder %s119, %s121
      %p125 = scmp.eq.s32.totalorder %s24, 0
      %p126 = por %p124, %p125
      %p127 = scmp.ne.s32.totalorder %s119, %s121
      %p128 = scmp.eq.s32.totalorder %s29, 1
      %p129 = por %p127, %p128
      %p130 = scmp.ne.s32.totalorder %s121, %s122
      %p131 = scmp.eq.s32.totalorder %s29, 0
      %p132 = por %p130, %p131
      %p133 = scmp.ne.s32.totalorder %s121, %s122
      %p134 = scmp.eq.s32.totalorder %s30, 1
      %p135 = por %p133, %p134
      %p137 = scmp.ne.s32.totalorder %s122, %s136
      %p138 = scmp.eq.s32.totalorder %s30, 0
      %p139 = por %p137, %p138
      %s140 = ssub.s32 %s31, %s43
      %p141 = scmp.eq.s32.totalorder %s140, 0
      %s143 = sadd.s32 %s142, 1
      %s144 = scalar_select %p141, %s142, %s143
      %p147 = pneg %p141
      %p148 = scmp.eq.s32.totalorder %s24, 1
      %p149 = por %p147, %p148
      %p150 = scmp.ne.s32.totalorder %s142, %s145
      %p151 = scmp.eq.s32.totalorder %s24, 0
      %p152 = por %p150, %p151
      %p153 = scmp.ne.s32.totalorder %s142, %s145
      %p154 = scmp.eq.s32.totalorder %s29, 1
      %p155 = por %p153, %p154
      %p156 = scmp.ne.s32.totalorder %s145, %s146
      %p157 = scmp.eq.s32.totalorder %s29, 0
      %p158 = por %p156, %p157
      %p159 = scmp.ne.s32.totalorder %s145, %s146
      %p160 = scmp.eq.s32.totalorder %s30, 1
      %p161 = por %p159, %p160
      %p163 = scmp.ne.s32.totalorder %s146, %s162
      %p164 = scmp.eq.s32.totalorder %s30, 0
      %p165 = por %p163, %p164
      %s166 = ssub.s32 %s31, %s43
      %p167 = scmp.eq.s32.totalorder %s166, 0
      %s169 = sadd.s32 %s168, 1
      %s170 = scalar_select %p167, %s168, %s169
      %p173 = pneg %p167
      %p174 = scmp.eq.s32.totalorder %s24, 1
      %p175 = por %p173, %p174
      %p176 = scmp.ne.s32.totalorder %s168, %s171
      %p177 = scmp.eq.s32.totalorder %s24, 0
      %p178 = por %p176, %p177
      %p179 = scmp.ne.s32.totalorder %s168, %s171
      %p180 = scmp.eq.s32.totalorder %s29, 1
      %p181 = por %p179, %p180
      %p182 = scmp.ne.s32.totalorder %s171, %s172
      %p183 = scmp.eq.s32.totalorder %s29, 0
      %p184 = por %p182, %p183
      %p185 = scmp.ne.s32.totalorder %s171, %s172
      %p186 = scmp.eq.s32.totalorder %s30, 1
      %p187 = por %p185, %p186
      %p189 = scmp.ne.s32.totalorder %s172, %s188
      %p190 = scmp.eq.s32.totalorder %s30, 0
      %p191 = por %p189, %p190
      %s192 = ssub.s32 %s31, %s43
      %p193 = scmp.eq.s32.totalorder %s192, 0
      %s195 = sadd.s32 %s194, 1
      %s196 = scalar_select %p193, %s194, %s195
      %p199 = pneg %p193
      %p200 = scmp.eq.s32.totalorder %s24, 1
      %p201 = por %p199, %p200
      %p202 = scmp.ne.s32.totalorder %s194, %s197
      %p203 = scmp.eq.s32.totalorder %s24, 0
      %p204 = por %p202, %p203
      %p205 = scmp.ne.s32.totalorder %s194, %s197
      %p206 = scmp.eq.s32.totalorder %s29, 1
      %p207 = por %p205, %p206
      %p208 = scmp.ne.s32.totalorder %s197, %s198
      %p209 = scmp.eq.s32.totalorder %s29, 0
      %p210 = por %p208, %p209
      %p211 = scmp.ne.s32.totalorder %s197, %s198
      %p212 = scmp.eq.s32.totalorder %s30, 1
      %p213 = por %p211, %p212
      %p215 = scmp.ne.s32.totalorder %s198, %s214
      %p216 = scmp.eq.s32.totalorder %s30, 0
      %p217 = por %p215, %p216
      %p218 = scmp.le.s32.totalorder 1, %s24
      %p219 = scmp.lt.s32.totalorder %s24, 3
      %p220 = pnand %p218, %p219
      %p221 = pneg %p220
      // Predicated region
      $region9: #{tpu_custom_call.1} parent=5 // pred_check
        _
      $region10: #{tpu_custom_call.1} parent=5 // pred_check_branch
        %223 = sbr.rel (%p220) target = $region12
      $region11: #{tpu_custom_call.1} parent=5 // pred_region
        %s224 = ssub.s32 %s24, 1
        // Predicated region
        $region13: #{tpu_custom_call.1} parent=11 // pred_check
          %p225 = pneg %p90
        $region14: #{tpu_custom_call.1} parent=11 // pred_check_branch
          %227 = sbr.rel (%p225) target = $region16
        $region15: #{tpu_custom_call.1} parent=11 // pred_region
          %s228 = smul.u32 384, %s34
          %230 = vsyncadd [#allocation6], 0
          %s231 = smul.addr %s228, 2
          %s232 = smul.addr %s231, 4
          %s233 = scalar_lea.hbm %s1, %s232
          %s234 = sshll.u32 %s233, 4
          %s235 = int_to_ptr.hbm [resolvable:$true] %s234
          %s236 = sshll.u32 [#allocation5], 4
          %s237 = int_to_ptr.vmem [resolvable:$true] %s236
          %242 = dma.hbm_to_vmem [thread:$0]  %s235, 49152, %s237, [#allocation6], 128, 128, 8
        $region16: #{tpu_custom_call.1} parent=11 // pred_fallthru
          _
        // Predicated region
        $region17: #{tpu_custom_call.1} parent=11 // pred_check
          %p243 = pneg %p111
        $region18: #{tpu_custom_call.1} parent=11 // pred_check_branch
          %245 = sbr.rel (%p243) target = $region20
        $region19: #{tpu_custom_call.1} parent=11 // pred_region
          %247 = vsyncadd [#allocation6], 0
          %s249 = sshll.u32 %s2, 4
          %s250 = int_to_ptr.hbm [resolvable:$true] %s249
          %s251 = sshll.u32 [#allocation7], 4
          %s252 = int_to_ptr.vmem [resolvable:$true] %s251
          %254 = dma.hbm_to_vmem [thread:$0]  %s250, 32, %s252, [#allocation6]
        $region20: #{tpu_custom_call.1} parent=11 // pred_fallthru
          _
        // Predicated region
        $region21: #{tpu_custom_call.1} parent=11 // pred_check
          %p255 = pneg %p132
        $region22: #{tpu_custom_call.1} parent=11 // pred_check_branch
          %257 = sbr.rel (%p255) target = $region24
        $region23: #{tpu_custom_call.1} parent=11 // pred_region
          %259 = vsyncadd [#allocation9], 0
          %s260 = sshll.u32 %s3, 4
          %s261 = int_to_ptr.hbm [resolvable:$true] %s260
          %s262 = sshll.u32 [#allocation8], 4
          %s263 = int_to_ptr.vmem [resolvable:$true] %s262
          %268 = dma.hbm_to_vmem [thread:$0]  %s261, 4096, %s263, [#allocation9], 128, 128, 8
        $region24: #{tpu_custom_call.1} parent=11 // pred_fallthru
          _
      $region12: #{tpu_custom_call.1} parent=5 // pred_fallthru
        _
      %p269 = scmp.lt.s32.totalorder %s24, 2
      // Predicated region
      $region25: #{tpu_custom_call.1} parent=5 // pred_check
        %p270 = pneg %p269
      $region26: #{tpu_custom_call.1} parent=5 // pred_check_branch
        %272 = sbr.rel (%p270) target = $region28
      $region27: #{tpu_custom_call.1} parent=5 // pred_region
        // Predicated region
        $region29: #{tpu_custom_call.1} parent=27 // pred_check
          %p273 = pneg %p58
        $region30: #{tpu_custom_call.1} parent=27 // pred_check_branch
          %275 = sbr.rel (%p273) target = $region32
        $region31: #{tpu_custom_call.1} parent=27 // pred_region
          %s276 = sand.u32 %s48, 1
          %s277 = scalar_lea.sflag [#allocation3], %s276
          %s278 = sand.u32 %s48, 1
          %s279 = smul.addr %s278, 192
          %s280 = scalar_lea.vmem [#allocation2], %s279
          %s281 = smul.u32 24, %s32
          %283 = vsyncadd %s277, 0
          %s284 = smul.addr %s31, 48
          %s285 = sadd.s32 %s281, %s284
          %s286 = smul.addr %s285, 4
          %s287 = scalar_lea.hbm %s0, %s286
          %s288 = sshll.u32 %s287, 4
          %s289 = int_to_ptr.hbm [resolvable:$true] %s288
          %s290 = sshll.u32 %s280, 4
          %s291 = int_to_ptr.vmem [resolvable:$true] %s290
          %296 = dma.hbm_to_vmem [thread:$0]  %s289, 3072, %s291, %s277, 1536, 1536, 96
        $region32: #{tpu_custom_call.1} parent=27 // pred_fallthru
          _
      $region28: #{tpu_custom_call.1} parent=5 // pred_fallthru
        _
      %p297 = scmp.le.s32.totalorder 1, %s24
      %p298 = scmp.lt.s32.totalorder %s24, 3
      %p299 = pnand %p297, %p298
      %p300 = pneg %p299
      // Predicated region
      $region33: #{tpu_custom_call.1} parent=5 // pred_check
        _
      $region34: #{tpu_custom_call.1} parent=5 // pred_check_branch
        %302 = sbr.rel (%p299) target = $region36
      $region35: #{tpu_custom_call.1} parent=5 // pred_region
        %s303 = ssub.s32 %s24, 1
        %s304 = sand.u32 %s51, 1
        %s305 = scalar_lea.sflag [#allocation3], %s304
        %s306 = sand.u32 %s51, 1
        %s307 = smul.addr %s306, 192
        %s308 = scalar_lea.vmem [#allocation2], %s307
        // Predicated region
        $region37: #{tpu_custom_call.1} parent=35 // pred_check
          %p309 = pneg %p64
        $region38: #{tpu_custom_call.1} parent=35 // pred_check_branch
          %311 = sbr.rel (%p309) target = $region40
        $region39: #{tpu_custom_call.1} parent=35 // pred_region
          %313 = dma.done %s305, 3072
        $region40: #{tpu_custom_call.1} parent=35 // pred_fallthru
          _
        // Predicated region
        $region41: #{tpu_custom_call.1} parent=35 // pred_check
          %p314 = pneg %p90
        $region42: #{tpu_custom_call.1} parent=35 // pred_check_branch
          %316 = sbr.rel (%p314) target = $region44
        $region43: #{tpu_custom_call.1} parent=35 // pred_region
          %318 = dma.done [#allocation6], 49152
        $region44: #{tpu_custom_call.1} parent=35 // pred_fallthru
          _
        // Predicated region
        $region45: #{tpu_custom_call.1} parent=35 // pred_check
          %p319 = pneg %p111
        $region46: #{tpu_custom_call.1} parent=35 // pred_check_branch
          %321 = sbr.rel (%p319) target = $region48
        $region47: #{tpu_custom_call.1} parent=35 // pred_region
          %323 = dma.done [#allocation6], 32
        $region48: #{tpu_custom_call.1} parent=35 // pred_fallthru
          _
        // Predicated region
        $region49: #{tpu_custom_call.1} parent=35 // pred_check
          %p324 = pneg %p132
        $region50: #{tpu_custom_call.1} parent=35 // pred_check_branch
          %326 = sbr.rel (%p324) target = $region52
        $region51: #{tpu_custom_call.1} parent=35 // pred_region
          %328 = dma.done [#allocation9], 4096
        $region52: #{tpu_custom_call.1} parent=35 // pred_fallthru
          _
        %s329 = sand.u32 %s51, 1
        %s330 = scalar_lea.sflag [#allocation3], %s329
        %s331 = sand.u32 %s51, 1
        %s332 = smul.addr %s331, 192
        %s333 = scalar_lea.vmem [#allocation2], %s332
        %p334 = pneg %p64
        %p335 = pneg %p61
        %p336 = pneg %p90
        %p337 = pneg %p87
        %p338 = pneg %p111
        %p339 = pneg %p108
        %p340 = pneg %p132
        %p341 = pneg %p129
        %p342 = pneg %p158
        %p343 = pneg %p155
        %s344 = sand.u32 %s145, 1
        %s345 = scalar_lea.sflag [#allocation4], %s344
        %s346 = sand.u32 %s145, 1
        %s347 = smul.addr %s346, 32
        %s348 = scalar_lea.vmem [#allocation10], %s347
        %p349 = pneg %p184
        %p350 = pneg %p181
        %s351 = sand.u32 %s29, 1
        %s352 = scalar_lea.sflag [#allocation12], %s351
        %s353 = sand.u32 %s171, 1
        %s354 = smul.addr %s353, 32
        %s355 = scalar_lea.vmem [#allocation11], %s354
        %p356 = pneg %p210
        %p357 = pneg %p207
        %s358 = sand.u32 %s29, 1
        %s359 = scalar_lea.sflag [#allocation12], %s358
        %s360 = sand.u32 %s197, 1
        %s361 = smul.addr %s360, 2
        %s362 = scalar_lea.vmem [#allocation13], %s361
        %s363 = smul.u32 24, %s34
        %s364 = smul.u32 384, %s34
        %p365 = scmp.eq.s32.totalorder %s34, 0
        // Predicated region
        $region53: #{tpu_custom_call.1} parent=35 // pred_check
          %p366 = pneg %p365
        $region54: #{tpu_custom_call.1} parent=35 // pred_check_branch
          %368 = sbr.rel (%p366) target = $region56
        $region55: #{tpu_custom_call.1} parent=35 // pred_region
          %v369 = vld [vmem:[#allocation7] sm:$0x3]
          %v371 = vperm.slane %v369, 0
          %v372 = vperm.slane %v369, 1
          %375 = vst [vmem:[%s348] sm:$0xff] %v371
          %376 = vst [vmem:[%s348 + $0x8] sm:$0xff] %v372
          %377 = vst [vmem:[%s348 + $0x10] sm:$0xff] %v371
          %378 = vst [vmem:[%s348 + $0x18] sm:$0xff] %v372
        $region56: #{tpu_custom_call.1} parent=35 // pred_fallthru
          _
        %v379 = vld [vmem:[%s348] sm:$0xff]
        %v380 = vld [vmem:[%s348 + $0x8] sm:$0xff]
        %v381 = vld [vmem:[%s348 + $0x10] sm:$0xff]
        %v382 = vld [vmem:[%s348 + $0x18] sm:$0xff]
        %v383 = vld [vmem:[%s308] sm:$0xff]
        %v384 = vld [vmem:[%s308 + $0x8] sm:$0xff]
        %v385 = vld [vmem:[%s308 + $0x10] sm:$0xff]
        %v386 = vld [vmem:[%s308 + $0x18] sm:$0xff]
        %v387 = vld [vmem:[%s308 + $0x20] sm:$0xff]
        %v388 = vld [vmem:[%s308 + $0x28] sm:$0xff]
        %v389 = vld [vmem:[%s308 + $0x30] sm:$0xff]
        %v390 = vld [vmem:[%s308 + $0x38] sm:$0xff]
        %v391 = vld [vmem:[%s308 + $0x40] sm:$0xff]
        %v392 = vld [vmem:[%s308 + $0x48] sm:$0xff]
        %v393 = vld [vmem:[%s308 + $0x50] sm:$0xff]
        %v394 = vld [vmem:[%s308 + $0x58] sm:$0xff]
        %v395 = vld [vmem:[%s308 + $0x60] sm:$0xff]
        %v396 = vld [vmem:[%s308 + $0x68] sm:$0xff]
        %v397 = vld [vmem:[%s308 + $0x70] sm:$0xff]
        %v398 = vld [vmem:[%s308 + $0x78] sm:$0xff]
        %v399 = vld [vmem:[%s308 + $0x80] sm:$0xff]
        %v400 = vld [vmem:[%s308 + $0x88] sm:$0xff]
        %v401 = vld [vmem:[%s308 + $0x90] sm:$0xff]
        %v402 = vld [vmem:[%s308 + $0x98] sm:$0xff]
        %v403 = vld [vmem:[%s308 + $0xa0] sm:$0xff]
        %v404 = vld [vmem:[%s308 + $0xa8] sm:$0xff]
        %v405 = vld [vmem:[%s308 + $0xb0] sm:$0xff]
        %v406 = vld [vmem:[%s308 + $0xb8] sm:$0xff]
        %v407 = vld [vmem:[#allocation5] sm:$0xff]
        %v408 = vld [vmem:[#allocation5 + $0x8] sm:$0xff]
        %v409 = vld [vmem:[#allocation5 + $0x10] sm:$0xff]
        %v410 = vld [vmem:[#allocation5 + $0x18] sm:$0xff]
        %v411 = vld [vmem:[#allocation5 + $0x20] sm:$0xff]
        %v412 = vld [vmem:[#allocation5 + $0x28] sm:$0xff]
        %v413 = vld [vmem:[#allocation5 + $0x30] sm:$0xff]
        %v414 = vld [vmem:[#allocation5 + $0x38] sm:$0xff]
        %v415 = vld [vmem:[#allocation5 + $0x40] sm:$0xff]
        %v416 = vld [vmem:[#allocation5 + $0x48] sm:$0xff]
        %v417 = vld [vmem:[#allocation5 + $0x50] sm:$0xff]
        %v418 = vld [vmem:[#allocation5 + $0x58] sm:$0xff]
        %v419 = vld [vmem:[#allocation5 + $0x60] sm:$0xff]
        %v420 = vld [vmem:[#allocation5 + $0x68] sm:$0xff]
        %v421 = vld [vmem:[#allocation5 + $0x70] sm:$0xff]
        %v422 = vld [vmem:[#allocation5 + $0x78] sm:$0xff]
        %v423 = vld [vmem:[#allocation5 + $0x80] sm:$0xff]
        %v424 = vld [vmem:[#allocation5 + $0x88] sm:$0xff]
        %v425 = vld [vmem:[#allocation5 + $0x90] sm:$0xff]
        %v426 = vld [vmem:[#allocation5 + $0x98] sm:$0xff]
        %v427 = vld [vmem:[#allocation5 + $0xa0] sm:$0xff]
        %v428 = vld [vmem:[#allocation5 + $0xa8] sm:$0xff]
        %v429 = vld [vmem:[#allocation5 + $0xb0] sm:$0xff]
        %v430 = vld [vmem:[#allocation5 + $0xb8] sm:$0xff]
        %v431 = vld [vmem:[#allocation5 + $0xc0] sm:$0xff]
        %v432 = vld [vmem:[#allocation5 + $0xc8] sm:$0xff]
        %v433 = vld [vmem:[#allocation5 + $0xd0] sm:$0xff]
        %v434 = vld [vmem:[#allocation5 + $0xd8] sm:$0xff]
        %v435 = vld [vmem:[#allocation5 + $0xe0] sm:$0xff]
        %v436 = vld [vmem:[#allocation5 + $0xe8] sm:$0xff]
        %v437 = vld [vmem:[#allocation5 + $0xf0] sm:$0xff]
        %v438 = vld [vmem:[#allocation5 + $0xf8] sm:$0xff]
        %v439 = vld [vmem:[#allocation5 + $0x100] sm:$0xff]
        %v440 = vld [vmem:[#allocation5 + $0x108] sm:$0xff]
        %v441 = vld [vmem:[#allocation5 + $0x110] sm:$0xff]
        %v442 = vld [vmem:[#allocation5 + $0x118] sm:$0xff]
        %v443 = vld [vmem:[#allocation5 + $0x120] sm:$0xff]
        %v444 = vld [vmem:[#allocation5 + $0x128] sm:$0xff]
        %v445 = vld [vmem:[#allocation5 + $0x130] sm:$0xff]
        %v446 = vld [vmem:[#allocation5 + $0x138] sm:$0xff]
        %v447 = vld [vmem:[#allocation5 + $0x140] sm:$0xff]
        %v448 = vld [vmem:[#allocation5 + $0x148] sm:$0xff]
        %v449 = vld [vmem:[#allocation5 + $0x150] sm:$0xff]
        %v450 = vld [vmem:[#allocation5 + $0x158] sm:$0xff]
        %v451 = vld [vmem:[#allocation5 + $0x160] sm:$0xff]
        %v452 = vld [vmem:[#allocation5 + $0x168] sm:$0xff]
        %v453 = vld [vmem:[#allocation5 + $0x170] sm:$0xff]
        %v454 = vld [vmem:[#allocation5 + $0x178] sm:$0xff]
        %v455 = vld [vmem:[#allocation5 + $0x180] sm:$0xff]
        %v456 = vld [vmem:[#allocation5 + $0x188] sm:$0xff]
        %v457 = vld [vmem:[#allocation5 + $0x190] sm:$0xff]
        %v458 = vld [vmem:[#allocation5 + $0x198] sm:$0xff]
        %v459 = vld [vmem:[#allocation5 + $0x1a0] sm:$0xff]
        %v460 = vld [vmem:[#allocation5 + $0x1a8] sm:$0xff]
        %v461 = vld [vmem:[#allocation5 + $0x1b0] sm:$0xff]
        %v462 = vld [vmem:[#allocation5 + $0x1b8] sm:$0xff]
        %v463 = vld [vmem:[#allocation5 + $0x1c0] sm:$0xff]
        %v464 = vld [vmem:[#allocation5 + $0x1c8] sm:$0xff]
        %v465 = vld [vmem:[#allocation5 + $0x1d0] sm:$0xff]
        %v466 = vld [vmem:[#allocation5 + $0x1d8] sm:$0xff]
        %v467 = vld [vmem:[#allocation5 + $0x1e0] sm:$0xff]
        %v468 = vld [vmem:[#allocation5 + $0x1e8] sm:$0xff]
        %v469 = vld [vmem:[#allocation5 + $0x1f0] sm:$0xff]
        %v470 = vld [vmem:[#allocation5 + $0x1f8] sm:$0xff]
        %v471 = vld [vmem:[#allocation5 + $0x200] sm:$0xff]
        %v472 = vld [vmem:[#allocation5 + $0x208] sm:$0xff]
        %v473 = vld [vmem:[#allocation5 + $0x210] sm:$0xff]
        %v474 = vld [vmem:[#allocation5 + $0x218] sm:$0xff]
        %v475 = vld [vmem:[#allocation5 + $0x220] sm:$0xff]
        %v476 = vld [vmem:[#allocation5 + $0x228] sm:$0xff]
        %v477 = vld [vmem:[#allocation5 + $0x230] sm:$0xff]
        %v478 = vld [vmem:[#allocation5 + $0x238] sm:$0xff]
        %v479 = vld [vmem:[#allocation5 + $0x240] sm:$0xff]
        %v480 = vld [vmem:[#allocation5 + $0x248] sm:$0xff]
        %v481 = vld [vmem:[#allocation5 + $0x250] sm:$0xff]
        %v482 = vld [vmem:[#allocation5 + $0x258] sm:$0xff]
        %v483 = vld [vmem:[#allocation5 + $0x260] sm:$0xff]
        %v484 = vld [vmem:[#allocation5 + $0x268] sm:$0xff]
        %v485 = vld [vmem:[#allocation5 + $0x270] sm:$0xff]
        %v486 = vld [vmem:[#allocation5 + $0x278] sm:$0xff]
        %v487 = vld [vmem:[#allocation5 + $0x280] sm:$0xff]
        %v488 = vld [vmem:[#allocation5 + $0x288] sm:$0xff]
        %v489 = vld [vmem:[#allocation5 + $0x290] sm:$0xff]
        %v490 = vld [vmem:[#allocation5 + $0x298] sm:$0xff]
        %v491 = vld [vmem:[#allocation5 + $0x2a0] sm:$0xff]
        %v492 = vld [vmem:[#allocation5 + $0x2a8] sm:$0xff]
        %v493 = vld [vmem:[#allocation5 + $0x2b0] sm:$0xff]
        %v494 = vld [vmem:[#allocation5 + $0x2b8] sm:$0xff]
        %v495 = vld [vmem:[#allocation5 + $0x2c0] sm:$0xff]
        %v496 = vld [vmem:[#allocation5 + $0x2c8] sm:$0xff]
        %v497 = vld [vmem:[#allocation5 + $0x2d0] sm:$0xff]
        %v498 = vld [vmem:[#allocation5 + $0x2d8] sm:$0xff]
        %v499 = vld [vmem:[#allocation5 + $0x2e0] sm:$0xff]
        %v500 = vld [vmem:[#allocation5 + $0x2e8] sm:$0xff]
        %v501 = vld [vmem:[#allocation5 + $0x2f0] sm:$0xff]
        %v502 = vld [vmem:[#allocation5 + $0x2f8] sm:$0xff]
        %v503 = vld [vmem:[#allocation5 + $0x300] sm:$0xff]
        %v504 = vld [vmem:[#allocation5 + $0x308] sm:$0xff]
        %v505 = vld [vmem:[#allocation5 + $0x310] sm:$0xff]
        %v506 = vld [vmem:[#allocation5 + $0x318] sm:$0xff]
        %v507 = vld [vmem:[#allocation5 + $0x320] sm:$0xff]
        %v508 = vld [vmem:[#allocation5 + $0x328] sm:$0xff]
        %v509 = vld [vmem:[#allocation5 + $0x330] sm:$0xff]
        %v510 = vld [vmem:[#allocation5 + $0x338] sm:$0xff]
        %v511 = vld [vmem:[#allocation5 + $0x340] sm:$0xff]
        %v512 = vld [vmem:[#allocation5 + $0x348] sm:$0xff]
        %v513 = vld [vmem:[#allocation5 + $0x350] sm:$0xff]
        %v514 = vld [vmem:[#allocation5 + $0x358] sm:$0xff]
        %v515 = vld [vmem:[#allocation5 + $0x360] sm:$0xff]
        %v516 = vld [vmem:[#allocation5 + $0x368] sm:$0xff]
        %v517 = vld [vmem:[#allocation5 + $0x370] sm:$0xff]
        %v518 = vld [vmem:[#allocation5 + $0x378] sm:$0xff]
        %v519 = vld [vmem:[#allocation5 + $0x380] sm:$0xff]
        %v520 = vld [vmem:[#allocation5 + $0x388] sm:$0xff]
        %v521 = vld [vmem:[#allocation5 + $0x390] sm:$0xff]
        %v522 = vld [vmem:[#allocation5 + $0x398] sm:$0xff]
        %v523 = vld [vmem:[#allocation5 + $0x3a0] sm:$0xff]
        %v524 = vld [vmem:[#allocation5 + $0x3a8] sm:$0xff]
        %v525 = vld [vmem:[#allocation5 + $0x3b0] sm:$0xff]
        %v526 = vld [vmem:[#allocation5 + $0x3b8] sm:$0xff]
        %v527 = vld [vmem:[#allocation5 + $0x3c0] sm:$0xff]
        %v528 = vld [vmem:[#allocation5 + $0x3c8] sm:$0xff]
        %v529 = vld [vmem:[#allocation5 + $0x3d0] sm:$0xff]
        %v530 = vld [vmem:[#allocation5 + $0x3d8] sm:$0xff]
        %v531 = vld [vmem:[#allocation5 + $0x3e0] sm:$0xff]
        %v532 = vld [vmem:[#allocation5 + $0x3e8] sm:$0xff]
        %v533 = vld [vmem:[#allocation5 + $0x3f0] sm:$0xff]
        %v534 = vld [vmem:[#allocation5 + $0x3f8] sm:$0xff]
        %v535 = vld [vmem:[#allocation5 + $0x400] sm:$0xff]
        %v536 = vld [vmem:[#allocation5 + $0x408] sm:$0xff]
        %v537 = vld [vmem:[#allocation5 + $0x410] sm:$0xff]
        %v538 = vld [vmem:[#allocation5 + $0x418] sm:$0xff]
        %v539 = vld [vmem:[#allocation5 + $0x420] sm:$0xff]
        %v540 = vld [vmem:[#allocation5 + $0x428] sm:$0xff]
        %v541 = vld [vmem:[#allocation5 + $0x430] sm:$0xff]
        %v542 = vld [vmem:[#allocation5 + $0x438] sm:$0xff]
        %v543 = vld [vmem:[#allocation5 + $0x440] sm:$0xff]
        %v544 = vld [vmem:[#allocation5 + $0x448] sm:$0xff]
        %v545 = vld [vmem:[#allocation5 + $0x450] sm:$0xff]
        %v546 = vld [vmem:[#allocation5 + $0x458] sm:$0xff]
        %v547 = vld [vmem:[#allocation5 + $0x460] sm:$0xff]
        %v548 = vld [vmem:[#allocation5 + $0x468] sm:$0xff]
        %v549 = vld [vmem:[#allocation5 + $0x470] sm:$0xff]
        %v550 = vld [vmem:[#allocation5 + $0x478] sm:$0xff]
        %v551 = vld [vmem:[#allocation5 + $0x480] sm:$0xff]
        %v552 = vld [vmem:[#allocation5 + $0x488] sm:$0xff]
        %v553 = vld [vmem:[#allocation5 + $0x490] sm:$0xff]
        %v554 = vld [vmem:[#allocation5 + $0x498] sm:$0xff]
        %v555 = vld [vmem:[#allocation5 + $0x4a0] sm:$0xff]
        %v556 = vld [vmem:[#allocation5 + $0x4a8] sm:$0xff]
        %v557 = vld [vmem:[#allocation5 + $0x4b0] sm:$0xff]
        %v558 = vld [vmem:[#allocation5 + $0x4b8] sm:$0xff]
        %v559 = vld [vmem:[#allocation5 + $0x4c0] sm:$0xff]
        %v560 = vld [vmem:[#allocation5 + $0x4c8] sm:$0xff]
        %v561 = vld [vmem:[#allocation5 + $0x4d0] sm:$0xff]
        %v562 = vld [vmem:[#allocation5 + $0x4d8] sm:$0xff]
        %v563 = vld [vmem:[#allocation5 + $0x4e0] sm:$0xff]
        %v564 = vld [vmem:[#allocation5 + $0x4e8] sm:$0xff]
        %v565 = vld [vmem:[#allocation5 + $0x4f0] sm:$0xff]
        %v566 = vld [vmem:[#allocation5 + $0x4f8] sm:$0xff]
        %v567 = vld [vmem:[#allocation5 + $0x500] sm:$0xff]
        %v568 = vld [vmem:[#allocation5 + $0x508] sm:$0xff]
        %v569 = vld [vmem:[#allocation5 + $0x510] sm:$0xff]
        %v570 = vld [vmem:[#allocation5 + $0x518] sm:$0xff]
        %v571 = vld [vmem:[#allocation5 + $0x520] sm:$0xff]
        %v572 = vld [vmem:[#allocation5 + $0x528] sm:$0xff]
        %v573 = vld [vmem:[#allocation5 + $0x530] sm:$0xff]
        %v574 = vld [vmem:[#allocation5 + $0x538] sm:$0xff]
        %v575 = vld [vmem:[#allocation5 + $0x540] sm:$0xff]
        %v576 = vld [vmem:[#allocation5 + $0x548] sm:$0xff]
        %v577 = vld [vmem:[#allocation5 + $0x550] sm:$0xff]
        %v578 = vld [vmem:[#allocation5 + $0x558] sm:$0xff]
        %v579 = vld [vmem:[#allocation5 + $0x560] sm:$0xff]
        %v580 = vld [vmem:[#allocation5 + $0x568] sm:$0xff]
        %v581 = vld [vmem:[#allocation5 + $0x570] sm:$0xff]
        %v582 = vld [vmem:[#allocation5 + $0x578] sm:$0xff]
        %v583 = vld [vmem:[#allocation5 + $0x580] sm:$0xff]
        %v584 = vld [vmem:[#allocation5 + $0x588] sm:$0xff]
        %v585 = vld [vmem:[#allocation5 + $0x590] sm:$0xff]
        %v586 = vld [vmem:[#allocation5 + $0x598] sm:$0xff]
        %v587 = vld [vmem:[#allocation5 + $0x5a0] sm:$0xff]
        %v588 = vld [vmem:[#allocation5 + $0x5a8] sm:$0xff]
        %v589 = vld [vmem:[#allocation5 + $0x5b0] sm:$0xff]
        %v590 = vld [vmem:[#allocation5 + $0x5b8] sm:$0xff]
        %v591 = vld [vmem:[#allocation5 + $0x5c0] sm:$0xff]
        %v592 = vld [vmem:[#allocation5 + $0x5c8] sm:$0xff]
        %v593 = vld [vmem:[#allocation5 + $0x5d0] sm:$0xff]
        %v594 = vld [vmem:[#allocation5 + $0x5d8] sm:$0xff]
        %v595 = vld [vmem:[#allocation5 + $0x5e0] sm:$0xff]
        %v596 = vld [vmem:[#allocation5 + $0x5e8] sm:$0xff]
        %v597 = vld [vmem:[#allocation5 + $0x5f0] sm:$0xff]
        %v598 = vld [vmem:[#allocation5 + $0x5f8] sm:$0xff]
        %v599 = vld [vmem:[#allocation5 + $0x600] sm:$0xff]
        %v600 = vld [vmem:[#allocation5 + $0x608] sm:$0xff]
        %v601 = vld [vmem:[#allocation5 + $0x610] sm:$0xff]
        %v602 = vld [vmem:[#allocation5 + $0x618] sm:$0xff]
        %v603 = vld [vmem:[#allocation5 + $0x620] sm:$0xff]
        %v604 = vld [vmem:[#allocation5 + $0x628] sm:$0xff]
        %v605 = vld [vmem:[#allocation5 + $0x630] sm:$0xff]
        %v606 = vld [vmem:[#allocation5 + $0x638] sm:$0xff]
        %v607 = vld [vmem:[#allocation5 + $0x640] sm:$0xff]
        %v608 = vld [vmem:[#allocation5 + $0x648] sm:$0xff]
        %v609 = vld [vmem:[#allocation5 + $0x650] sm:$0xff]
        %v610 = vld [vmem:[#allocation5 + $0x658] sm:$0xff]
        %v611 = vld [vmem:[#allocation5 + $0x660] sm:$0xff]
        %v612 = vld [vmem:[#allocation5 + $0x668] sm:$0xff]
        %v613 = vld [vmem:[#allocation5 + $0x670] sm:$0xff]
        %v614 = vld [vmem:[#allocation5 + $0x678] sm:$0xff]
        %v615 = vld [vmem:[#allocation5 + $0x680] sm:$0xff]
        %v616 = vld [vmem:[#allocation5 + $0x688] sm:$0xff]
        %v617 = vld [vmem:[#allocation5 + $0x690] sm:$0xff]
        %v618 = vld [vmem:[#allocation5 + $0x698] sm:$0xff]
        %v619 = vld [vmem:[#allocation5 + $0x6a0] sm:$0xff]
        %v620 = vld [vmem:[#allocation5 + $0x6a8] sm:$0xff]
        %v621 = vld [vmem:[#allocation5 + $0x6b0] sm:$0xff]
        %v622 = vld [vmem:[#allocation5 + $0x6b8] sm:$0xff]
        %v623 = vld [vmem:[#allocation5 + $0x6c0] sm:$0xff]
        %v624 = vld [vmem:[#allocation5 + $0x6c8] sm:$0xff]
        %v625 = vld [vmem:[#allocation5 + $0x6d0] sm:$0xff]
        %v626 = vld [vmem:[#allocation5 + $0x6d8] sm:$0xff]
        %v627 = vld [vmem:[#allocation5 + $0x6e0] sm:$0xff]
        %v628 = vld [vmem:[#allocation5 + $0x6e8] sm:$0xff]
        %v629 = vld [vmem:[#allocation5 + $0x6f0] sm:$0xff]
        %v630 = vld [vmem:[#allocation5 + $0x6f8] sm:$0xff]
        %v631 = vld [vmem:[#allocation5 + $0x700] sm:$0xff]
        %v632 = vld [vmem:[#allocation5 + $0x708] sm:$0xff]
        %v633 = vld [vmem:[#allocation5 + $0x710] sm:$0xff]
        %v634 = vld [vmem:[#allocation5 + $0x718] sm:$0xff]
        %v635 = vld [vmem:[#allocation5 + $0x720] sm:$0xff]
        %v636 = vld [vmem:[#allocation5 + $0x728] sm:$0xff]
        %v637 = vld [vmem:[#allocation5 + $0x730] sm:$0xff]
        %v638 = vld [vmem:[#allocation5 + $0x738] sm:$0xff]
        %v639 = vld [vmem:[#allocation5 + $0x740] sm:$0xff]
        %v640 = vld [vmem:[#allocation5 + $0x748] sm:$0xff]
        %v641 = vld [vmem:[#allocation5 + $0x750] sm:$0xff]
        %v642 = vld [vmem:[#allocation5 + $0x758] sm:$0xff]
        %v643 = vld [vmem:[#allocation5 + $0x760] sm:$0xff]
        %v644 = vld [vmem:[#allocation5 + $0x768] sm:$0xff]
        %v645 = vld [vmem:[#allocation5 + $0x770] sm:$0xff]
        %v646 = vld [vmem:[#allocation5 + $0x778] sm:$0xff]
        %v647 = vld [vmem:[#allocation5 + $0x780] sm:$0xff]
        %v648 = vld [vmem:[#allocation5 + $0x788] sm:$0xff]
        %v649 = vld [vmem:[#allocation5 + $0x790] sm:$0xff]
        %v650 = vld [vmem:[#allocation5 + $0x798] sm:$0xff]
        %v651 = vld [vmem:[#allocation5 + $0x7a0] sm:$0xff]
        %v652 = vld [vmem:[#allocation5 + $0x7a8] sm:$0xff]
        %v653 = vld [vmem:[#allocation5 + $0x7b0] sm:$0xff]
        %v654 = vld [vmem:[#allocation5 + $0x7b8] sm:$0xff]
        %v655 = vld [vmem:[#allocation5 + $0x7c0] sm:$0xff]
        %v656 = vld [vmem:[#allocation5 + $0x7c8] sm:$0xff]
        %v657 = vld [vmem:[#allocation5 + $0x7d0] sm:$0xff]
        %v658 = vld [vmem:[#allocation5 + $0x7d8] sm:$0xff]
        %v659 = vld [vmem:[#allocation5 + $0x7e0] sm:$0xff]
        %v660 = vld [vmem:[#allocation5 + $0x7e8] sm:$0xff]
        %v661 = vld [vmem:[#allocation5 + $0x7f0] sm:$0xff]
        %v662 = vld [vmem:[#allocation5 + $0x7f8] sm:$0xff]
        %v663 = vld [vmem:[#allocation5 + $0x800] sm:$0xff]
        %v664 = vld [vmem:[#allocation5 + $0x808] sm:$0xff]
        %v665 = vld [vmem:[#allocation5 + $0x810] sm:$0xff]
        %v666 = vld [vmem:[#allocation5 + $0x818] sm:$0xff]
        %v667 = vld [vmem:[#allocation5 + $0x820] sm:$0xff]
        %v668 = vld [vmem:[#allocation5 + $0x828] sm:$0xff]
        %v669 = vld [vmem:[#allocation5 + $0x830] sm:$0xff]
        %v670 = vld [vmem:[#allocation5 + $0x838] sm:$0xff]
        %v671 = vld [vmem:[#allocation5 + $0x840] sm:$0xff]
        %v672 = vld [vmem:[#allocation5 + $0x848] sm:$0xff]
        %v673 = vld [vmem:[#allocation5 + $0x850] sm:$0xff]
        %v674 = vld [vmem:[#allocation5 + $0x858] sm:$0xff]
        %v675 = vld [vmem:[#allocation5 + $0x860] sm:$0xff]
        %v676 = vld [vmem:[#allocation5 + $0x868] sm:$0xff]
        %v677 = vld [vmem:[#allocation5 + $0x870] sm:$0xff]
        %v678 = vld [vmem:[#allocation5 + $0x878] sm:$0xff]
        %v679 = vld [vmem:[#allocation5 + $0x880] sm:$0xff]
        %v680 = vld [vmem:[#allocation5 + $0x888] sm:$0xff]
        %v681 = vld [vmem:[#allocation5 + $0x890] sm:$0xff]
        %v682 = vld [vmem:[#allocation5 + $0x898] sm:$0xff]
        %v683 = vld [vmem:[#allocation5 + $0x8a0] sm:$0xff]
        %v684 = vld [vmem:[#allocation5 + $0x8a8] sm:$0xff]
        %v685 = vld [vmem:[#allocation5 + $0x8b0] sm:$0xff]
        %v686 = vld [vmem:[#allocation5 + $0x8b8] sm:$0xff]
        %v687 = vld [vmem:[#allocation5 + $0x8c0] sm:$0xff]
        %v688 = vld [vmem:[#allocation5 + $0x8c8] sm:$0xff]
        %v689 = vld [vmem:[#allocation5 + $0x8d0] sm:$0xff]
        %v690 = vld [vmem:[#allocation5 + $0x8d8] sm:$0xff]
        %v691 = vld [vmem:[#allocation5 + $0x8e0] sm:$0xff]
        %v692 = vld [vmem:[#allocation5 + $0x8e8] sm:$0xff]
        %v693 = vld [vmem:[#allocation5 + $0x8f0] sm:$0xff]
        %v694 = vld [vmem:[#allocation5 + $0x8f8] sm:$0xff]
        %v695 = vld [vmem:[#allocation5 + $0x900] sm:$0xff]
        %v696 = vld [vmem:[#allocation5 + $0x908] sm:$0xff]
        %v697 = vld [vmem:[#allocation5 + $0x910] sm:$0xff]
        %v698 = vld [vmem:[#allocation5 + $0x918] sm:$0xff]
        %v699 = vld [vmem:[#allocation5 + $0x920] sm:$0xff]
        %v700 = vld [vmem:[#allocation5 + $0x928] sm:$0xff]
        %v701 = vld [vmem:[#allocation5 + $0x930] sm:$0xff]
        %v702 = vld [vmem:[#allocation5 + $0x938] sm:$0xff]
        %v703 = vld [vmem:[#allocation5 + $0x940] sm:$0xff]
        %v704 = vld [vmem:[#allocation5 + $0x948] sm:$0xff]
        %v705 = vld [vmem:[#allocation5 + $0x950] sm:$0xff]
        %v706 = vld [vmem:[#allocation5 + $0x958] sm:$0xff]
        %v707 = vld [vmem:[#allocation5 + $0x960] sm:$0xff]
        %v708 = vld [vmem:[#allocation5 + $0x968] sm:$0xff]
        %v709 = vld [vmem:[#allocation5 + $0x970] sm:$0xff]
        %v710 = vld [vmem:[#allocation5 + $0x978] sm:$0xff]
        %v711 = vld [vmem:[#allocation5 + $0x980] sm:$0xff]
        %v712 = vld [vmem:[#allocation5 + $0x988] sm:$0xff]
        %v713 = vld [vmem:[#allocation5 + $0x990] sm:$0xff]
        %v714 = vld [vmem:[#allocation5 + $0x998] sm:$0xff]
        %v715 = vld [vmem:[#allocation5 + $0x9a0] sm:$0xff]
        %v716 = vld [vmem:[#allocation5 + $0x9a8] sm:$0xff]
        %v717 = vld [vmem:[#allocation5 + $0x9b0] sm:$0xff]
        %v718 = vld [vmem:[#allocation5 + $0x9b8] sm:$0xff]
        %v719 = vld [vmem:[#allocation5 + $0x9c0] sm:$0xff]
        %v720 = vld [vmem:[#allocation5 + $0x9c8] sm:$0xff]
        %v721 = vld [vmem:[#allocation5 + $0x9d0] sm:$0xff]
        %v722 = vld [vmem:[#allocation5 + $0x9d8] sm:$0xff]
        %v723 = vld [vmem:[#allocation5 + $0x9e0] sm:$0xff]
        %v724 = vld [vmem:[#allocation5 + $0x9e8] sm:$0xff]
        %v725 = vld [vmem:[#allocation5 + $0x9f0] sm:$0xff]
        %v726 = vld [vmem:[#allocation5 + $0x9f8] sm:$0xff]
        %v727 = vld [vmem:[#allocation5 + $0xa00] sm:$0xff]
        %v728 = vld [vmem:[#allocation5 + $0xa08] sm:$0xff]
        %v729 = vld [vmem:[#allocation5 + $0xa10] sm:$0xff]
        %v730 = vld [vmem:[#allocation5 + $0xa18] sm:$0xff]
        %v731 = vld [vmem:[#allocation5 + $0xa20] sm:$0xff]
        %v732 = vld [vmem:[#allocation5 + $0xa28] sm:$0xff]
        %v733 = vld [vmem:[#allocation5 + $0xa30] sm:$0xff]
        %v734 = vld [vmem:[#allocation5 + $0xa38] sm:$0xff]
        %v735 = vld [vmem:[#allocation5 + $0xa40] sm:$0xff]
        %v736 = vld [vmem:[#allocation5 + $0xa48] sm:$0xff]
        %v737 = vld [vmem:[#allocation5 + $0xa50] sm:$0xff]
        %v738 = vld [vmem:[#allocation5 + $0xa58] sm:$0xff]
        %v739 = vld [vmem:[#allocation5 + $0xa60] sm:$0xff]
        %v740 = vld [vmem:[#allocation5 + $0xa68] sm:$0xff]
        %v741 = vld [vmem:[#allocation5 + $0xa70] sm:$0xff]
        %v742 = vld [vmem:[#allocation5 + $0xa78] sm:$0xff]
        %v743 = vld [vmem:[#allocation5 + $0xa80] sm:$0xff]
        %v744 = vld [vmem:[#allocation5 + $0xa88] sm:$0xff]
        %v745 = vld [vmem:[#allocation5 + $0xa90] sm:$0xff]
        %v746 = vld [vmem:[#allocation5 + $0xa98] sm:$0xff]
        %v747 = vld [vmem:[#allocation5 + $0xaa0] sm:$0xff]
        %v748 = vld [vmem:[#allocation5 + $0xaa8] sm:$0xff]
        %v749 = vld [vmem:[#allocation5 + $0xab0] sm:$0xff]
        %v750 = vld [vmem:[#allocation5 + $0xab8] sm:$0xff]
        %v751 = vld [vmem:[#allocation5 + $0xac0] sm:$0xff]
        %v752 = vld [vmem:[#allocation5 + $0xac8] sm:$0xff]
        %v753 = vld [vmem:[#allocation5 + $0xad0] sm:$0xff]
        %v754 = vld [vmem:[#allocation5 + $0xad8] sm:$0xff]
        %v755 = vld [vmem:[#allocation5 + $0xae0] sm:$0xff]
        %v756 = vld [vmem:[#allocation5 + $0xae8] sm:$0xff]
        %v757 = vld [vmem:[#allocation5 + $0xaf0] sm:$0xff]
        %v758 = vld [vmem:[#allocation5 + $0xaf8] sm:$0xff]
        %v759 = vld [vmem:[#allocation5 + $0xb00] sm:$0xff]
        %v760 = vld [vmem:[#allocation5 + $0xb08] sm:$0xff]
        %v761 = vld [vmem:[#allocation5 + $0xb10] sm:$0xff]
        %v762 = vld [vmem:[#allocation5 + $0xb18] sm:$0xff]
        %v763 = vld [vmem:[#allocation5 + $0xb20] sm:$0xff]
        %v764 = vld [vmem:[#allocation5 + $0xb28] sm:$0xff]
        %v765 = vld [vmem:[#allocation5 + $0xb30] sm:$0xff]
        %v766 = vld [vmem:[#allocation5 + $0xb38] sm:$0xff]
        %v767 = vld [vmem:[#allocation5 + $0xb40] sm:$0xff]
        %v768 = vld [vmem:[#allocation5 + $0xb48] sm:$0xff]
        %v769 = vld [vmem:[#allocation5 + $0xb50] sm:$0xff]
        %v770 = vld [vmem:[#allocation5 + $0xb58] sm:$0xff]
        %v771 = vld [vmem:[#allocation5 + $0xb60] sm:$0xff]
        %v772 = vld [vmem:[#allocation5 + $0xb68] sm:$0xff]
        %v773 = vld [vmem:[#allocation5 + $0xb70] sm:$0xff]
        %v774 = vld [vmem:[#allocation5 + $0xb78] sm:$0xff]
        %v775 = vld [vmem:[#allocation5 + $0xb80] sm:$0xff]
        %v776 = vld [vmem:[#allocation5 + $0xb88] sm:$0xff]
        %v777 = vld [vmem:[#allocation5 + $0xb90] sm:$0xff]
        %v778 = vld [vmem:[#allocation5 + $0xb98] sm:$0xff]
        %v779 = vld [vmem:[#allocation5 + $0xba0] sm:$0xff]
        %v780 = vld [vmem:[#allocation5 + $0xba8] sm:$0xff]
        %v781 = vld [vmem:[#allocation5 + $0xbb0] sm:$0xff]
        %v782 = vld [vmem:[#allocation5 + $0xbb8] sm:$0xff]
        %v783 = vld [vmem:[#allocation5 + $0xbc0] sm:$0xff]
        %v784 = vld [vmem:[#allocation5 + $0xbc8] sm:$0xff]
        %v785 = vld [vmem:[#allocation5 + $0xbd0] sm:$0xff]
        %v786 = vld [vmem:[#allocation5 + $0xbd8] sm:$0xff]
        %v787 = vld [vmem:[#allocation5 + $0xbe0] sm:$0xff]
        %v788 = vld [vmem:[#allocation5 + $0xbe8] sm:$0xff]
        %v789 = vld [vmem:[#allocation5 + $0xbf0] sm:$0xff]
        %v790 = vld [vmem:[#allocation5 + $0xbf8] sm:$0xff]
        %v815 = vunpack.c.l.b16 %v383
        %v816 = vunpack.c.h.b16 %v383
        %v817 = vunpack.c.l.b16 %v384
        %v818 = vunpack.c.h.b16 %v384
        %v819 = vunpack.c.l.b16 %v385
        %v820 = vunpack.c.h.b16 %v385
        %v821 = vunpack.c.l.b16 %v386
        %v822 = vunpack.c.h.b16 %v386
        %v823 = vunpack.c.l.b16 %v387
        %v824 = vunpack.c.h.b16 %v387
        %v825 = vunpack.c.l.b16 %v388
        %v826 = vunpack.c.h.b16 %v388
        %v827 = vunpack.c.l.b16 %v389
        %v828 = vunpack.c.h.b16 %v389
        %v829 = vunpack.c.l.b16 %v390
        %v830 = vunpack.c.h.b16 %v390
        %v831 = vunpack.c.l.b16 %v391
        %v832 = vunpack.c.h.b16 %v391
        %v833 = vunpack.c.l.b16 %v392
        %v834 = vunpack.c.h.b16 %v392
        %v835 = vunpack.c.l.b16 %v393
        %v836 = vunpack.c.h.b16 %v393
        %v837 = vunpack.c.l.b16 %v394
        %v838 = vunpack.c.h.b16 %v394
        %v839 = vunpack.c.l.b16 %v395
        %v840 = vunpack.c.h.b16 %v395
        %v841 = vunpack.c.l.b16 %v396
        %v842 = vunpack.c.h.b16 %v396
        %v843 = vunpack.c.l.b16 %v397
        %v844 = vunpack.c.h.b16 %v397
        %v845 = vunpack.c.l.b16 %v398
        %v846 = vunpack.c.h.b16 %v398
        %v847 = vunpack.c.l.b16 %v399
        %v848 = vunpack.c.h.b16 %v399
        %v849 = vunpack.c.l.b16 %v400
        %v850 = vunpack.c.h.b16 %v400
        %v851 = vunpack.c.l.b16 %v401
        %v852 = vunpack.c.h.b16 %v401
        %v853 = vunpack.c.l.b16 %v402
        %v854 = vunpack.c.h.b16 %v402
        %v855 = vunpack.c.l.b16 %v403
        %v856 = vunpack.c.h.b16 %v403
        %v857 = vunpack.c.l.b16 %v404
        %v858 = vunpack.c.h.b16 %v404
        %v859 = vunpack.c.l.b16 %v405
        %v860 = vunpack.c.h.b16 %v405
        %v861 = vunpack.c.l.b16 %v406
        %v862 = vunpack.c.h.b16 %v406
        %v863 = vpack.c.b16 %v839, %v815
        %v864 = vpack.c.b16 %v840, %v816
        %v865 = vpack.c.b16 %v841, %v817
        %v866 = vpack.c.b16 %v842, %v818
        %v867 = vpack.c.b16 %v843, %v819
        %v868 = vpack.c.b16 %v844, %v820
        %v869 = vpack.c.b16 %v845, %v821
        %v870 = vpack.c.b16 %v846, %v822
        %v871 = vpack.c.b16 %v847, %v823
        %v872 = vpack.c.b16 %v848, %v824
        %v873 = vpack.c.b16 %v849, %v825
        %v874 = vpack.c.b16 %v850, %v826
        %v875 = vpack.c.b16 %v851, %v827
        %v876 = vpack.c.b16 %v852, %v828
        %v877 = vpack.c.b16 %v853, %v829
        %v878 = vpack.c.b16 %v854, %v830
        %v879 = vpack.c.b16 %v855, %v831
        %v880 = vpack.c.b16 %v856, %v832
        %v881 = vpack.c.b16 %v857, %v833
        %v882 = vpack.c.b16 %v858, %v834
        %v883 = vpack.c.b16 %v859, %v835
        %v884 = vpack.c.b16 %v860, %v836
        %v885 = vpack.c.b16 %v861, %v837
        %v886 = vpack.c.b16 %v862, %v838
        %v1295 = vunpack.c.l.b16 %v407
        %v1296 = vunpack.c.h.b16 %v407
        %v1297 = vunpack.c.l.b16 %v408
        %v1298 = vunpack.c.h.b16 %v408
        %v1299 = vunpack.c.l.b16 %v409
        %v1300 = vunpack.c.h.b16 %v409
        %v1301 = vunpack.c.l.b16 %v410
        %v1302 = vunpack.c.h.b16 %v410
        %v1303 = vunpack.c.l.b16 %v411
        %v1304 = vunpack.c.h.b16 %v411
        %v1305 = vunpack.c.l.b16 %v412
        %v1306 = vunpack.c.h.b16 %v412
        %v1307 = vunpack.c.l.b16 %v413
        %v1308 = vunpack.c.h.b16 %v413
        %v1309 = vunpack.c.l.b16 %v414
        %v1310 = vunpack.c.h.b16 %v414
        %v1311 = vunpack.c.l.b16 %v415
        %v1312 = vunpack.c.h.b16 %v415
        %v1313 = vunpack.c.l.b16 %v416
        %v1314 = vunpack.c.h.b16 %v416
        %v1315 = vunpack.c.l.b16 %v417
        %v1316 = vunpack.c.h.b16 %v417
        %v1317 = vunpack.c.l.b16 %v418
        %v1318 = vunpack.c.h.b16 %v418
        %v1319 = vunpack.c.l.b16 %v419
        %v1320 = vunpack.c.h.b16 %v419
        %v1321 = vunpack.c.l.b16 %v420
        %v1322 = vunpack.c.h.b16 %v420
        %v1323 = vunpack.c.l.b16 %v421
        %v1324 = vunpack.c.h.b16 %v421
        %v1325 = vunpack.c.l.b16 %v422
        %v1326 = vunpack.c.h.b16 %v422
        %v1327 = vunpack.c.l.b16 %v423
        %v1328 = vunpack.c.h.b16 %v423
        %v1329 = vunpack.c.l.b16 %v424
        %v1330 = vunpack.c.h.b16 %v424
        %v1331 = vunpack.c.l.b16 %v425
        %v1332 = vunpack.c.h.b16 %v425
        %v1333 = vunpack.c.l.b16 %v426
        %v1334 = vunpack.c.h.b16 %v426
        %v1335 = vunpack.c.l.b16 %v427
        %v1336 = vunpack.c.h.b16 %v427
        %v1337 = vunpack.c.l.b16 %v428
        %v1338 = vunpack.c.h.b16 %v428
        %v1339 = vunpack.c.l.b16 %v429
        %v1340 = vunpack.c.h.b16 %v429
        %v1341 = vunpack.c.l.b16 %v430
        %v1342 = vunpack.c.h.b16 %v430
        %v1343 = vunpack.c.l.b16 %v431
        %v1344 = vunpack.c.h.b16 %v431
        %v1345 = vunpack.c.l.b16 %v432
        %v1346 = vunpack.c.h.b16 %v432
        %v1347 = vunpack.c.l.b16 %v433
        %v1348 = vunpack.c.h.b16 %v433
        %v1349 = vunpack.c.l.b16 %v434
        %v1350 = vunpack.c.h.b16 %v434
        %v1351 = vunpack.c.l.b16 %v435
        %v1352 = vunpack.c.h.b16 %v435
        %v1353 = vunpack.c.l.b16 %v436
        %v1354 = vunpack.c.h.b16 %v436
        %v1355 = vunpack.c.l.b16 %v437
        %v1356 = vunpack.c.h.b16 %v437
        %v1357 = vunpack.c.l.b16 %v438
        %v1358 = vunpack.c.h.b16 %v438
        %v1359 = vunpack.c.l.b16 %v439
        %v1360 = vunpack.c.h.b16 %v439
        %v1361 = vunpack.c.l.b16 %v440
        %v1362 = vunpack.c.h.b16 %v440
        %v1363 = vunpack.c.l.b16 %v441
        %v1364 = vunpack.c.h.b16 %v441
        %v1365 = vunpack.c.l.b16 %v442
        %v1366 = vunpack.c.h.b16 %v442
        %v1367 = vunpack.c.l.b16 %v443
        %v1368 = vunpack.c.h.b16 %v443
        %v1369 = vunpack.c.l.b16 %v444
        %v1370 = vunpack.c.h.b16 %v444
        %v1371 = vunpack.c.l.b16 %v445
        %v1372 = vunpack.c.h.b16 %v445
        %v1373 = vunpack.c.l.b16 %v446
        %v1374 = vunpack.c.h.b16 %v446
        %v1375 = vunpack.c.l.b16 %v447
        %v1376 = vunpack.c.h.b16 %v447
        %v1377 = vunpack.c.l.b16 %v448
        %v1378 = vunpack.c.h.b16 %v448
        %v1379 = vunpack.c.l.b16 %v449
        %v1380 = vunpack.c.h.b16 %v449
        %v1381 = vunpack.c.l.b16 %v450
        %v1382 = vunpack.c.h.b16 %v450
        %v1383 = vunpack.c.l.b16 %v451
        %v1384 = vunpack.c.h.b16 %v451
        %v1385 = vunpack.c.l.b16 %v452
        %v1386 = vunpack.c.h.b16 %v452
        %v1387 = vunpack.c.l.b16 %v453
        %v1388 = vunpack.c.h.b16 %v453
        %v1389 = vunpack.c.l.b16 %v454
        %v1390 = vunpack.c.h.b16 %v454
        %v1391 = vunpack.c.l.b16 %v455
        %v1392 = vunpack.c.h.b16 %v455
        %v1393 = vunpack.c.l.b16 %v456
        %v1394 = vunpack.c.h.b16 %v456
        %v1395 = vunpack.c.l.b16 %v457
        %v1396 = vunpack.c.h.b16 %v457
        %v1397 = vunpack.c.l.b16 %v458
        %v1398 = vunpack.c.h.b16 %v458
        %v1399 = vunpack.c.l.b16 %v459
        %v1400 = vunpack.c.h.b16 %v459
        %v1401 = vunpack.c.l.b16 %v460
        %v1402 = vunpack.c.h.b16 %v460
        %v1403 = vunpack.c.l.b16 %v461
        %v1404 = vunpack.c.h.b16 %v461
        %v1405 = vunpack.c.l.b16 %v462
        %v1406 = vunpack.c.h.b16 %v462
        %v1407 = vunpack.c.l.b16 %v463
        %v1408 = vunpack.c.h.b16 %v463
        %v1409 = vunpack.c.l.b16 %v464
        %v1410 = vunpack.c.h.b16 %v464
        %v1411 = vunpack.c.l.b16 %v465
        %v1412 = vunpack.c.h.b16 %v465
        %v1413 = vunpack.c.l.b16 %v466
        %v1414 = vunpack.c.h.b16 %v466
        %v1415 = vunpack.c.l.b16 %v467
        %v1416 = vunpack.c.h.b16 %v467
        %v1417 = vunpack.c.l.b16 %v468
        %v1418 = vunpack.c.h.b16 %v468
        %v1419 = vunpack.c.l.b16 %v469
        %v1420 = vunpack.c.h.b16 %v469
        %v1421 = vunpack.c.l.b16 %v470
        %v1422 = vunpack.c.h.b16 %v470
        %v1423 = vunpack.c.l.b16 %v471
        %v1424 = vunpack.c.h.b16 %v471
        %v1425 = vunpack.c.l.b16 %v472
        %v1426 = vunpack.c.h.b16 %v472
        %v1427 = vunpack.c.l.b16 %v473
        %v1428 = vunpack.c.h.b16 %v473
        %v1429 = vunpack.c.l.b16 %v474
        %v1430 = vunpack.c.h.b16 %v474
        %v1431 = vunpack.c.l.b16 %v475
        %v1432 = vunpack.c.h.b16 %v475
        %v1433 = vunpack.c.l.b16 %v476
        %v1434 = vunpack.c.h.b16 %v476
        %v1435 = vunpack.c.l.b16 %v477
        %v1436 = vunpack.c.h.b16 %v477
        %v1437 = vunpack.c.l.b16 %v478
        %v1438 = vunpack.c.h.b16 %v478
        %v1439 = vunpack.c.l.b16 %v479
        %v1440 = vunpack.c.h.b16 %v479
        %v1441 = vunpack.c.l.b16 %v480
        %v1442 = vunpack.c.h.b16 %v480
        %v1443 = vunpack.c.l.b16 %v481
        %v1444 = vunpack.c.h.b16 %v481
        %v1445 = vunpack.c.l.b16 %v482
        %v1446 = vunpack.c.h.b16 %v482
        %v1447 = vunpack.c.l.b16 %v483
        %v1448 = vunpack.c.h.b16 %v483
        %v1449 = vunpack.c.l.b16 %v484
        %v1450 = vunpack.c.h.b16 %v484
        %v1451 = vunpack.c.l.b16 %v485
        %v1452 = vunpack.c.h.b16 %v485
        %v1453 = vunpack.c.l.b16 %v486
        %v1454 = vunpack.c.h.b16 %v486
        %v1455 = vunpack.c.l.b16 %v487
        %v1456 = vunpack.c.h.b16 %v487
        %v1457 = vunpack.c.l.b16 %v488
        %v1458 = vunpack.c.h.b16 %v488
        %v1459 = vunpack.c.l.b16 %v489
        %v1460 = vunpack.c.h.b16 %v489
        %v1461 = vunpack.c.l.b16 %v490
        %v1462 = vunpack.c.h.b16 %v490
        %v1463 = vunpack.c.l.b16 %v491
        %v1464 = vunpack.c.h.b16 %v491
        %v1465 = vunpack.c.l.b16 %v492
        %v1466 = vunpack.c.h.b16 %v492
        %v1467 = vunpack.c.l.b16 %v493
        %v1468 = vunpack.c.h.b16 %v493
        %v1469 = vunpack.c.l.b16 %v494
        %v1470 = vunpack.c.h.b16 %v494
        %v1471 = vunpack.c.l.b16 %v495
        %v1472 = vunpack.c.h.b16 %v495
        %v1473 = vunpack.c.l.b16 %v496
        %v1474 = vunpack.c.h.b16 %v496
        %v1475 = vunpack.c.l.b16 %v497
        %v1476 = vunpack.c.h.b16 %v497
        %v1477 = vunpack.c.l.b16 %v498
        %v1478 = vunpack.c.h.b16 %v498
        %v1479 = vunpack.c.l.b16 %v499
        %v1480 = vunpack.c.h.b16 %v499
        %v1481 = vunpack.c.l.b16 %v500
        %v1482 = vunpack.c.h.b16 %v500
        %v1483 = vunpack.c.l.b16 %v501
        %v1484 = vunpack.c.h.b16 %v501
        %v1485 = vunpack.c.l.b16 %v502
        %v1486 = vunpack.c.h.b16 %v502
        %v1487 = vunpack.c.l.b16 %v503
        %v1488 = vunpack.c.h.b16 %v503
        %v1489 = vunpack.c.l.b16 %v504
        %v1490 = vunpack.c.h.b16 %v504
        %v1491 = vunpack.c.l.b16 %v505
        %v1492 = vunpack.c.h.b16 %v505
        %v1493 = vunpack.c.l.b16 %v506
        %v1494 = vunpack.c.h.b16 %v506
        %v1495 = vunpack.c.l.b16 %v507
        %v1496 = vunpack.c.h.b16 %v507
        %v1497 = vunpack.c.l.b16 %v508
        %v1498 = vunpack.c.h.b16 %v508
        %v1499 = vunpack.c.l.b16 %v509
        %v1500 = vunpack.c.h.b16 %v509
        %v1501 = vunpack.c.l.b16 %v510
        %v1502 = vunpack.c.h.b16 %v510
        %v1503 = vunpack.c.l.b16 %v511
        %v1504 = vunpack.c.h.b16 %v511
        %v1505 = vunpack.c.l.b16 %v512
        %v1506 = vunpack.c.h.b16 %v512
        %v1507 = vunpack.c.l.b16 %v513
        %v1508 = vunpack.c.h.b16 %v513
        %v1509 = vunpack.c.l.b16 %v514
        %v1510 = vunpack.c.h.b16 %v514
        %v1511 = vunpack.c.l.b16 %v515
        %v1512 = vunpack.c.h.b16 %v515
        %v1513 = vunpack.c.l.b16 %v516
        %v1514 = vunpack.c.h.b16 %v516
        %v1515 = vunpack.c.l.b16 %v517
        %v1516 = vunpack.c.h.b16 %v517
        %v1517 = vunpack.c.l.b16 %v518
        %v1518 = vunpack.c.h.b16 %v518
        %v1519 = vunpack.c.l.b16 %v519
        %v1520 = vunpack.c.h.b16 %v519
        %v1521 = vunpack.c.l.b16 %v520
        %v1522 = vunpack.c.h.b16 %v520
        %v1523 = vunpack.c.l.b16 %v521
        %v1524 = vunpack.c.h.b16 %v521
        %v1525 = vunpack.c.l.b16 %v522
        %v1526 = vunpack.c.h.b16 %v522
        %v1527 = vunpack.c.l.b16 %v523
        %v1528 = vunpack.c.h.b16 %v523
        %v1529 = vunpack.c.l.b16 %v524
        %v1530 = vunpack.c.h.b16 %v524
        %v1531 = vunpack.c.l.b16 %v525
        %v1532 = vunpack.c.h.b16 %v525
        %v1533 = vunpack.c.l.b16 %v526
        %v1534 = vunpack.c.h.b16 %v526
        %v1535 = vunpack.c.l.b16 %v527
        %v1536 = vunpack.c.h.b16 %v527
        %v1537 = vunpack.c.l.b16 %v528
        %v1538 = vunpack.c.h.b16 %v528
        %v1539 = vunpack.c.l.b16 %v529
        %v1540 = vunpack.c.h.b16 %v529
        %v1541 = vunpack.c.l.b16 %v530
        %v1542 = vunpack.c.h.b16 %v530
        %v1543 = vunpack.c.l.b16 %v531
        %v1544 = vunpack.c.h.b16 %v531
        %v1545 = vunpack.c.l.b16 %v532
        %v1546 = vunpack.c.h.b16 %v532
        %v1547 = vunpack.c.l.b16 %v533
        %v1548 = vunpack.c.h.b16 %v533
        %v1549 = vunpack.c.l.b16 %v534
        %v1550 = vunpack.c.h.b16 %v534
        %v1551 = vunpack.c.l.b16 %v535
        %v1552 = vunpack.c.h.b16 %v535
        %v1553 = vunpack.c.l.b16 %v536
        %v1554 = vunpack.c.h.b16 %v536
        %v1555 = vunpack.c.l.b16 %v537
        %v1556 = vunpack.c.h.b16 %v537
        %v1557 = vunpack.c.l.b16 %v538
        %v1558 = vunpack.c.h.b16 %v538
        %v1559 = vunpack.c.l.b16 %v539
        %v1560 = vunpack.c.h.b16 %v539
        %v1561 = vunpack.c.l.b16 %v540
        %v1562 = vunpack.c.h.b16 %v540
        %v1563 = vunpack.c.l.b16 %v541
        %v1564 = vunpack.c.h.b16 %v541
        %v1565 = vunpack.c.l.b16 %v542
        %v1566 = vunpack.c.h.b16 %v542
        %v1567 = vunpack.c.l.b16 %v543
        %v1568 = vunpack.c.h.b16 %v543
        %v1569 = vunpack.c.l.b16 %v544
        %v1570 = vunpack.c.h.b16 %v544
        %v1571 = vunpack.c.l.b16 %v545
        %v1572 = vunpack.c.h.b16 %v545
        %v1573 = vunpack.c.l.b16 %v546
        %v1574 = vunpack.c.h.b16 %v546
        %v1575 = vunpack.c.l.b16 %v547
        %v1576 = vunpack.c.h.b16 %v547
        %v1577 = vunpack.c.l.b16 %v548
        %v1578 = vunpack.c.h.b16 %v548
        %v1579 = vunpack.c.l.b16 %v549
        %v1580 = vunpack.c.h.b16 %v549
        %v1581 = vunpack.c.l.b16 %v550
        %v1582 = vunpack.c.h.b16 %v550
        %v1583 = vunpack.c.l.b16 %v551
        %v1584 = vunpack.c.h.b16 %v551
        %v1585 = vunpack.c.l.b16 %v552
        %v1586 = vunpack.c.h.b16 %v552
        %v1587 = vunpack.c.l.b16 %v553
        %v1588 = vunpack.c.h.b16 %v553
        %v1589 = vunpack.c.l.b16 %v554
        %v1590 = vunpack.c.h.b16 %v554
        %v1591 = vunpack.c.l.b16 %v555
        %v1592 = vunpack.c.h.b16 %v555
        %v1593 = vunpack.c.l.b16 %v556
        %v1594 = vunpack.c.h.b16 %v556
        %v1595 = vunpack.c.l.b16 %v557
        %v1596 = vunpack.c.h.b16 %v557
        %v1597 = vunpack.c.l.b16 %v558
        %v1598 = vunpack.c.h.b16 %v558
        %v1599 = vunpack.c.l.b16 %v559
        %v1600 = vunpack.c.h.b16 %v559
        %v1601 = vunpack.c.l.b16 %v560
        %v1602 = vunpack.c.h.b16 %v560
        %v1603 = vunpack.c.l.b16 %v561
        %v1604 = vunpack.c.h.b16 %v561
        %v1605 = vunpack.c.l.b16 %v562
        %v1606 = vunpack.c.h.b16 %v562
        %v1607 = vunpack.c.l.b16 %v563
        %v1608 = vunpack.c.h.b16 %v563
        %v1609 = vunpack.c.l.b16 %v564
        %v1610 = vunpack.c.h.b16 %v564
        %v1611 = vunpack.c.l.b16 %v565
        %v1612 = vunpack.c.h.b16 %v565
        %v1613 = vunpack.c.l.b16 %v566
        %v1614 = vunpack.c.h.b16 %v566
        %v1615 = vunpack.c.l.b16 %v567
        %v1616 = vunpack.c.h.b16 %v567
        %v1617 = vunpack.c.l.b16 %v568
        %v1618 = vunpack.c.h.b16 %v568
        %v1619 = vunpack.c.l.b16 %v569
        %v1620 = vunpack.c.h.b16 %v569
        %v1621 = vunpack.c.l.b16 %v570
        %v1622 = vunpack.c.h.b16 %v570
        %v1623 = vunpack.c.l.b16 %v571
        %v1624 = vunpack.c.h.b16 %v571
        %v1625 = vunpack.c.l.b16 %v572
        %v1626 = vunpack.c.h.b16 %v572
        %v1627 = vunpack.c.l.b16 %v573
        %v1628 = vunpack.c.h.b16 %v573
        %v1629 = vunpack.c.l.b16 %v574
        %v1630 = vunpack.c.h.b16 %v574
        %v1631 = vunpack.c.l.b16 %v575
        %v1632 = vunpack.c.h.b16 %v575
        %v1633 = vunpack.c.l.b16 %v576
        %v1634 = vunpack.c.h.b16 %v576
        %v1635 = vunpack.c.l.b16 %v577
        %v1636 = vunpack.c.h.b16 %v577
        %v1637 = vunpack.c.l.b16 %v578
        %v1638 = vunpack.c.h.b16 %v578
        %v1639 = vunpack.c.l.b16 %v579
        %v1640 = vunpack.c.h.b16 %v579
        %v1641 = vunpack.c.l.b16 %v580
        %v1642 = vunpack.c.h.b16 %v580
        %v1643 = vunpack.c.l.b16 %v581
        %v1644 = vunpack.c.h.b16 %v581
        %v1645 = vunpack.c.l.b16 %v582
        %v1646 = vunpack.c.h.b16 %v582
        %v1647 = vunpack.c.l.b16 %v583
        %v1648 = vunpack.c.h.b16 %v583
        %v1649 = vunpack.c.l.b16 %v584
        %v1650 = vunpack.c.h.b16 %v584
        %v1651 = vunpack.c.l.b16 %v585
        %v1652 = vunpack.c.h.b16 %v585
        %v1653 = vunpack.c.l.b16 %v586
        %v1654 = vunpack.c.h.b16 %v586
        %v1655 = vunpack.c.l.b16 %v587
        %v1656 = vunpack.c.h.b16 %v587
        %v1657 = vunpack.c.l.b16 %v588
        %v1658 = vunpack.c.h.b16 %v588
        %v1659 = vunpack.c.l.b16 %v589
        %v1660 = vunpack.c.h.b16 %v589
        %v1661 = vunpack.c.l.b16 %v590
        %v1662 = vunpack.c.h.b16 %v590
        %v1663 = vunpack.c.l.b16 %v591
        %v1664 = vunpack.c.h.b16 %v591
        %v1665 = vunpack.c.l.b16 %v592
        %v1666 = vunpack.c.h.b16 %v592
        %v1667 = vunpack.c.l.b16 %v593
        %v1668 = vunpack.c.h.b16 %v593
        %v1669 = vunpack.c.l.b16 %v594
        %v1670 = vunpack.c.h.b16 %v594
        %v1671 = vunpack.c.l.b16 %v595
        %v1672 = vunpack.c.h.b16 %v595
        %v1673 = vunpack.c.l.b16 %v596
        %v1674 = vunpack.c.h.b16 %v596
        %v1675 = vunpack.c.l.b16 %v597
        %v1676 = vunpack.c.h.b16 %v597
        %v1677 = vunpack.c.l.b16 %v598
        %v1678 = vunpack.c.h.b16 %v598
        %v1679 = vunpack.c.l.b16 %v599
        %v1680 = vunpack.c.h.b16 %v599
        %v1681 = vunpack.c.l.b16 %v600
        %v1682 = vunpack.c.h.b16 %v600
        %v1683 = vunpack.c.l.b16 %v601
        %v1684 = vunpack.c.h.b16 %v601
        %v1685 = vunpack.c.l.b16 %v602
        %v1686 = vunpack.c.h.b16 %v602
        %v1687 = vunpack.c.l.b16 %v603
        %v1688 = vunpack.c.h.b16 %v603
        %v1689 = vunpack.c.l.b16 %v604
        %v1690 = vunpack.c.h.b16 %v604
        %v1691 = vunpack.c.l.b16 %v605
        %v1692 = vunpack.c.h.b16 %v605
        %v1693 = vunpack.c.l.b16 %v606
        %v1694 = vunpack.c.h.b16 %v606
        %v1695 = vunpack.c.l.b16 %v607
        %v1696 = vunpack.c.h.b16 %v607
        %v1697 = vunpack.c.l.b16 %v608
        %v1698 = vunpack.c.h.b16 %v608
        %v1699 = vunpack.c.l.b16 %v609
        %v1700 = vunpack.c.h.b16 %v609
        %v1701 = vunpack.c.l.b16 %v610
        %v1702 = vunpack.c.h.b16 %v610
        %v1703 = vunpack.c.l.b16 %v611
        %v1704 = vunpack.c.h.b16 %v611
        %v1705 = vunpack.c.l.b16 %v612
        %v1706 = vunpack.c.h.b16 %v612
        %v1707 = vunpack.c.l.b16 %v613
        %v1708 = vunpack.c.h.b16 %v613
        %v1709 = vunpack.c.l.b16 %v614
        %v1710 = vunpack.c.h.b16 %v614
        %v1711 = vunpack.c.l.b16 %v615
        %v1712 = vunpack.c.h.b16 %v615
        %v1713 = vunpack.c.l.b16 %v616
        %v1714 = vunpack.c.h.b16 %v616
        %v1715 = vunpack.c.l.b16 %v617
        %v1716 = vunpack.c.h.b16 %v617
        %v1717 = vunpack.c.l.b16 %v618
        %v1718 = vunpack.c.h.b16 %v618
        %v1719 = vunpack.c.l.b16 %v619
        %v1720 = vunpack.c.h.b16 %v619
        %v1721 = vunpack.c.l.b16 %v620
        %v1722 = vunpack.c.h.b16 %v620
        %v1723 = vunpack.c.l.b16 %v621
        %v1724 = vunpack.c.h.b16 %v621
        %v1725 = vunpack.c.l.b16 %v622
        %v1726 = vunpack.c.h.b16 %v622
        %v1727 = vunpack.c.l.b16 %v623
        %v1728 = vunpack.c.h.b16 %v623
        %v1729 = vunpack.c.l.b16 %v624
        %v1730 = vunpack.c.h.b16 %v624
        %v1731 = vunpack.c.l.b16 %v625
        %v1732 = vunpack.c.h.b16 %v625
        %v1733 = vunpack.c.l.b16 %v626
        %v1734 = vunpack.c.h.b16 %v626
        %v1735 = vunpack.c.l.b16 %v627
        %v1736 = vunpack.c.h.b16 %v627
        %v1737 = vunpack.c.l.b16 %v628
        %v1738 = vunpack.c.h.b16 %v628
        %v1739 = vunpack.c.l.b16 %v629
        %v1740 = vunpack.c.h.b16 %v629
        %v1741 = vunpack.c.l.b16 %v630
        %v1742 = vunpack.c.h.b16 %v630
        %v1743 = vunpack.c.l.b16 %v631
        %v1744 = vunpack.c.h.b16 %v631
        %v1745 = vunpack.c.l.b16 %v632
        %v1746 = vunpack.c.h.b16 %v632
        %v1747 = vunpack.c.l.b16 %v633
        %v1748 = vunpack.c.h.b16 %v633
        %v1749 = vunpack.c.l.b16 %v634
        %v1750 = vunpack.c.h.b16 %v634
        %v1751 = vunpack.c.l.b16 %v635
        %v1752 = vunpack.c.h.b16 %v635
        %v1753 = vunpack.c.l.b16 %v636
        %v1754 = vunpack.c.h.b16 %v636
        %v1755 = vunpack.c.l.b16 %v637
        %v1756 = vunpack.c.h.b16 %v637
        %v1757 = vunpack.c.l.b16 %v638
        %v1758 = vunpack.c.h.b16 %v638
        %v1759 = vunpack.c.l.b16 %v639
        %v1760 = vunpack.c.h.b16 %v639
        %v1761 = vunpack.c.l.b16 %v640
        %v1762 = vunpack.c.h.b16 %v640
        %v1763 = vunpack.c.l.b16 %v641
        %v1764 = vunpack.c.h.b16 %v641
        %v1765 = vunpack.c.l.b16 %v642
        %v1766 = vunpack.c.h.b16 %v642
        %v1767 = vunpack.c.l.b16 %v643
        %v1768 = vunpack.c.h.b16 %v643
        %v1769 = vunpack.c.l.b16 %v644
        %v1770 = vunpack.c.h.b16 %v644
        %v1771 = vunpack.c.l.b16 %v645
        %v1772 = vunpack.c.h.b16 %v645
        %v1773 = vunpack.c.l.b16 %v646
        %v1774 = vunpack.c.h.b16 %v646
        %v1775 = vunpack.c.l.b16 %v647
        %v1776 = vunpack.c.h.b16 %v647
        %v1777 = vunpack.c.l.b16 %v648
        %v1778 = vunpack.c.h.b16 %v648
        %v1779 = vunpack.c.l.b16 %v649
        %v1780 = vunpack.c.h.b16 %v649
        %v1781 = vunpack.c.l.b16 %v650
        %v1782 = vunpack.c.h.b16 %v650
        %v1783 = vunpack.c.l.b16 %v651
        %v1784 = vunpack.c.h.b16 %v651
        %v1785 = vunpack.c.l.b16 %v652
        %v1786 = vunpack.c.h.b16 %v652
        %v1787 = vunpack.c.l.b16 %v653
        %v1788 = vunpack.c.h.b16 %v653
        %v1789 = vunpack.c.l.b16 %v654
        %v1790 = vunpack.c.h.b16 %v654
        %v1791 = vunpack.c.l.b16 %v655
        %v1792 = vunpack.c.h.b16 %v655
        %v1793 = vunpack.c.l.b16 %v656
        %v1794 = vunpack.c.h.b16 %v656
        %v1795 = vunpack.c.l.b16 %v657
        %v1796 = vunpack.c.h.b16 %v657
        %v1797 = vunpack.c.l.b16 %v658
        %v1798 = vunpack.c.h.b16 %v658
        %v1799 = vunpack.c.l.b16 %v659
        %v1800 = vunpack.c.h.b16 %v659
        %v1801 = vunpack.c.l.b16 %v660
        %v1802 = vunpack.c.h.b16 %v660
        %v1803 = vunpack.c.l.b16 %v661
        %v1804 = vunpack.c.h.b16 %v661
        %v1805 = vunpack.c.l.b16 %v662
        %v1806 = vunpack.c.h.b16 %v662
        %v1807 = vunpack.c.l.b16 %v663
        %v1808 = vunpack.c.h.b16 %v663
        %v1809 = vunpack.c.l.b16 %v664
        %v1810 = vunpack.c.h.b16 %v664
        %v1811 = vunpack.c.l.b16 %v665
        %v1812 = vunpack.c.h.b16 %v665
        %v1813 = vunpack.c.l.b16 %v666
        %v1814 = vunpack.c.h.b16 %v666
        %v1815 = vunpack.c.l.b16 %v667
        %v1816 = vunpack.c.h.b16 %v667
        %v1817 = vunpack.c.l.b16 %v668
        %v1818 = vunpack.c.h.b16 %v668
        %v1819 = vunpack.c.l.b16 %v669
        %v1820 = vunpack.c.h.b16 %v669
        %v1821 = vunpack.c.l.b16 %v670
        %v1822 = vunpack.c.h.b16 %v670
        %v1823 = vunpack.c.l.b16 %v671
        %v1824 = vunpack.c.h.b16 %v671
        %v1825 = vunpack.c.l.b16 %v672
        %v1826 = vunpack.c.h.b16 %v672
        %v1827 = vunpack.c.l.b16 %v673
        %v1828 = vunpack.c.h.b16 %v673
        %v1829 = vunpack.c.l.b16 %v674
        %v1830 = vunpack.c.h.b16 %v674
        %v1831 = vunpack.c.l.b16 %v675
        %v1832 = vunpack.c.h.b16 %v675
        %v1833 = vunpack.c.l.b16 %v676
        %v1834 = vunpack.c.h.b16 %v676
        %v1835 = vunpack.c.l.b16 %v677
        %v1836 = vunpack.c.h.b16 %v677
        %v1837 = vunpack.c.l.b16 %v678
        %v1838 = vunpack.c.h.b16 %v678
        %v1839 = vunpack.c.l.b16 %v679
        %v1840 = vunpack.c.h.b16 %v679
        %v1841 = vunpack.c.l.b16 %v680
        %v1842 = vunpack.c.h.b16 %v680
        %v1843 = vunpack.c.l.b16 %v681
        %v1844 = vunpack.c.h.b16 %v681
        %v1845 = vunpack.c.l.b16 %v682
        %v1846 = vunpack.c.h.b16 %v682
        %v1847 = vunpack.c.l.b16 %v683
        %v1848 = vunpack.c.h.b16 %v683
        %v1849 = vunpack.c.l.b16 %v684
        %v1850 = vunpack.c.h.b16 %v684
        %v1851 = vunpack.c.l.b16 %v685
        %v1852 = vunpack.c.h.b16 %v685
        %v1853 = vunpack.c.l.b16 %v686
        %v1854 = vunpack.c.h.b16 %v686
        %v1855 = vunpack.c.l.b16 %v687
        %v1856 = vunpack.c.h.b16 %v687
        %v1857 = vunpack.c.l.b16 %v688
        %v1858 = vunpack.c.h.b16 %v688
        %v1859 = vunpack.c.l.b16 %v689
        %v1860 = vunpack.c.h.b16 %v689
        %v1861 = vunpack.c.l.b16 %v690
        %v1862 = vunpack.c.h.b16 %v690
        %v1863 = vunpack.c.l.b16 %v691
        %v1864 = vunpack.c.h.b16 %v691
        %v1865 = vunpack.c.l.b16 %v692
        %v1866 = vunpack.c.h.b16 %v692
        %v1867 = vunpack.c.l.b16 %v693
        %v1868 = vunpack.c.h.b16 %v693
        %v1869 = vunpack.c.l.b16 %v694
        %v1870 = vunpack.c.h.b16 %v694
        %v1871 = vunpack.c.l.b16 %v695
        %v1872 = vunpack.c.h.b16 %v695
        %v1873 = vunpack.c.l.b16 %v696
        %v1874 = vunpack.c.h.b16 %v696
        %v1875 = vunpack.c.l.b16 %v697
        %v1876 = vunpack.c.h.b16 %v697
        %v1877 = vunpack.c.l.b16 %v698
        %v1878 = vunpack.c.h.b16 %v698
        %v1879 = vunpack.c.l.b16 %v699
        %v1880 = vunpack.c.h.b16 %v699
        %v1881 = vunpack.c.l.b16 %v700
        %v1882 = vunpack.c.h.b16 %v700
        %v1883 = vunpack.c.l.b16 %v701
        %v1884 = vunpack.c.h.b16 %v701
        %v1885 = vunpack.c.l.b16 %v702
        %v1886 = vunpack.c.h.b16 %v702
        %v1887 = vunpack.c.l.b16 %v703
        %v1888 = vunpack.c.h.b16 %v703
        %v1889 = vunpack.c.l.b16 %v704
        %v1890 = vunpack.c.h.b16 %v704
        %v1891 = vunpack.c.l.b16 %v705
        %v1892 = vunpack.c.h.b16 %v705
        %v1893 = vunpack.c.l.b16 %v706
        %v1894 = vunpack.c.h.b16 %v706
        %v1895 = vunpack.c.l.b16 %v707
        %v1896 = vunpack.c.h.b16 %v707
        %v1897 = vunpack.c.l.b16 %v708
        %v1898 = vunpack.c.h.b16 %v708
        %v1899 = vunpack.c.l.b16 %v709
        %v1900 = vunpack.c.h.b16 %v709
        %v1901 = vunpack.c.l.b16 %v710
        %v1902 = vunpack.c.h.b16 %v710
        %v1903 = vunpack.c.l.b16 %v711
        %v1904 = vunpack.c.h.b16 %v711
        %v1905 = vunpack.c.l.b16 %v712
        %v1906 = vunpack.c.h.b16 %v712
        %v1907 = vunpack.c.l.b16 %v713
        %v1908 = vunpack.c.h.b16 %v713
        %v1909 = vunpack.c.l.b16 %v714
        %v1910 = vunpack.c.h.b16 %v714
        %v1911 = vunpack.c.l.b16 %v715
        %v1912 = vunpack.c.h.b16 %v715
        %v1913 = vunpack.c.l.b16 %v716
        %v1914 = vunpack.c.h.b16 %v716
        %v1915 = vunpack.c.l.b16 %v717
        %v1916 = vunpack.c.h.b16 %v717
        %v1917 = vunpack.c.l.b16 %v718
        %v1918 = vunpack.c.h.b16 %v718
        %v1919 = vunpack.c.l.b16 %v719
        %v1920 = vunpack.c.h.b16 %v719
        %v1921 = vunpack.c.l.b16 %v720
        %v1922 = vunpack.c.h.b16 %v720
        %v1923 = vunpack.c.l.b16 %v721
        %v1924 = vunpack.c.h.b16 %v721
        %v1925 = vunpack.c.l.b16 %v722
        %v1926 = vunpack.c.h.b16 %v722
        %v1927 = vunpack.c.l.b16 %v723
        %v1928 = vunpack.c.h.b16 %v723
        %v1929 = vunpack.c.l.b16 %v724
        %v1930 = vunpack.c.h.b16 %v724
        %v1931 = vunpack.c.l.b16 %v725
        %v1932 = vunpack.c.h.b16 %v725
        %v1933 = vunpack.c.l.b16 %v726
        %v1934 = vunpack.c.h.b16 %v726
        %v1935 = vunpack.c.l.b16 %v727
        %v1936 = vunpack.c.h.b16 %v727
        %v1937 = vunpack.c.l.b16 %v728
        %v1938 = vunpack.c.h.b16 %v728
        %v1939 = vunpack.c.l.b16 %v729
        %v1940 = vunpack.c.h.b16 %v729
        %v1941 = vunpack.c.l.b16 %v730
        %v1942 = vunpack.c.h.b16 %v730
        %v1943 = vunpack.c.l.b16 %v731
        %v1944 = vunpack.c.h.b16 %v731
        %v1945 = vunpack.c.l.b16 %v732
        %v1946 = vunpack.c.h.b16 %v732
        %v1947 = vunpack.c.l.b16 %v733
        %v1948 = vunpack.c.h.b16 %v733
        %v1949 = vunpack.c.l.b16 %v734
        %v1950 = vunpack.c.h.b16 %v734
        %v1951 = vunpack.c.l.b16 %v735
        %v1952 = vunpack.c.h.b16 %v735
        %v1953 = vunpack.c.l.b16 %v736
        %v1954 = vunpack.c.h.b16 %v736
        %v1955 = vunpack.c.l.b16 %v737
        %v1956 = vunpack.c.h.b16 %v737
        %v1957 = vunpack.c.l.b16 %v738
        %v1958 = vunpack.c.h.b16 %v738
        %v1959 = vunpack.c.l.b16 %v739
        %v1960 = vunpack.c.h.b16 %v739
        %v1961 = vunpack.c.l.b16 %v740
        %v1962 = vunpack.c.h.b16 %v740
        %v1963 = vunpack.c.l.b16 %v741
        %v1964 = vunpack.c.h.b16 %v741
        %v1965 = vunpack.c.l.b16 %v742
        %v1966 = vunpack.c.h.b16 %v742
        %v1967 = vunpack.c.l.b16 %v743
        %v1968 = vunpack.c.h.b16 %v743
        %v1969 = vunpack.c.l.b16 %v744
        %v1970 = vunpack.c.h.b16 %v744
        %v1971 = vunpack.c.l.b16 %v745
        %v1972 = vunpack.c.h.b16 %v745
        %v1973 = vunpack.c.l.b16 %v746
        %v1974 = vunpack.c.h.b16 %v746
        %v1975 = vunpack.c.l.b16 %v747
        %v1976 = vunpack.c.h.b16 %v747
        %v1977 = vunpack.c.l.b16 %v748
        %v1978 = vunpack.c.h.b16 %v748
        %v1979 = vunpack.c.l.b16 %v749
        %v1980 = vunpack.c.h.b16 %v749
        %v1981 = vunpack.c.l.b16 %v750
        %v1982 = vunpack.c.h.b16 %v750
        %v1983 = vunpack.c.l.b16 %v751
        %v1984 = vunpack.c.h.b16 %v751
        %v1985 = vunpack.c.l.b16 %v752
        %v1986 = vunpack.c.h.b16 %v752
        %v1987 = vunpack.c.l.b16 %v753
        %v1988 = vunpack.c.h.b16 %v753
        %v1989 = vunpack.c.l.b16 %v754
        %v1990 = vunpack.c.h.b16 %v754
        %v1991 = vunpack.c.l.b16 %v755
        %v1992 = vunpack.c.h.b16 %v755
        %v1993 = vunpack.c.l.b16 %v756
        %v1994 = vunpack.c.h.b16 %v756
        %v1995 = vunpack.c.l.b16 %v757
        %v1996 = vunpack.c.h.b16 %v757
        %v1997 = vunpack.c.l.b16 %v758
        %v1998 = vunpack.c.h.b16 %v758
        %v1999 = vunpack.c.l.b16 %v759
        %v2000 = vunpack.c.h.b16 %v759
        %v2001 = vunpack.c.l.b16 %v760
        %v2002 = vunpack.c.h.b16 %v760
        %v2003 = vunpack.c.l.b16 %v761
        %v2004 = vunpack.c.h.b16 %v761
        %v2005 = vunpack.c.l.b16 %v762
        %v2006 = vunpack.c.h.b16 %v762
        %v2007 = vunpack.c.l.b16 %v763
        %v2008 = vunpack.c.h.b16 %v763
        %v2009 = vunpack.c.l.b16 %v764
        %v2010 = vunpack.c.h.b16 %v764
        %v2011 = vunpack.c.l.b16 %v765
        %v2012 = vunpack.c.h.b16 %v765
        %v2013 = vunpack.c.l.b16 %v766
        %v2014 = vunpack.c.h.b16 %v766
        %v2015 = vunpack.c.l.b16 %v767
        %v2016 = vunpack.c.h.b16 %v767
        %v2017 = vunpack.c.l.b16 %v768
        %v2018 = vunpack.c.h.b16 %v768
        %v2019 = vunpack.c.l.b16 %v769
        %v2020 = vunpack.c.h.b16 %v769
        %v2021 = vunpack.c.l.b16 %v770
        %v2022 = vunpack.c.h.b16 %v770
        %v2023 = vunpack.c.l.b16 %v771
        %v2024 = vunpack.c.h.b16 %v771
        %v2025 = vunpack.c.l.b16 %v772
        %v2026 = vunpack.c.h.b16 %v772
        %v2027 = vunpack.c.l.b16 %v773
        %v2028 = vunpack.c.h.b16 %v773
        %v2029 = vunpack.c.l.b16 %v774
        %v2030 = vunpack.c.h.b16 %v774
        %v2031 = vunpack.c.l.b16 %v775
        %v2032 = vunpack.c.h.b16 %v775
        %v2033 = vunpack.c.l.b16 %v776
        %v2034 = vunpack.c.h.b16 %v776
        %v2035 = vunpack.c.l.b16 %v777
        %v2036 = vunpack.c.h.b16 %v777
        %v2037 = vunpack.c.l.b16 %v778
        %v2038 = vunpack.c.h.b16 %v778
        %v2039 = vunpack.c.l.b16 %v779
        %v2040 = vunpack.c.h.b16 %v779
        %v2041 = vunpack.c.l.b16 %v780
        %v2042 = vunpack.c.h.b16 %v780
        %v2043 = vunpack.c.l.b16 %v781
        %v2044 = vunpack.c.h.b16 %v781
        %v2045 = vunpack.c.l.b16 %v782
        %v2046 = vunpack.c.h.b16 %v782
        %v2047 = vunpack.c.l.b16 %v783
        %v2048 = vunpack.c.h.b16 %v783
        %v2049 = vunpack.c.l.b16 %v784
        %v2050 = vunpack.c.h.b16 %v784
        %v2051 = vunpack.c.l.b16 %v785
        %v2052 = vunpack.c.h.b16 %v785
        %v2053 = vunpack.c.l.b16 %v786
        %v2054 = vunpack.c.h.b16 %v786
        %v2055 = vunpack.c.l.b16 %v787
        %v2056 = vunpack.c.h.b16 %v787
        %v2057 = vunpack.c.l.b16 %v788
        %v2058 = vunpack.c.h.b16 %v788
        %v2059 = vunpack.c.l.b16 %v789
        %v2060 = vunpack.c.h.b16 %v789
        %v2061 = vunpack.c.l.b16 %v790
        %v2062 = vunpack.c.h.b16 %v790
        %v2063 = vpack.c.b16 %v1297, %v1295
        %v2064 = vpack.c.b16 %v1298, %v1296
        %v2065 = vpack.c.b16 %v1301, %v1299
        %v2066 = vpack.c.b16 %v1302, %v1300
        %v2067 = vpack.c.b16 %v1305, %v1303
        %v2068 = vpack.c.b16 %v1306, %v1304
        %v2069 = vpack.c.b16 %v1309, %v1307
        %v2070 = vpack.c.b16 %v1310, %v1308
        %v2071 = vpack.c.b16 %v1313, %v1311
        %v2072 = vpack.c.b16 %v1314, %v1312
        %v2073 = vpack.c.b16 %v1317, %v1315
        %v2074 = vpack.c.b16 %v1318, %v1316
        %v2075 = vpack.c.b16 %v1321, %v1319
        %v2076 = vpack.c.b16 %v1322, %v1320
        %v2077 = vpack.c.b16 %v1325, %v1323
        %v2078 = vpack.c.b16 %v1326, %v1324
        %v2079 = vpack.c.b16 %v1329, %v1327
        %v2080 = vpack.c.b16 %v1330, %v1328
        %v2081 = vpack.c.b16 %v1333, %v1331
        %v2082 = vpack.c.b16 %v1334, %v1332
        %v2083 = vpack.c.b16 %v1337, %v1335
        %v2084 = vpack.c.b16 %v1338, %v1336
        %v2085 = vpack.c.b16 %v1341, %v1339
        %v2086 = vpack.c.b16 %v1342, %v1340
        %v2087 = vpack.c.b16 %v1345, %v1343
        %v2088 = vpack.c.b16 %v1346, %v1344
        %v2089 = vpack.c.b16 %v1349, %v1347
        %v2090 = vpack.c.b16 %v1350, %v1348
        %v2091 = vpack.c.b16 %v1353, %v1351
        %v2092 = vpack.c.b16 %v1354, %v1352
        %v2093 = vpack.c.b16 %v1357, %v1355
        %v2094 = vpack.c.b16 %v1358, %v1356
        %v2095 = vpack.c.b16 %v1361, %v1359
        %v2096 = vpack.c.b16 %v1362, %v1360
        %v2097 = vpack.c.b16 %v1365, %v1363
        %v2098 = vpack.c.b16 %v1366, %v1364
        %v2099 = vpack.c.b16 %v1369, %v1367
        %v2100 = vpack.c.b16 %v1370, %v1368
        %v2101 = vpack.c.b16 %v1373, %v1371
        %v2102 = vpack.c.b16 %v1374, %v1372
        %v2103 = vpack.c.b16 %v1377, %v1375
        %v2104 = vpack.c.b16 %v1378, %v1376
        %v2105 = vpack.c.b16 %v1381, %v1379
        %v2106 = vpack.c.b16 %v1382, %v1380
        %v2107 = vpack.c.b16 %v1385, %v1383
        %v2108 = vpack.c.b16 %v1386, %v1384
        %v2109 = vpack.c.b16 %v1389, %v1387
        %v2110 = vpack.c.b16 %v1390, %v1388
        %v2111 = vpack.c.b16 %v1393, %v1391
        %v2112 = vpack.c.b16 %v1394, %v1392
        %v2113 = vpack.c.b16 %v1397, %v1395
        %v2114 = vpack.c.b16 %v1398, %v1396
        %v2115 = vpack.c.b16 %v1401, %v1399
        %v2116 = vpack.c.b16 %v1402, %v1400
        %v2117 = vpack.c.b16 %v1405, %v1403
        %v2118 = vpack.c.b16 %v1406, %v1404
        %v2119 = vpack.c.b16 %v1409, %v1407
        %v2120 = vpack.c.b16 %v1410, %v1408
        %v2121 = vpack.c.b16 %v1413, %v1411
        %v2122 = vpack.c.b16 %v1414, %v1412
        %v2123 = vpack.c.b16 %v1417, %v1415
        %v2124 = vpack.c.b16 %v1418, %v1416
        %v2125 = vpack.c.b16 %v1421, %v1419
        %v2126 = vpack.c.b16 %v1422, %v1420
        %v2127 = vpack.c.b16 %v1425, %v1423
        %v2128 = vpack.c.b16 %v1426, %v1424
        %v2129 = vpack.c.b16 %v1429, %v1427
        %v2130 = vpack.c.b16 %v1430, %v1428
        %v2131 = vpack.c.b16 %v1433, %v1431
        %v2132 = vpack.c.b16 %v1434, %v1432
        %v2133 = vpack.c.b16 %v1437, %v1435
        %v2134 = vpack.c.b16 %v1438, %v1436
        %v2135 = vpack.c.b16 %v1441, %v1439
        %v2136 = vpack.c.b16 %v1442, %v1440
        %v2137 = vpack.c.b16 %v1445, %v1443
        %v2138 = vpack.c.b16 %v1446, %v1444
        %v2139 = vpack.c.b16 %v1449, %v1447
        %v2140 = vpack.c.b16 %v1450, %v1448
        %v2141 = vpack.c.b16 %v1453, %v1451
        %v2142 = vpack.c.b16 %v1454, %v1452
        %v2143 = vpack.c.b16 %v1457, %v1455
        %v2144 = vpack.c.b16 %v1458, %v1456
        %v2145 = vpack.c.b16 %v1461, %v1459
        %v2146 = vpack.c.b16 %v1462, %v1460
        %v2147 = vpack.c.b16 %v1465, %v1463
        %v2148 = vpack.c.b16 %v1466, %v1464
        %v2149 = vpack.c.b16 %v1469, %v1467
        %v2150 = vpack.c.b16 %v1470, %v1468
        %v2151 = vpack.c.b16 %v1473, %v1471
        %v2152 = vpack.c.b16 %v1474, %v1472
        %v2153 = vpack.c.b16 %v1477, %v1475
        %v2154 = vpack.c.b16 %v1478, %v1476
        %v2155 = vpack.c.b16 %v1481, %v1479
        %v2156 = vpack.c.b16 %v1482, %v1480
        %v2157 = vpack.c.b16 %v1485, %v1483
        %v2158 = vpack.c.b16 %v1486, %v1484
        %v2159 = vpack.c.b16 %v1489, %v1487
        %v2160 = vpack.c.b16 %v1490, %v1488
        %v2161 = vpack.c.b16 %v1493, %v1491
        %v2162 = vpack.c.b16 %v1494, %v1492
        %v2163 = vpack.c.b16 %v1497, %v1495
        %v2164 = vpack.c.b16 %v1498, %v1496
        %v2165 = vpack.c.b16 %v1501, %v1499
        %v2166 = vpack.c.b16 %v1502, %v1500
        %v2167 = vpack.c.b16 %v1505, %v1503
        %v2168 = vpack.c.b16 %v1506, %v1504
        %v2169 = vpack.c.b16 %v1509, %v1507
        %v2170 = vpack.c.b16 %v1510, %v1508
        %v2171 = vpack.c.b16 %v1513, %v1511
        %v2172 = vpack.c.b16 %v1514, %v1512
        %v2173 = vpack.c.b16 %v1517, %v1515
        %v2174 = vpack.c.b16 %v1518, %v1516
        %v2175 = vpack.c.b16 %v1521, %v1519
        %v2176 = vpack.c.b16 %v1522, %v1520
        %v2177 = vpack.c.b16 %v1525, %v1523
        %v2178 = vpack.c.b16 %v1526, %v1524
        %v2179 = vpack.c.b16 %v1529, %v1527
        %v2180 = vpack.c.b16 %v1530, %v1528
        %v2181 = vpack.c.b16 %v1533, %v1531
        %v2182 = vpack.c.b16 %v1534, %v1532
        %v2183 = vpack.c.b16 %v1537, %v1535
        %v2184 = vpack.c.b16 %v1538, %v1536
        %v2185 = vpack.c.b16 %v1541, %v1539
        %v2186 = vpack.c.b16 %v1542, %v1540
        %v2187 = vpack.c.b16 %v1545, %v1543
        %v2188 = vpack.c.b16 %v1546, %v1544
        %v2189 = vpack.c.b16 %v1549, %v1547
        %v2190 = vpack.c.b16 %v1550, %v1548
        %v2191 = vpack.c.b16 %v1553, %v1551
        %v2192 = vpack.c.b16 %v1554, %v1552
        %v2193 = vpack.c.b16 %v1557, %v1555
        %v2194 = vpack.c.b16 %v1558, %v1556
        %v2195 = vpack.c.b16 %v1561, %v1559
        %v2196 = vpack.c.b16 %v1562, %v1560
        %v2197 = vpack.c.b16 %v1565, %v1563
        %v2198 = vpack.c.b16 %v1566, %v1564
        %v2199 = vpack.c.b16 %v1569, %v1567
        %v2200 = vpack.c.b16 %v1570, %v1568
        %v2201 = vpack.c.b16 %v1573, %v1571
        %v2202 = vpack.c.b16 %v1574, %v1572
        %v2203 = vpack.c.b16 %v1577, %v1575
        %v2204 = vpack.c.b16 %v1578, %v1576
        %v2205 = vpack.c.b16 %v1581, %v1579
        %v2206 = vpack.c.b16 %v1582, %v1580
        %v2207 = vpack.c.b16 %v1585, %v1583
        %v2208 = vpack.c.b16 %v1586, %v1584
        %v2209 = vpack.c.b16 %v1589, %v1587
        %v2210 = vpack.c.b16 %v1590, %v1588
        %v2211 = vpack.c.b16 %v1593, %v1591
        %v2212 = vpack.c.b16 %v1594, %v1592
        %v2213 = vpack.c.b16 %v1597, %v1595
        %v2214 = vpack.c.b16 %v1598, %v1596
        %v2215 = vpack.c.b16 %v1601, %v1599
        %v2216 = vpack.c.b16 %v1602, %v1600
        %v2217 = vpack.c.b16 %v1605, %v1603
        %v2218 = vpack.c.b16 %v1606, %v1604
        %v2219 = vpack.c.b16 %v1609, %v1607
        %v2220 = vpack.c.b16 %v1610, %v1608
        %v2221 = vpack.c.b16 %v1613, %v1611
        %v2222 = vpack.c.b16 %v1614, %v1612
        %v2223 = vpack.c.b16 %v1617, %v1615
        %v2224 = vpack.c.b16 %v1618, %v1616
        %v2225 = vpack.c.b16 %v1621, %v1619
        %v2226 = vpack.c.b16 %v1622, %v1620
        %v2227 = vpack.c.b16 %v1625, %v1623
        %v2228 = vpack.c.b16 %v1626, %v1624
        %v2229 = vpack.c.b16 %v1629, %v1627
        %v2230 = vpack.c.b16 %v1630, %v1628
        %v2231 = vpack.c.b16 %v1633, %v1631
        %v2232 = vpack.c.b16 %v1634, %v1632
        %v2233 = vpack.c.b16 %v1637, %v1635
        %v2234 = vpack.c.b16 %v1638, %v1636
        %v2235 = vpack.c.b16 %v1641, %v1639
        %v2236 = vpack.c.b16 %v1642, %v1640
        %v2237 = vpack.c.b16 %v1645, %v1643
        %v2238 = vpack.c.b16 %v1646, %v1644
        %v2239 = vpack.c.b16 %v1649, %v1647
        %v2240 = vpack.c.b16 %v1650, %v1648
        %v2241 = vpack.c.b16 %v1653, %v1651
        %v2242 = vpack.c.b16 %v1654, %v1652
        %v2243 = vpack.c.b16 %v1657, %v1655
        %v2244 = vpack.c.b16 %v1658, %v1656
        %v2245 = vpack.c.b16 %v1661, %v1659
        %v2246 = vpack.c.b16 %v1662, %v1660
        %v2247 = vpack.c.b16 %v1665, %v1663
        %v2248 = vpack.c.b16 %v1666, %v1664
        %v2249 = vpack.c.b16 %v1669, %v1667
        %v2250 = vpack.c.b16 %v1670, %v1668
        %v2251 = vpack.c.b16 %v1673, %v1671
        %v2252 = vpack.c.b16 %v1674, %v1672
        %v2253 = vpack.c.b16 %v1677, %v1675
        %v2254 = vpack.c.b16 %v1678, %v1676
        %v2255 = vpack.c.b16 %v1681, %v1679
        %v2256 = vpack.c.b16 %v1682, %v1680
        %v2257 = vpack.c.b16 %v1685, %v1683
        %v2258 = vpack.c.b16 %v1686, %v1684
        %v2259 = vpack.c.b16 %v1689, %v1687
        %v2260 = vpack.c.b16 %v1690, %v1688
        %v2261 = vpack.c.b16 %v1693, %v1691
        %v2262 = vpack.c.b16 %v1694, %v1692
        %v2263 = vpack.c.b16 %v1697, %v1695
        %v2264 = vpack.c.b16 %v1698, %v1696
        %v2265 = vpack.c.b16 %v1701, %v1699
        %v2266 = vpack.c.b16 %v1702, %v1700
        %v2267 = vpack.c.b16 %v1705, %v1703
        %v2268 = vpack.c.b16 %v1706, %v1704
        %v2269 = vpack.c.b16 %v1709, %v1707
        %v2270 = vpack.c.b16 %v1710, %v1708
        %v2271 = vpack.c.b16 %v1713, %v1711
        %v2272 = vpack.c.b16 %v1714, %v1712
        %v2273 = vpack.c.b16 %v1717, %v1715
        %v2274 = vpack.c.b16 %v1718, %v1716
        %v2275 = vpack.c.b16 %v1721, %v1719
        %v2276 = vpack.c.b16 %v1722, %v1720
        %v2277 = vpack.c.b16 %v1725, %v1723
        %v2278 = vpack.c.b16 %v1726, %v1724
        %v2279 = vpack.c.b16 %v1729, %v1727
        %v2280 = vpack.c.b16 %v1730, %v1728
        %v2281 = vpack.c.b16 %v1733, %v1731
        %v2282 = vpack.c.b16 %v1734, %v1732
        %v2283 = vpack.c.b16 %v1737, %v1735
        %v2284 = vpack.c.b16 %v1738, %v1736
        %v2285 = vpack.c.b16 %v1741, %v1739
        %v2286 = vpack.c.b16 %v1742, %v1740
        %v2287 = vpack.c.b16 %v1745, %v1743
        %v2288 = vpack.c.b16 %v1746, %v1744
        %v2289 = vpack.c.b16 %v1749, %v1747
        %v2290 = vpack.c.b16 %v1750, %v1748
        %v2291 = vpack.c.b16 %v1753, %v1751
        %v2292 = vpack.c.b16 %v1754, %v1752
        %v2293 = vpack.c.b16 %v1757, %v1755
        %v2294 = vpack.c.b16 %v1758, %v1756
        %v2295 = vpack.c.b16 %v1761, %v1759
        %v2296 = vpack.c.b16 %v1762, %v1760
        %v2297 = vpack.c.b16 %v1765, %v1763
        %v2298 = vpack.c.b16 %v1766, %v1764
        %v2299 = vpack.c.b16 %v1769, %v1767
        %v2300 = vpack.c.b16 %v1770, %v1768
        %v2301 = vpack.c.b16 %v1773, %v1771
        %v2302 = vpack.c.b16 %v1774, %v1772
        %v2303 = vpack.c.b16 %v1777, %v1775
        %v2304 = vpack.c.b16 %v1778, %v1776
        %v2305 = vpack.c.b16 %v1781, %v1779
        %v2306 = vpack.c.b16 %v1782, %v1780
        %v2307 = vpack.c.b16 %v1785, %v1783
        %v2308 = vpack.c.b16 %v1786, %v1784
        %v2309 = vpack.c.b16 %v1789, %v1787
        %v2310 = vpack.c.b16 %v1790, %v1788
        %v2311 = vpack.c.b16 %v1793, %v1791
        %v2312 = vpack.c.b16 %v1794, %v1792
        %v2313 = vpack.c.b16 %v1797, %v1795
        %v2314 = vpack.c.b16 %v1798, %v1796
        %v2315 = vpack.c.b16 %v1801, %v1799
        %v2316 = vpack.c.b16 %v1802, %v1800
        %v2317 = vpack.c.b16 %v1805, %v1803
        %v2318 = vpack.c.b16 %v1806, %v1804
        %v2319 = vpack.c.b16 %v1809, %v1807
        %v2320 = vpack.c.b16 %v1810, %v1808
        %v2321 = vpack.c.b16 %v1813, %v1811
        %v2322 = vpack.c.b16 %v1814, %v1812
        %v2323 = vpack.c.b16 %v1817, %v1815
        %v2324 = vpack.c.b16 %v1818, %v1816
        %v2325 = vpack.c.b16 %v1821, %v1819
        %v2326 = vpack.c.b16 %v1822, %v1820
        %v2327 = vpack.c.b16 %v1825, %v1823
        %v2328 = vpack.c.b16 %v1826, %v1824
        %v2329 = vpack.c.b16 %v1829, %v1827
        %v2330 = vpack.c.b16 %v1830, %v1828
        %v2331 = vpack.c.b16 %v1833, %v1831
        %v2332 = vpack.c.b16 %v1834, %v1832
        %v2333 = vpack.c.b16 %v1837, %v1835
        %v2334 = vpack.c.b16 %v1838, %v1836
        %v2335 = vpack.c.b16 %v1841, %v1839
        %v2336 = vpack.c.b16 %v1842, %v1840
        %v2337 = vpack.c.b16 %v1845, %v1843
        %v2338 = vpack.c.b16 %v1846, %v1844
        %v2339 = vpack.c.b16 %v1849, %v1847
        %v2340 = vpack.c.b16 %v1850, %v1848
        %v2341 = vpack.c.b16 %v1853, %v1851
        %v2342 = vpack.c.b16 %v1854, %v1852
        %v2343 = vpack.c.b16 %v1857, %v1855
        %v2344 = vpack.c.b16 %v1858, %v1856
        %v2345 = vpack.c.b16 %v1861, %v1859
        %v2346 = vpack.c.b16 %v1862, %v1860
        %v2347 = vpack.c.b16 %v1865, %v1863
        %v2348 = vpack.c.b16 %v1866, %v1864
        %v2349 = vpack.c.b16 %v1869, %v1867
        %v2350 = vpack.c.b16 %v1870, %v1868
        %v2351 = vpack.c.b16 %v1873, %v1871
        %v2352 = vpack.c.b16 %v1874, %v1872
        %v2353 = vpack.c.b16 %v1877, %v1875
        %v2354 = vpack.c.b16 %v1878, %v1876
        %v2355 = vpack.c.b16 %v1881, %v1879
        %v2356 = vpack.c.b16 %v1882, %v1880
        %v2357 = vpack.c.b16 %v1885, %v1883
        %v2358 = vpack.c.b16 %v1886, %v1884
        %v2359 = vpack.c.b16 %v1889, %v1887
        %v2360 = vpack.c.b16 %v1890, %v1888
        %v2361 = vpack.c.b16 %v1893, %v1891
        %v2362 = vpack.c.b16 %v1894, %v1892
        %v2363 = vpack.c.b16 %v1897, %v1895
        %v2364 = vpack.c.b16 %v1898, %v1896
        %v2365 = vpack.c.b16 %v1901, %v1899
        %v2366 = vpack.c.b16 %v1902, %v1900
        %v2367 = vpack.c.b16 %v1905, %v1903
        %v2368 = vpack.c.b16 %v1906, %v1904
        %v2369 = vpack.c.b16 %v1909, %v1907
        %v2370 = vpack.c.b16 %v1910, %v1908
        %v2371 = vpack.c.b16 %v1913, %v1911
        %v2372 = vpack.c.b16 %v1914, %v1912
        %v2373 = vpack.c.b16 %v1917, %v1915
        %v2374 = vpack.c.b16 %v1918, %v1916
        %v2375 = vpack.c.b16 %v1921, %v1919
        %v2376 = vpack.c.b16 %v1922, %v1920
        %v2377 = vpack.c.b16 %v1925, %v1923
        %v2378 = vpack.c.b16 %v1926, %v1924
        %v2379 = vpack.c.b16 %v1929, %v1927
        %v2380 = vpack.c.b16 %v1930, %v1928
        %v2381 = vpack.c.b16 %v1933, %v1931
        %v2382 = vpack.c.b16 %v1934, %v1932
        %v2383 = vpack.c.b16 %v1937, %v1935
        %v2384 = vpack.c.b16 %v1938, %v1936
        %v2385 = vpack.c.b16 %v1941, %v1939
        %v2386 = vpack.c.b16 %v1942, %v1940
        %v2387 = vpack.c.b16 %v1945, %v1943
        %v2388 = vpack.c.b16 %v1946, %v1944
        %v2389 = vpack.c.b16 %v1949, %v1947
        %v2390 = vpack.c.b16 %v1950, %v1948
        %v2391 = vpack.c.b16 %v1953, %v1951
        %v2392 = vpack.c.b16 %v1954, %v1952
        %v2393 = vpack.c.b16 %v1957, %v1955
        %v2394 = vpack.c.b16 %v1958, %v1956
        %v2395 = vpack.c.b16 %v1961, %v1959
        %v2396 = vpack.c.b16 %v1962, %v1960
        %v2397 = vpack.c.b16 %v1965, %v1963
        %v2398 = vpack.c.b16 %v1966, %v1964
        %v2399 = vpack.c.b16 %v1969, %v1967
        %v2400 = vpack.c.b16 %v1970, %v1968
        %v2401 = vpack.c.b16 %v1973, %v1971
        %v2402 = vpack.c.b16 %v1974, %v1972
        %v2403 = vpack.c.b16 %v1977, %v1975
        %v2404 = vpack.c.b16 %v1978, %v1976
        %v2405 = vpack.c.b16 %v1981, %v1979
        %v2406 = vpack.c.b16 %v1982, %v1980
        %v2407 = vpack.c.b16 %v1985, %v1983
        %v2408 = vpack.c.b16 %v1986, %v1984
        %v2409 = vpack.c.b16 %v1989, %v1987
        %v2410 = vpack.c.b16 %v1990, %v1988
        %v2411 = vpack.c.b16 %v1993, %v1991
        %v2412 = vpack.c.b16 %v1994, %v1992
        %v2413 = vpack.c.b16 %v1997, %v1995
        %v2414 = vpack.c.b16 %v1998, %v1996
        %v2415 = vpack.c.b16 %v2001, %v1999
        %v2416 = vpack.c.b16 %v2002, %v2000
        %v2417 = vpack.c.b16 %v2005, %v2003
        %v2418 = vpack.c.b16 %v2006, %v2004
        %v2419 = vpack.c.b16 %v2009, %v2007
        %v2420 = vpack.c.b16 %v2010, %v2008
        %v2421 = vpack.c.b16 %v2013, %v2011
        %v2422 = vpack.c.b16 %v2014, %v2012
        %v2423 = vpack.c.b16 %v2017, %v2015
        %v2424 = vpack.c.b16 %v2018, %v2016
        %v2425 = vpack.c.b16 %v2021, %v2019
        %v2426 = vpack.c.b16 %v2022, %v2020
        %v2427 = vpack.c.b16 %v2025, %v2023
        %v2428 = vpack.c.b16 %v2026, %v2024
        %v2429 = vpack.c.b16 %v2029, %v2027
        %v2430 = vpack.c.b16 %v2030, %v2028
        %v2431 = vpack.c.b16 %v2033, %v2031
        %v2432 = vpack.c.b16 %v2034, %v2032
        %v2433 = vpack.c.b16 %v2037, %v2035
        %v2434 = vpack.c.b16 %v2038, %v2036
        %v2435 = vpack.c.b16 %v2041, %v2039
        %v2436 = vpack.c.b16 %v2042, %v2040
        %v2437 = vpack.c.b16 %v2045, %v2043
        %v2438 = vpack.c.b16 %v2046, %v2044
        %v2439 = vpack.c.b16 %v2049, %v2047
        %v2440 = vpack.c.b16 %v2050, %v2048
        %v2441 = vpack.c.b16 %v2053, %v2051
        %v2442 = vpack.c.b16 %v2054, %v2052
        %v2443 = vpack.c.b16 %v2057, %v2055
        %v2444 = vpack.c.b16 %v2058, %v2056
        %v2445 = vpack.c.b16 %v2061, %v2059
        %v2446 = vpack.c.b16 %v2062, %v2060
        %2831 = vmatpush.bf16.msra.mxu0 %v2077
        %2832 = vmatpush.bf16.msra.mxu0 %v2075
        %2833 = vmatpush.bf16.msra.mxu0 %v2073
        %2834 = vmatpush.bf16.msra.mxu0 %v2071
        %2835 = vmatpush.bf16.msra.mxu0 %v2069
        %2836 = vmatpush.bf16.msra.mxu0 %v2067
        %2837 = vmatpush.bf16.msra.mxu0 %v2065
        %2838 = vmatpush.bf16.msra.mxu0 %v2063
        %2839 = vmatmul.bf16.gmra.mxu0 %v863
        %v2840 = vpop.f32.mrf.mxu0
        %v2841 = vadd.f32 0.0, %v2840
        %v2842 = vpop.f32.mrf.mxu0
        %v2843 = vadd.f32 0.0, %v2842
        %2844 = vdwg.mxu0
        %2845 = vmatpush.bf16.msra.mxu0 %v2093
        %2846 = vmatpush.bf16.msra.mxu0 %v2091
        %2847 = vmatpush.bf16.msra.mxu0 %v2089
        %2848 = vmatpush.bf16.msra.mxu0 %v2087
        %2849 = vmatpush.bf16.msra.mxu0 %v2085
        %2850 = vmatpush.bf16.msra.mxu0 %v2083
        %2851 = vmatpush.bf16.msra.mxu0 %v2081
        %2852 = vmatpush.bf16.msra.mxu0 %v2079
        %2853 = vmatmul.bf16.gmra.mxu0 %v864
        %v2854 = vpop.f32.mrf.mxu0
        %v2855 = vadd.f32 %v2841, %v2854
        %v2856 = vpop.f32.mrf.mxu0
        %v2857 = vadd.f32 %v2843, %v2856
        %2858 = vdwg.mxu0
        %2859 = vmatpush.bf16.msra.mxu0 %v2109
        %2860 = vmatpush.bf16.msra.mxu0 %v2107
        %2861 = vmatpush.bf16.msra.mxu0 %v2105
        %2862 = vmatpush.bf16.msra.mxu0 %v2103
        %2863 = vmatpush.bf16.msra.mxu0 %v2101
        %2864 = vmatpush.bf16.msra.mxu0 %v2099
        %2865 = vmatpush.bf16.msra.mxu0 %v2097
        %2866 = vmatpush.bf16.msra.mxu0 %v2095
        %2867 = vmatmul.bf16.gmra.mxu0 %v865
        %v2868 = vpop.f32.mrf.mxu0
        %v2869 = vadd.f32 %v2855, %v2868
        %v2870 = vpop.f32.mrf.mxu0
        %v2871 = vadd.f32 %v2857, %v2870
        %2872 = vdwg.mxu0
        %2873 = vmatpush.bf16.msra.mxu0 %v2125
        %2874 = vmatpush.bf16.msra.mxu0 %v2123
        %2875 = vmatpush.bf16.msra.mxu0 %v2121
        %2876 = vmatpush.bf16.msra.mxu0 %v2119
        %2877 = vmatpush.bf16.msra.mxu0 %v2117
        %2878 = vmatpush.bf16.msra.mxu0 %v2115
        %2879 = vmatpush.bf16.msra.mxu0 %v2113
        %2880 = vmatpush.bf16.msra.mxu0 %v2111
        %2881 = vmatmul.bf16.gmra.mxu0 %v866
        %v2882 = vpop.f32.mrf.mxu0
        %v2883 = vadd.f32 %v2869, %v2882
        %v2884 = vpop.f32.mrf.mxu0
        %v2885 = vadd.f32 %v2871, %v2884
        %2886 = vdwg.mxu0
        %2887 = vmatpush.bf16.msra.mxu0 %v2141
        %2888 = vmatpush.bf16.msra.mxu0 %v2139
        %2889 = vmatpush.bf16.msra.mxu0 %v2137
        %2890 = vmatpush.bf16.msra.mxu0 %v2135
        %2891 = vmatpush.bf16.msra.mxu0 %v2133
        %2892 = vmatpush.bf16.msra.mxu0 %v2131
        %2893 = vmatpush.bf16.msra.mxu0 %v2129
        %2894 = vmatpush.bf16.msra.mxu0 %v2127
        %2895 = vmatmul.bf16.gmra.mxu0 %v867
        %v2896 = vpop.f32.mrf.mxu0
        %v2897 = vadd.f32 %v2883, %v2896
        %v2898 = vpop.f32.mrf.mxu0
        %v2899 = vadd.f32 %v2885, %v2898
        %2900 = vdwg.mxu0
        %2901 = vmatpush.bf16.msra.mxu0 %v2157
        %2902 = vmatpush.bf16.msra.mxu0 %v2155
        %2903 = vmatpush.bf16.msra.mxu0 %v2153
        %2904 = vmatpush.bf16.msra.mxu0 %v2151
        %2905 = vmatpush.bf16.msra.mxu0 %v2149
        %2906 = vmatpush.bf16.msra.mxu0 %v2147
        %2907 = vmatpush.bf16.msra.mxu0 %v2145
        %2908 = vmatpush.bf16.msra.mxu0 %v2143
        %2909 = vmatmul.bf16.gmra.mxu0 %v868
        %v2910 = vpop.f32.mrf.mxu0
        %v2911 = vadd.f32 %v2897, %v2910
        %v2912 = vpop.f32.mrf.mxu0
        %v2913 = vadd.f32 %v2899, %v2912
        %2914 = vdwg.mxu0
        %2915 = vmatpush.bf16.msra.mxu0 %v2173
        %2916 = vmatpush.bf16.msra.mxu0 %v2171
        %2917 = vmatpush.bf16.msra.mxu0 %v2169
        %2918 = vmatpush.bf16.msra.mxu0 %v2167
        %2919 = vmatpush.bf16.msra.mxu0 %v2165
        %2920 = vmatpush.bf16.msra.mxu0 %v2163
        %2921 = vmatpush.bf16.msra.mxu0 %v2161
        %2922 = vmatpush.bf16.msra.mxu0 %v2159
        %2923 = vmatmul.bf16.gmra.mxu0 %v869
        %v2924 = vpop.f32.mrf.mxu0
        %v2925 = vadd.f32 %v2911, %v2924
        %v2926 = vpop.f32.mrf.mxu0
        %v2927 = vadd.f32 %v2913, %v2926
        %2928 = vdwg.mxu0
        %2929 = vmatpush.bf16.msra.mxu0 %v2189
        %2930 = vmatpush.bf16.msra.mxu0 %v2187
        %2931 = vmatpush.bf16.msra.mxu0 %v2185
        %2932 = vmatpush.bf16.msra.mxu0 %v2183
        %2933 = vmatpush.bf16.msra.mxu0 %v2181
        %2934 = vmatpush.bf16.msra.mxu0 %v2179
        %2935 = vmatpush.bf16.msra.mxu0 %v2177
        %2936 = vmatpush.bf16.msra.mxu0 %v2175
        %2937 = vmatmul.bf16.gmra.mxu0 %v870
        %v2938 = vpop.f32.mrf.mxu0
        %v2939 = vadd.f32 %v2925, %v2938
        %v2940 = vpop.f32.mrf.mxu0
        %v2941 = vadd.f32 %v2927, %v2940
        %2942 = vdwg.mxu0
        %2943 = vmatpush.bf16.msra.mxu0 %v2205
        %2944 = vmatpush.bf16.msra.mxu0 %v2203
        %2945 = vmatpush.bf16.msra.mxu0 %v2201
        %2946 = vmatpush.bf16.msra.mxu0 %v2199
        %2947 = vmatpush.bf16.msra.mxu0 %v2197
        %2948 = vmatpush.bf16.msra.mxu0 %v2195
        %2949 = vmatpush.bf16.msra.mxu0 %v2193
        %2950 = vmatpush.bf16.msra.mxu0 %v2191
        %2951 = vmatmul.bf16.gmra.mxu0 %v871
        %v2952 = vpop.f32.mrf.mxu0
        %v2953 = vadd.f32 %v2939, %v2952
        %v2954 = vpop.f32.mrf.mxu0
        %v2955 = vadd.f32 %v2941, %v2954
        %2956 = vdwg.mxu0
        %2957 = vmatpush.bf16.msra.mxu0 %v2221
        %2958 = vmatpush.bf16.msra.mxu0 %v2219
        %2959 = vmatpush.bf16.msra.mxu0 %v2217
        %2960 = vmatpush.bf16.msra.mxu0 %v2215
        %2961 = vmatpush.bf16.msra.mxu0 %v2213
        %2962 = vmatpush.bf16.msra.mxu0 %v2211
        %2963 = vmatpush.bf16.msra.mxu0 %v2209
        %2964 = vmatpush.bf16.msra.mxu0 %v2207
        %2965 = vmatmul.bf16.gmra.mxu0 %v872
        %v2966 = vpop.f32.mrf.mxu0
        %v2967 = vadd.f32 %v2953, %v2966
        %v2968 = vpop.f32.mrf.mxu0
        %v2969 = vadd.f32 %v2955, %v2968
        %2970 = vdwg.mxu0
        %2971 = vmatpush.bf16.msra.mxu0 %v2237
        %2972 = vmatpush.bf16.msra.mxu0 %v2235
        %2973 = vmatpush.bf16.msra.mxu0 %v2233
        %2974 = vmatpush.bf16.msra.mxu0 %v2231
        %2975 = vmatpush.bf16.msra.mxu0 %v2229
        %2976 = vmatpush.bf16.msra.mxu0 %v2227
        %2977 = vmatpush.bf16.msra.mxu0 %v2225
        %2978 = vmatpush.bf16.msra.mxu0 %v2223
        %2979 = vmatmul.bf16.gmra.mxu0 %v873
        %v2980 = vpop.f32.mrf.mxu0
        %v2981 = vadd.f32 %v2967, %v2980
        %v2982 = vpop.f32.mrf.mxu0
        %v2983 = vadd.f32 %v2969, %v2982
        %2984 = vdwg.mxu0
        %2985 = vmatpush.bf16.msra.mxu0 %v2253
        %2986 = vmatpush.bf16.msra.mxu0 %v2251
        %2987 = vmatpush.bf16.msra.mxu0 %v2249
        %2988 = vmatpush.bf16.msra.mxu0 %v2247
        %2989 = vmatpush.bf16.msra.mxu0 %v2245
        %2990 = vmatpush.bf16.msra.mxu0 %v2243
        %2991 = vmatpush.bf16.msra.mxu0 %v2241
        %2992 = vmatpush.bf16.msra.mxu0 %v2239
        %2993 = vmatmul.bf16.gmra.mxu0 %v874
        %v2994 = vpop.f32.mrf.mxu0
        %v2995 = vadd.f32 %v2981, %v2994
        %v2996 = vpop.f32.mrf.mxu0
        %v2997 = vadd.f32 %v2983, %v2996
        %2998 = vdwg.mxu0
        %2999 = vmatpush.bf16.msra.mxu0 %v2269
        %3000 = vmatpush.bf16.msra.mxu0 %v2267
        %3001 = vmatpush.bf16.msra.mxu0 %v2265
        %3002 = vmatpush.bf16.msra.mxu0 %v2263
        %3003 = vmatpush.bf16.msra.mxu0 %v2261
        %3004 = vmatpush.bf16.msra.mxu0 %v2259
        %3005 = vmatpush.bf16.msra.mxu0 %v2257
        %3006 = vmatpush.bf16.msra.mxu0 %v2255
        %3007 = vmatmul.bf16.gmra.mxu0 %v875
        %v3008 = vpop.f32.mrf.mxu0
        %v3009 = vadd.f32 %v2995, %v3008
        %v3010 = vpop.f32.mrf.mxu0
        %v3011 = vadd.f32 %v2997, %v3010
        %3012 = vdwg.mxu0
        %3013 = vmatpush.bf16.msra.mxu0 %v2285
        %3014 = vmatpush.bf16.msra.mxu0 %v2283
        %3015 = vmatpush.bf16.msra.mxu0 %v2281
        %3016 = vmatpush.bf16.msra.mxu0 %v2279
        %3017 = vmatpush.bf16.msra.mxu0 %v2277
        %3018 = vmatpush.bf16.msra.mxu0 %v2275
        %3019 = vmatpush.bf16.msra.mxu0 %v2273
        %3020 = vmatpush.bf16.msra.mxu0 %v2271
        %3021 = vmatmul.bf16.gmra.mxu0 %v876
        %v3022 = vpop.f32.mrf.mxu0
        %v3023 = vadd.f32 %v3009, %v3022
        %v3024 = vpop.f32.mrf.mxu0
        %v3025 = vadd.f32 %v3011, %v3024
        %3026 = vdwg.mxu0
        %3027 = vmatpush.bf16.msra.mxu0 %v2301
        %3028 = vmatpush.bf16.msra.mxu0 %v2299
        %3029 = vmatpush.bf16.msra.mxu0 %v2297
        %3030 = vmatpush.bf16.msra.mxu0 %v2295
        %3031 = vmatpush.bf16.msra.mxu0 %v2293
        %3032 = vmatpush.bf16.msra.mxu0 %v2291
        %3033 = vmatpush.bf16.msra.mxu0 %v2289
        %3034 = vmatpush.bf16.msra.mxu0 %v2287
        %3035 = vmatmul.bf16.gmra.mxu0 %v877
        %v3036 = vpop.f32.mrf.mxu0
        %v3037 = vadd.f32 %v3023, %v3036
        %v3038 = vpop.f32.mrf.mxu0
        %v3039 = vadd.f32 %v3025, %v3038
        %3040 = vdwg.mxu0
        %3041 = vmatpush.bf16.msra.mxu0 %v2317
        %3042 = vmatpush.bf16.msra.mxu0 %v2315
        %3043 = vmatpush.bf16.msra.mxu0 %v2313
        %3044 = vmatpush.bf16.msra.mxu0 %v2311
        %3045 = vmatpush.bf16.msra.mxu0 %v2309
        %3046 = vmatpush.bf16.msra.mxu0 %v2307
        %3047 = vmatpush.bf16.msra.mxu0 %v2305
        %3048 = vmatpush.bf16.msra.mxu0 %v2303
        %3049 = vmatmul.bf16.gmra.mxu0 %v878
        %v3050 = vpop.f32.mrf.mxu0
        %v3051 = vadd.f32 %v3037, %v3050
        %v3052 = vpop.f32.mrf.mxu0
        %v3053 = vadd.f32 %v3039, %v3052
        %3054 = vdwg.mxu0
        %3055 = vmatpush.bf16.msra.mxu0 %v2333
        %3056 = vmatpush.bf16.msra.mxu0 %v2331
        %3057 = vmatpush.bf16.msra.mxu0 %v2329
        %3058 = vmatpush.bf16.msra.mxu0 %v2327
        %3059 = vmatpush.bf16.msra.mxu0 %v2325
        %3060 = vmatpush.bf16.msra.mxu0 %v2323
        %3061 = vmatpush.bf16.msra.mxu0 %v2321
        %3062 = vmatpush.bf16.msra.mxu0 %v2319
        %3063 = vmatmul.bf16.gmra.mxu0 %v879
        %v3064 = vpop.f32.mrf.mxu0
        %v3065 = vadd.f32 %v3051, %v3064
        %v3066 = vpop.f32.mrf.mxu0
        %v3067 = vadd.f32 %v3053, %v3066
        %3068 = vdwg.mxu0
        %3069 = vmatpush.bf16.msra.mxu0 %v2349
        %3070 = vmatpush.bf16.msra.mxu0 %v2347
        %3071 = vmatpush.bf16.msra.mxu0 %v2345
        %3072 = vmatpush.bf16.msra.mxu0 %v2343
        %3073 = vmatpush.bf16.msra.mxu0 %v2341
        %3074 = vmatpush.bf16.msra.mxu0 %v2339
        %3075 = vmatpush.bf16.msra.mxu0 %v2337
        %3076 = vmatpush.bf16.msra.mxu0 %v2335
        %3077 = vmatmul.bf16.gmra.mxu0 %v880
        %v3078 = vpop.f32.mrf.mxu0
        %v3079 = vadd.f32 %v3065, %v3078
        %v3080 = vpop.f32.mrf.mxu0
        %v3081 = vadd.f32 %v3067, %v3080
        %3082 = vdwg.mxu0
        %3083 = vmatpush.bf16.msra.mxu0 %v2365
        %3084 = vmatpush.bf16.msra.mxu0 %v2363
        %3085 = vmatpush.bf16.msra.mxu0 %v2361
        %3086 = vmatpush.bf16.msra.mxu0 %v2359
        %3087 = vmatpush.bf16.msra.mxu0 %v2357
        %3088 = vmatpush.bf16.msra.mxu0 %v2355
        %3089 = vmatpush.bf16.msra.mxu0 %v2353
        %3090 = vmatpush.bf16.msra.mxu0 %v2351
        %3091 = vmatmul.bf16.gmra.mxu0 %v881
        %v3092 = vpop.f32.mrf.mxu0
        %v3093 = vadd.f32 %v3079, %v3092
        %v3094 = vpop.f32.mrf.mxu0
        %v3095 = vadd.f32 %v3081, %v3094
        %3096 = vdwg.mxu0
        %3097 = vmatpush.bf16.msra.mxu0 %v2381
        %3098 = vmatpush.bf16.msra.mxu0 %v2379
        %3099 = vmatpush.bf16.msra.mxu0 %v2377
        %3100 = vmatpush.bf16.msra.mxu0 %v2375
        %3101 = vmatpush.bf16.msra.mxu0 %v2373
        %3102 = vmatpush.bf16.msra.mxu0 %v2371
        %3103 = vmatpush.bf16.msra.mxu0 %v2369
        %3104 = vmatpush.bf16.msra.mxu0 %v2367
        %3105 = vmatmul.bf16.gmra.mxu0 %v882
        %v3106 = vpop.f32.mrf.mxu0
        %v3107 = vadd.f32 %v3093, %v3106
        %v3108 = vpop.f32.mrf.mxu0
        %v3109 = vadd.f32 %v3095, %v3108
        %3110 = vdwg.mxu0
        %3111 = vmatpush.bf16.msra.mxu0 %v2397
        %3112 = vmatpush.bf16.msra.mxu0 %v2395
        %3113 = vmatpush.bf16.msra.mxu0 %v2393
        %3114 = vmatpush.bf16.msra.mxu0 %v2391
        %3115 = vmatpush.bf16.msra.mxu0 %v2389
        %3116 = vmatpush.bf16.msra.mxu0 %v2387
        %3117 = vmatpush.bf16.msra.mxu0 %v2385
        %3118 = vmatpush.bf16.msra.mxu0 %v2383
        %3119 = vmatmul.bf16.gmra.mxu0 %v883
        %v3120 = vpop.f32.mrf.mxu0
        %v3121 = vadd.f32 %v3107, %v3120
        %v3122 = vpop.f32.mrf.mxu0
        %v3123 = vadd.f32 %v3109, %v3122
        %3124 = vdwg.mxu0
        %3125 = vmatpush.bf16.msra.mxu0 %v2413
        %3126 = vmatpush.bf16.msra.mxu0 %v2411
        %3127 = vmatpush.bf16.msra.mxu0 %v2409
        %3128 = vmatpush.bf16.msra.mxu0 %v2407
        %3129 = vmatpush.bf16.msra.mxu0 %v2405
        %3130 = vmatpush.bf16.msra.mxu0 %v2403
        %3131 = vmatpush.bf16.msra.mxu0 %v2401
        %3132 = vmatpush.bf16.msra.mxu0 %v2399
        %3133 = vmatmul.bf16.gmra.mxu0 %v884
        %v3134 = vpop.f32.mrf.mxu0
        %v3135 = vadd.f32 %v3121, %v3134
        %v3136 = vpop.f32.mrf.mxu0
        %v3137 = vadd.f32 %v3123, %v3136
        %3138 = vdwg.mxu0
        %3139 = vmatpush.bf16.msra.mxu0 %v2429
        %3140 = vmatpush.bf16.msra.mxu0 %v2427
        %3141 = vmatpush.bf16.msra.mxu0 %v2425
        %3142 = vmatpush.bf16.msra.mxu0 %v2423
        %3143 = vmatpush.bf16.msra.mxu0 %v2421
        %3144 = vmatpush.bf16.msra.mxu0 %v2419
        %3145 = vmatpush.bf16.msra.mxu0 %v2417
        %3146 = vmatpush.bf16.msra.mxu0 %v2415
        %3147 = vmatmul.bf16.gmra.mxu0 %v885
        %v3148 = vpop.f32.mrf.mxu0
        %v3149 = vadd.f32 %v3135, %v3148
        %v3150 = vpop.f32.mrf.mxu0
        %v3151 = vadd.f32 %v3137, %v3150
        %3152 = vdwg.mxu0
        %3153 = vmatpush.bf16.msra.mxu0 %v2445
        %3154 = vmatpush.bf16.msra.mxu0 %v2443
        %3155 = vmatpush.bf16.msra.mxu0 %v2441
        %3156 = vmatpush.bf16.msra.mxu0 %v2439
        %3157 = vmatpush.bf16.msra.mxu0 %v2437
        %3158 = vmatpush.bf16.msra.mxu0 %v2435
        %3159 = vmatpush.bf16.msra.mxu0 %v2433
        %3160 = vmatpush.bf16.msra.mxu0 %v2431
        %3161 = vmatmul.bf16.gmra.mxu0 %v886
        %v3162 = vpop.f32.mrf.mxu0
        %v3163 = vadd.f32 %v3149, %v3162
        %v3164 = vpop.f32.mrf.mxu0
        %v3165 = vadd.f32 %v3151, %v3164
        %3166 = vdwg.mxu0
        %3167 = vmatpush.bf16.msra.mxu0 %v2078
        %3168 = vmatpush.bf16.msra.mxu0 %v2076
        %3169 = vmatpush.bf16.msra.mxu0 %v2074
        %3170 = vmatpush.bf16.msra.mxu0 %v2072
        %3171 = vmatpush.bf16.msra.mxu0 %v2070
        %3172 = vmatpush.bf16.msra.mxu0 %v2068
        %3173 = vmatpush.bf16.msra.mxu0 %v2066
        %3174 = vmatpush.bf16.msra.mxu0 %v2064
        %3175 = vmatmul.bf16.gmra.mxu0 %v863
        %v3176 = vpop.f32.mrf.mxu0
        %v3177 = vadd.f32 0.0, %v3176
        %v3178 = vpop.f32.mrf.mxu0
        %v3179 = vadd.f32 0.0, %v3178
        %3180 = vdwg.mxu0
        %3181 = vmatpush.bf16.msra.mxu0 %v2094
        %3182 = vmatpush.bf16.msra.mxu0 %v2092
        %3183 = vmatpush.bf16.msra.mxu0 %v2090
        %3184 = vmatpush.bf16.msra.mxu0 %v2088
        %3185 = vmatpush.bf16.msra.mxu0 %v2086
        %3186 = vmatpush.bf16.msra.mxu0 %v2084
        %3187 = vmatpush.bf16.msra.mxu0 %v2082
        %3188 = vmatpush.bf16.msra.mxu0 %v2080
        %3189 = vmatmul.bf16.gmra.mxu0 %v864
        %v3190 = vpop.f32.mrf.mxu0
        %v3191 = vadd.f32 %v3177, %v3190
        %v3192 = vpop.f32.mrf.mxu0
        %v3193 = vadd.f32 %v3179, %v3192
        %3194 = vdwg.mxu0
        %3195 = vmatpush.bf16.msra.mxu0 %v2110
        %3196 = vmatpush.bf16.msra.mxu0 %v2108
        %3197 = vmatpush.bf16.msra.mxu0 %v2106
        %3198 = vmatpush.bf16.msra.mxu0 %v2104
        %3199 = vmatpush.bf16.msra.mxu0 %v2102
        %3200 = vmatpush.bf16.msra.mxu0 %v2100
        %3201 = vmatpush.bf16.msra.mxu0 %v2098
        %3202 = vmatpush.bf16.msra.mxu0 %v2096
        %3203 = vmatmul.bf16.gmra.mxu0 %v865
        %v3204 = vpop.f32.mrf.mxu0
        %v3205 = vadd.f32 %v3191, %v3204
        %v3206 = vpop.f32.mrf.mxu0
        %v3207 = vadd.f32 %v3193, %v3206
        %3208 = vdwg.mxu0
        %3209 = vmatpush.bf16.msra.mxu0 %v2126
        %3210 = vmatpush.bf16.msra.mxu0 %v2124
        %3211 = vmatpush.bf16.msra.mxu0 %v2122
        %3212 = vmatpush.bf16.msra.mxu0 %v2120
        %3213 = vmatpush.bf16.msra.mxu0 %v2118
        %3214 = vmatpush.bf16.msra.mxu0 %v2116
        %3215 = vmatpush.bf16.msra.mxu0 %v2114
        %3216 = vmatpush.bf16.msra.mxu0 %v2112
        %3217 = vmatmul.bf16.gmra.mxu0 %v866
        %v3218 = vpop.f32.mrf.mxu0
        %v3219 = vadd.f32 %v3205, %v3218
        %v3220 = vpop.f32.mrf.mxu0
        %v3221 = vadd.f32 %v3207, %v3220
        %3222 = vdwg.mxu0
        %3223 = vmatpush.bf16.msra.mxu0 %v2142
        %3224 = vmatpush.bf16.msra.mxu0 %v2140
        %3225 = vmatpush.bf16.msra.mxu0 %v2138
        %3226 = vmatpush.bf16.msra.mxu0 %v2136
        %3227 = vmatpush.bf16.msra.mxu0 %v2134
        %3228 = vmatpush.bf16.msra.mxu0 %v2132
        %3229 = vmatpush.bf16.msra.mxu0 %v2130
        %3230 = vmatpush.bf16.msra.mxu0 %v2128
        %3231 = vmatmul.bf16.gmra.mxu0 %v867
        %v3232 = vpop.f32.mrf.mxu0
        %v3233 = vadd.f32 %v3219, %v3232
        %v3234 = vpop.f32.mrf.mxu0
        %v3235 = vadd.f32 %v3221, %v3234
        %3236 = vdwg.mxu0
        %3237 = vmatpush.bf16.msra.mxu0 %v2158
        %3238 = vmatpush.bf16.msra.mxu0 %v2156
        %3239 = vmatpush.bf16.msra.mxu0 %v2154
        %3240 = vmatpush.bf16.msra.mxu0 %v2152
        %3241 = vmatpush.bf16.msra.mxu0 %v2150
        %3242 = vmatpush.bf16.msra.mxu0 %v2148
        %3243 = vmatpush.bf16.msra.mxu0 %v2146
        %3244 = vmatpush.bf16.msra.mxu0 %v2144
        %3245 = vmatmul.bf16.gmra.mxu0 %v868
        %v3246 = vpop.f32.mrf.mxu0
        %v3247 = vadd.f32 %v3233, %v3246
        %v3248 = vpop.f32.mrf.mxu0
        %v3249 = vadd.f32 %v3235, %v3248
        %3250 = vdwg.mxu0
        %3251 = vmatpush.bf16.msra.mxu0 %v2174
        %3252 = vmatpush.bf16.msra.mxu0 %v2172
        %3253 = vmatpush.bf16.msra.mxu0 %v2170
        %3254 = vmatpush.bf16.msra.mxu0 %v2168
        %3255 = vmatpush.bf16.msra.mxu0 %v2166
        %3256 = vmatpush.bf16.msra.mxu0 %v2164
        %3257 = vmatpush.bf16.msra.mxu0 %v2162
        %3258 = vmatpush.bf16.msra.mxu0 %v2160
        %3259 = vmatmul.bf16.gmra.mxu0 %v869
        %v3260 = vpop.f32.mrf.mxu0
        %v3261 = vadd.f32 %v3247, %v3260
        %v3262 = vpop.f32.mrf.mxu0
        %v3263 = vadd.f32 %v3249, %v3262
        %3264 = vdwg.mxu0
        %3265 = vmatpush.bf16.msra.mxu0 %v2190
        %3266 = vmatpush.bf16.msra.mxu0 %v2188
        %3267 = vmatpush.bf16.msra.mxu0 %v2186
        %3268 = vmatpush.bf16.msra.mxu0 %v2184
        %3269 = vmatpush.bf16.msra.mxu0 %v2182
        %3270 = vmatpush.bf16.msra.mxu0 %v2180
        %3271 = vmatpush.bf16.msra.mxu0 %v2178
        %3272 = vmatpush.bf16.msra.mxu0 %v2176
        %3273 = vmatmul.bf16.gmra.mxu0 %v870
        %v3274 = vpop.f32.mrf.mxu0
        %v3275 = vadd.f32 %v3261, %v3274
        %v3276 = vpop.f32.mrf.mxu0
        %v3277 = vadd.f32 %v3263, %v3276
        %3278 = vdwg.mxu0
        %3279 = vmatpush.bf16.msra.mxu0 %v2206
        %3280 = vmatpush.bf16.msra.mxu0 %v2204
        %3281 = vmatpush.bf16.msra.mxu0 %v2202
        %3282 = vmatpush.bf16.msra.mxu0 %v2200
        %3283 = vmatpush.bf16.msra.mxu0 %v2198
        %3284 = vmatpush.bf16.msra.mxu0 %v2196
        %3285 = vmatpush.bf16.msra.mxu0 %v2194
        %3286 = vmatpush.bf16.msra.mxu0 %v2192
        %3287 = vmatmul.bf16.gmra.mxu0 %v871
        %v3288 = vpop.f32.mrf.mxu0
        %v3289 = vadd.f32 %v3275, %v3288
        %v3290 = vpop.f32.mrf.mxu0
        %v3291 = vadd.f32 %v3277, %v3290
        %3292 = vdwg.mxu0
        %3293 = vmatpush.bf16.msra.mxu0 %v2222
        %3294 = vmatpush.bf16.msra.mxu0 %v2220
        %3295 = vmatpush.bf16.msra.mxu0 %v2218
        %3296 = vmatpush.bf16.msra.mxu0 %v2216
        %3297 = vmatpush.bf16.msra.mxu0 %v2214
        %3298 = vmatpush.bf16.msra.mxu0 %v2212
        %3299 = vmatpush.bf16.msra.mxu0 %v2210
        %3300 = vmatpush.bf16.msra.mxu0 %v2208
        %3301 = vmatmul.bf16.gmra.mxu0 %v872
        %v3302 = vpop.f32.mrf.mxu0
        %v3303 = vadd.f32 %v3289, %v3302
        %v3304 = vpop.f32.mrf.mxu0
        %v3305 = vadd.f32 %v3291, %v3304
        %3306 = vdwg.mxu0
        %3307 = vmatpush.bf16.msra.mxu0 %v2238
        %3308 = vmatpush.bf16.msra.mxu0 %v2236
        %3309 = vmatpush.bf16.msra.mxu0 %v2234
        %3310 = vmatpush.bf16.msra.mxu0 %v2232
        %3311 = vmatpush.bf16.msra.mxu0 %v2230
        %3312 = vmatpush.bf16.msra.mxu0 %v2228
        %3313 = vmatpush.bf16.msra.mxu0 %v2226
        %3314 = vmatpush.bf16.msra.mxu0 %v2224
        %3315 = vmatmul.bf16.gmra.mxu0 %v873
        %v3316 = vpop.f32.mrf.mxu0
        %v3317 = vadd.f32 %v3303, %v3316
        %v3318 = vpop.f32.mrf.mxu0
        %v3319 = vadd.f32 %v3305, %v3318
        %3320 = vdwg.mxu0
        %3321 = vmatpush.bf16.msra.mxu0 %v2254
        %3322 = vmatpush.bf16.msra.mxu0 %v2252
        %3323 = vmatpush.bf16.msra.mxu0 %v2250
        %3324 = vmatpush.bf16.msra.mxu0 %v2248
        %3325 = vmatpush.bf16.msra.mxu0 %v2246
        %3326 = vmatpush.bf16.msra.mxu0 %v2244
        %3327 = vmatpush.bf16.msra.mxu0 %v2242
        %3328 = vmatpush.bf16.msra.mxu0 %v2240
        %3329 = vmatmul.bf16.gmra.mxu0 %v874
        %v3330 = vpop.f32.mrf.mxu0
        %v3331 = vadd.f32 %v3317, %v3330
        %v3332 = vpop.f32.mrf.mxu0
        %v3333 = vadd.f32 %v3319, %v3332
        %3334 = vdwg.mxu0
        %3335 = vmatpush.bf16.msra.mxu0 %v2270
        %3336 = vmatpush.bf16.msra.mxu0 %v2268
        %3337 = vmatpush.bf16.msra.mxu0 %v2266
        %3338 = vmatpush.bf16.msra.mxu0 %v2264
        %3339 = vmatpush.bf16.msra.mxu0 %v2262
        %3340 = vmatpush.bf16.msra.mxu0 %v2260
        %3341 = vmatpush.bf16.msra.mxu0 %v2258
        %3342 = vmatpush.bf16.msra.mxu0 %v2256
        %3343 = vmatmul.bf16.gmra.mxu0 %v875
        %v3344 = vpop.f32.mrf.mxu0
        %v3345 = vadd.f32 %v3331, %v3344
        %v3346 = vpop.f32.mrf.mxu0
        %v3347 = vadd.f32 %v3333, %v3346
        %3348 = vdwg.mxu0
        %3349 = vmatpush.bf16.msra.mxu0 %v2286
        %3350 = vmatpush.bf16.msra.mxu0 %v2284
        %3351 = vmatpush.bf16.msra.mxu0 %v2282
        %3352 = vmatpush.bf16.msra.mxu0 %v2280
        %3353 = vmatpush.bf16.msra.mxu0 %v2278
        %3354 = vmatpush.bf16.msra.mxu0 %v2276
        %3355 = vmatpush.bf16.msra.mxu0 %v2274
        %3356 = vmatpush.bf16.msra.mxu0 %v2272
        %3357 = vmatmul.bf16.gmra.mxu0 %v876
        %v3358 = vpop.f32.mrf.mxu0
        %v3359 = vadd.f32 %v3345, %v3358
        %v3360 = vpop.f32.mrf.mxu0
        %v3361 = vadd.f32 %v3347, %v3360
        %3362 = vdwg.mxu0
        %3363 = vmatpush.bf16.msra.mxu0 %v2302
        %3364 = vmatpush.bf16.msra.mxu0 %v2300
        %3365 = vmatpush.bf16.msra.mxu0 %v2298
        %3366 = vmatpush.bf16.msra.mxu0 %v2296
        %3367 = vmatpush.bf16.msra.mxu0 %v2294
        %3368 = vmatpush.bf16.msra.mxu0 %v2292
        %3369 = vmatpush.bf16.msra.mxu0 %v2290
        %3370 = vmatpush.bf16.msra.mxu0 %v2288
        %3371 = vmatmul.bf16.gmra.mxu0 %v877
        %v3372 = vpop.f32.mrf.mxu0
        %v3373 = vadd.f32 %v3359, %v3372
        %v3374 = vpop.f32.mrf.mxu0
        %v3375 = vadd.f32 %v3361, %v3374
        %3376 = vdwg.mxu0
        %3377 = vmatpush.bf16.msra.mxu0 %v2318
        %3378 = vmatpush.bf16.msra.mxu0 %v2316
        %3379 = vmatpush.bf16.msra.mxu0 %v2314
        %3380 = vmatpush.bf16.msra.mxu0 %v2312
        %3381 = vmatpush.bf16.msra.mxu0 %v2310
        %3382 = vmatpush.bf16.msra.mxu0 %v2308
        %3383 = vmatpush.bf16.msra.mxu0 %v2306
        %3384 = vmatpush.bf16.msra.mxu0 %v2304
        %3385 = vmatmul.bf16.gmra.mxu0 %v878
        %v3386 = vpop.f32.mrf.mxu0
        %v3387 = vadd.f32 %v3373, %v3386
        %v3388 = vpop.f32.mrf.mxu0
        %v3389 = vadd.f32 %v3375, %v3388
        %3390 = vdwg.mxu0
        %3391 = vmatpush.bf16.msra.mxu0 %v2334
        %3392 = vmatpush.bf16.msra.mxu0 %v2332
        %3393 = vmatpush.bf16.msra.mxu0 %v2330
        %3394 = vmatpush.bf16.msra.mxu0 %v2328
        %3395 = vmatpush.bf16.msra.mxu0 %v2326
        %3396 = vmatpush.bf16.msra.mxu0 %v2324
        %3397 = vmatpush.bf16.msra.mxu0 %v2322
        %3398 = vmatpush.bf16.msra.mxu0 %v2320
        %3399 = vmatmul.bf16.gmra.mxu0 %v879
        %v3400 = vpop.f32.mrf.mxu0
        %v3401 = vadd.f32 %v3387, %v3400
        %v3402 = vpop.f32.mrf.mxu0
        %v3403 = vadd.f32 %v3389, %v3402
        %3404 = vdwg.mxu0
        %3405 = vmatpush.bf16.msra.mxu0 %v2350
        %3406 = vmatpush.bf16.msra.mxu0 %v2348
        %3407 = vmatpush.bf16.msra.mxu0 %v2346
        %3408 = vmatpush.bf16.msra.mxu0 %v2344
        %3409 = vmatpush.bf16.msra.mxu0 %v2342
        %3410 = vmatpush.bf16.msra.mxu0 %v2340
        %3411 = vmatpush.bf16.msra.mxu0 %v2338
        %3412 = vmatpush.bf16.msra.mxu0 %v2336
        %3413 = vmatmul.bf16.gmra.mxu0 %v880
        %v3414 = vpop.f32.mrf.mxu0
        %v3415 = vadd.f32 %v3401, %v3414
        %v3416 = vpop.f32.mrf.mxu0
        %v3417 = vadd.f32 %v3403, %v3416
        %3418 = vdwg.mxu0
        %3419 = vmatpush.bf16.msra.mxu0 %v2366
        %3420 = vmatpush.bf16.msra.mxu0 %v2364
        %3421 = vmatpush.bf16.msra.mxu0 %v2362
        %3422 = vmatpush.bf16.msra.mxu0 %v2360
        %3423 = vmatpush.bf16.msra.mxu0 %v2358
        %3424 = vmatpush.bf16.msra.mxu0 %v2356
        %3425 = vmatpush.bf16.msra.mxu0 %v2354
        %3426 = vmatpush.bf16.msra.mxu0 %v2352
        %3427 = vmatmul.bf16.gmra.mxu0 %v881
        %v3428 = vpop.f32.mrf.mxu0
        %v3429 = vadd.f32 %v3415, %v3428
        %v3430 = vpop.f32.mrf.mxu0
        %v3431 = vadd.f32 %v3417, %v3430
        %3432 = vdwg.mxu0
        %3433 = vmatpush.bf16.msra.mxu0 %v2382
        %3434 = vmatpush.bf16.msra.mxu0 %v2380
        %3435 = vmatpush.bf16.msra.mxu0 %v2378
        %3436 = vmatpush.bf16.msra.mxu0 %v2376
        %3437 = vmatpush.bf16.msra.mxu0 %v2374
        %3438 = vmatpush.bf16.msra.mxu0 %v2372
        %3439 = vmatpush.bf16.msra.mxu0 %v2370
        %3440 = vmatpush.bf16.msra.mxu0 %v2368
        %3441 = vmatmul.bf16.gmra.mxu0 %v882
        %v3442 = vpop.f32.mrf.mxu0
        %v3443 = vadd.f32 %v3429, %v3442
        %v3444 = vpop.f32.mrf.mxu0
        %v3445 = vadd.f32 %v3431, %v3444
        %3446 = vdwg.mxu0
        %3447 = vmatpush.bf16.msra.mxu0 %v2398
        %3448 = vmatpush.bf16.msra.mxu0 %v2396
        %3449 = vmatpush.bf16.msra.mxu0 %v2394
        %3450 = vmatpush.bf16.msra.mxu0 %v2392
        %3451 = vmatpush.bf16.msra.mxu0 %v2390
        %3452 = vmatpush.bf16.msra.mxu0 %v2388
        %3453 = vmatpush.bf16.msra.mxu0 %v2386
        %3454 = vmatpush.bf16.msra.mxu0 %v2384
        %3455 = vmatmul.bf16.gmra.mxu0 %v883
        %v3456 = vpop.f32.mrf.mxu0
        %v3457 = vadd.f32 %v3443, %v3456
        %v3458 = vpop.f32.mrf.mxu0
        %v3459 = vadd.f32 %v3445, %v3458
        %3460 = vdwg.mxu0
        %3461 = vmatpush.bf16.msra.mxu0 %v2414
        %3462 = vmatpush.bf16.msra.mxu0 %v2412
        %3463 = vmatpush.bf16.msra.mxu0 %v2410
        %3464 = vmatpush.bf16.msra.mxu0 %v2408
        %3465 = vmatpush.bf16.msra.mxu0 %v2406
        %3466 = vmatpush.bf16.msra.mxu0 %v2404
        %3467 = vmatpush.bf16.msra.mxu0 %v2402
        %3468 = vmatpush.bf16.msra.mxu0 %v2400
        %3469 = vmatmul.bf16.gmra.mxu0 %v884
        %v3470 = vpop.f32.mrf.mxu0
        %v3471 = vadd.f32 %v3457, %v3470
        %v3472 = vpop.f32.mrf.mxu0
        %v3473 = vadd.f32 %v3459, %v3472
        %3474 = vdwg.mxu0
        %3475 = vmatpush.bf16.msra.mxu0 %v2430
        %3476 = vmatpush.bf16.msra.mxu0 %v2428
        %3477 = vmatpush.bf16.msra.mxu0 %v2426
        %3478 = vmatpush.bf16.msra.mxu0 %v2424
        %3479 = vmatpush.bf16.msra.mxu0 %v2422
        %3480 = vmatpush.bf16.msra.mxu0 %v2420
        %3481 = vmatpush.bf16.msra.mxu0 %v2418
        %3482 = vmatpush.bf16.msra.mxu0 %v2416
        %3483 = vmatmul.bf16.gmra.mxu0 %v885
        %v3484 = vpop.f32.mrf.mxu0
        %v3485 = vadd.f32 %v3471, %v3484
        %v3486 = vpop.f32.mrf.mxu0
        %v3487 = vadd.f32 %v3473, %v3486
        %3488 = vdwg.mxu0
        %3489 = vmatpush.bf16.msra.mxu0 %v2446
        %3490 = vmatpush.bf16.msra.mxu0 %v2444
        %3491 = vmatpush.bf16.msra.mxu0 %v2442
        %3492 = vmatpush.bf16.msra.mxu0 %v2440
        %3493 = vmatpush.bf16.msra.mxu0 %v2438
        %3494 = vmatpush.bf16.msra.mxu0 %v2436
        %3495 = vmatpush.bf16.msra.mxu0 %v2434
        %3496 = vmatpush.bf16.msra.mxu0 %v2432
        %3497 = vmatmul.bf16.gmra.mxu0 %v886
        %v3498 = vpop.f32.mrf.mxu0
        %v3499 = vadd.f32 %v3485, %v3498
        %v3500 = vpop.f32.mrf.mxu0
        %v3501 = vadd.f32 %v3487, %v3500
        %3502 = vdwg.mxu0
        %v3503 = vadd.f32 %v379, %v3163
        %v3504 = vadd.f32 %v380, %v3499
        %v3505 = vadd.f32 %v381, %v3165
        %v3506 = vadd.f32 %v382, %v3501
        %3507 = vst [vmem:[%s348] sm:$0xff] %v3503
        %3508 = vst [vmem:[%s348 + $0x8] sm:$0xff] %v3504
        %3509 = vst [vmem:[%s348 + $0x10] sm:$0xff] %v3505
        %3510 = vst [vmem:[%s348 + $0x18] sm:$0xff] %v3506
        // Predicated region
        $region57: #{tpu_custom_call.1} parent=35 // pred_check
          %p3511 = pneg %p365
        $region58: #{tpu_custom_call.1} parent=35 // pred_check_branch
          %3513 = sbr.rel (%p3511) target = $region60
        $region59: #{tpu_custom_call.1} parent=35 // pred_region
          %v3514 = vld [vmem:[%s348] sm:$0xff]
          %v3515 = vld [vmem:[%s348 + $0x8] sm:$0xff]
          %v3516 = vld [vmem:[%s348 + $0x10] sm:$0xff]
          %v3517 = vld [vmem:[%s348 + $0x18] sm:$0xff]
          %v3518 = vadd.f32 %v3514, %v3516
          %v3519 = vrot.slane %v3518, 4
          %v3520 = vadd.f32 %v3518, %v3519
          %v3521 = vrot.slane %v3520, 2
          %v3522 = vadd.f32 %v3520, %v3521
          %v3523 = vrot.slane %v3522, 1
          %v3524 = vadd.f32 %v3522, %v3523
          %v3525 = vadd.f32 %v3515, %v3517
          %v3526 = vrot.slane %v3525, 4
          %v3527 = vadd.f32 %v3525, %v3526
          %v3528 = vrot.slane %v3527, 2
          %v3529 = vadd.f32 %v3527, %v3528
          %v3530 = vrot.slane %v3529, 1
          %v3531 = vadd.f32 %v3529, %v3530
          %v3532 = vrcp.pop 16.0
          %v3533 = vmul.f32 16.0, %v3532
          %v3534 = vsub.f32 1.0, %v3533
          %v3535 = vmul.f32 %v3532, %v3534
          %v3536 = vadd.f32 %v3532, %v3535
          %vm3537 = vweird.f32 %v3532
          %v3538 = vsel %vm3537, %v3532, %v3536
          %v3539 = vmul.f32 %v3524, %v3538
          %v3540 = vmul.f32 %v3531, %v3538
          %v3541 = vsub.f32 %v3514, %v3539
          %v3542 = vsub.f32 %v3515, %v3540
          %v3543 = vsub.f32 %v3516, %v3539
          %v3544 = vsub.f32 %v3517, %v3540
          %v3545 = vmul.f32 %v3541, %v3541
          %v3546 = vmul.f32 %v3542, %v3542
          %v3547 = vmul.f32 %v3543, %v3543
          %v3548 = vmul.f32 %v3544, %v3544
          %v3549 = vadd.f32 %v3545, %v3547
          %v3550 = vrot.slane %v3549, 4
          %v3551 = vadd.f32 %v3549, %v3550
          %v3552 = vrot.slane %v3551, 2
          %v3553 = vadd.f32 %v3551, %v3552
          %v3554 = vrot.slane %v3553, 1
          %v3555 = vadd.f32 %v3553, %v3554
          %v3556 = vadd.f32 %v3546, %v3548
          %v3557 = vrot.slane %v3556, 4
          %v3558 = vadd.f32 %v3556, %v3557
          %v3559 = vrot.slane %v3558, 2
          %v3560 = vadd.f32 %v3558, %v3559
          %v3561 = vrot.slane %v3560, 1
          %v3562 = vadd.f32 %v3560, %v3561
          %v3563 = vmul.f32 %v3555, %v3538
          %v3564 = vmul.f32 %v3562, %v3538
          %v3565 = vadd.f32 %v3563, 1e-05
          %v3566 = vadd.f32 %v3564, 1e-05
          %v3567 = vrsqrt.pop %v3565
          %v3568 = vmul.f32 %v3567, %v3565
          %v3569 = vmul.f32 %v3568, %v3567
          %v3570 = vmul.f32 0.5, %v3569
          %v3571 = vsub.f32 1.5, %v3570
          %v3572 = vmul.f32 %v3567, %v3571
          %vm3573 = vweird.f32 %v3565
          %vm3574 = vweird.f32 %v3567
          %vm3575 = vmor %vm3573, %vm3574
          %v3576 = vsel %vm3575, %v3567, %v3572
          %v3577 = vrsqrt.pop %v3566
          %v3578 = vmul.f32 %v3577, %v3566
          %v3579 = vmul.f32 %v3578, %v3577
          %v3580 = vmul.f32 0.5, %v3579
          %v3581 = vsub.f32 1.5, %v3580
          %v3582 = vmul.f32 %v3577, %v3581
          %vm3583 = vweird.f32 %v3566
          %vm3584 = vweird.f32 %v3577
          %vm3585 = vmor %vm3583, %vm3584
          %v3586 = vsel %vm3585, %v3577, %v3582
          %v3587 = vmul.f32 %v3541, %v3576
          %v3588 = vmul.f32 %v3542, %v3586
          %v3589 = vmul.f32 %v3543, %v3576
          %v3590 = vmul.f32 %v3544, %v3586
          %3591 = vst [vmem:[%s355] sm:$0xff] %v3587
          %3592 = vst [vmem:[%s355 + $0x8] sm:$0xff] %v3588
          %3593 = vst [vmem:[%s355 + $0x10] sm:$0xff] %v3589
          %3594 = vst [vmem:[%s355 + $0x18] sm:$0xff] %v3590
          %v3595 = vpack.c.bf16 %v3539, %v3539
          %v3596 = vpack.c.bf16 %v3540, %v3540
          %v3597 = vld [vmem:[#allocation8] sm:$0xff]
          %v3598 = vld [vmem:[#allocation8 + $0x8] sm:$0xff]
          %v3599 = vld [vmem:[#allocation8 + $0x10] sm:$0xff]
          %v3600 = vld [vmem:[#allocation8 + $0x18] sm:$0xff]
          %v3601 = vld [vmem:[#allocation8 + $0x20] sm:$0xff]
          %v3602 = vld [vmem:[#allocation8 + $0x28] sm:$0xff]
          %v3603 = vld [vmem:[#allocation8 + $0x30] sm:$0xff]
          %v3604 = vld [vmem:[#allocation8 + $0x38] sm:$0xff]
          %v3605 = vld [vmem:[#allocation8 + $0x40] sm:$0xff]
          %v3606 = vld [vmem:[#allocation8 + $0x48] sm:$0xff]
          %v3607 = vld [vmem:[#allocation8 + $0x50] sm:$0xff]
          %v3608 = vld [vmem:[#allocation8 + $0x58] sm:$0xff]
          %v3609 = vld [vmem:[#allocation8 + $0x60] sm:$0xff]
          %v3610 = vld [vmem:[#allocation8 + $0x68] sm:$0xff]
          %v3611 = vld [vmem:[#allocation8 + $0x70] sm:$0xff]
          %v3612 = vld [vmem:[#allocation8 + $0x78] sm:$0xff]
          %v3613 = vld [vmem:[#allocation8 + $0x80] sm:$0xff]
          %v3614 = vld [vmem:[#allocation8 + $0x88] sm:$0xff]
          %v3615 = vld [vmem:[#allocation8 + $0x90] sm:$0xff]
          %v3616 = vld [vmem:[#allocation8 + $0x98] sm:$0xff]
          %v3617 = vld [vmem:[#allocation8 + $0xa0] sm:$0xff]
          %v3618 = vld [vmem:[#allocation8 + $0xa8] sm:$0xff]
          %v3619 = vld [vmem:[#allocation8 + $0xb0] sm:$0xff]
          %v3620 = vld [vmem:[#allocation8 + $0xb8] sm:$0xff]
          %v3621 = vld [vmem:[#allocation8 + $0xc0] sm:$0xff]
          %v3622 = vld [vmem:[#allocation8 + $0xc8] sm:$0xff]
          %v3623 = vld [vmem:[#allocation8 + $0xd0] sm:$0xff]
          %v3624 = vld [vmem:[#allocation8 + $0xd8] sm:$0xff]
          %v3625 = vld [vmem:[#allocation8 + $0xe0] sm:$0xff]
          %v3626 = vld [vmem:[#allocation8 + $0xe8] sm:$0xff]
          %v3627 = vld [vmem:[#allocation8 + $0xf0] sm:$0xff]
          %v3628 = vld [vmem:[#allocation8 + $0xf8] sm:$0xff]
          %v3661 = vunpack.c.l.b16 %v3597
          %v3662 = vunpack.c.h.b16 %v3597
          %v3663 = vunpack.c.l.b16 %v3598
          %v3664 = vunpack.c.h.b16 %v3598
          %v3665 = vunpack.c.l.b16 %v3599
          %v3666 = vunpack.c.h.b16 %v3599
          %v3667 = vunpack.c.l.b16 %v3600
          %v3668 = vunpack.c.h.b16 %v3600
          %v3669 = vunpack.c.l.b16 %v3601
          %v3670 = vunpack.c.h.b16 %v3601
          %v3671 = vunpack.c.l.b16 %v3602
          %v3672 = vunpack.c.h.b16 %v3602
          %v3673 = vunpack.c.l.b16 %v3603
          %v3674 = vunpack.c.h.b16 %v3603
          %v3675 = vunpack.c.l.b16 %v3604
          %v3676 = vunpack.c.h.b16 %v3604
          %v3677 = vunpack.c.l.b16 %v3605
          %v3678 = vunpack.c.h.b16 %v3605
          %v3679 = vunpack.c.l.b16 %v3606
          %v3680 = vunpack.c.h.b16 %v3606
          %v3681 = vunpack.c.l.b16 %v3607
          %v3682 = vunpack.c.h.b16 %v3607
          %v3683 = vunpack.c.l.b16 %v3608
          %v3684 = vunpack.c.h.b16 %v3608
          %v3685 = vunpack.c.l.b16 %v3609
          %v3686 = vunpack.c.h.b16 %v3609
          %v3687 = vunpack.c.l.b16 %v3610
          %v3688 = vunpack.c.h.b16 %v3610
          %v3689 = vunpack.c.l.b16 %v3611
          %v3690 = vunpack.c.h.b16 %v3611
          %v3691 = vunpack.c.l.b16 %v3612
          %v3692 = vunpack.c.h.b16 %v3612
          %v3693 = vunpack.c.l.b16 %v3613
          %v3694 = vunpack.c.h.b16 %v3613
          %v3695 = vunpack.c.l.b16 %v3614
          %v3696 = vunpack.c.h.b16 %v3614
          %v3697 = vunpack.c.l.b16 %v3615
          %v3698 = vunpack.c.h.b16 %v3615
          %v3699 = vunpack.c.l.b16 %v3616
          %v3700 = vunpack.c.h.b16 %v3616
          %v3701 = vunpack.c.l.b16 %v3617
          %v3702 = vunpack.c.h.b16 %v3617
          %v3703 = vunpack.c.l.b16 %v3618
          %v3704 = vunpack.c.h.b16 %v3618
          %v3705 = vunpack.c.l.b16 %v3619
          %v3706 = vunpack.c.h.b16 %v3619
          %v3707 = vunpack.c.l.b16 %v3620
          %v3708 = vunpack.c.h.b16 %v3620
          %v3709 = vunpack.c.l.b16 %v3621
          %v3710 = vunpack.c.h.b16 %v3621
          %v3711 = vunpack.c.l.b16 %v3622
          %v3712 = vunpack.c.h.b16 %v3622
          %v3713 = vunpack.c.l.b16 %v3623
          %v3714 = vunpack.c.h.b16 %v3623
          %v3715 = vunpack.c.l.b16 %v3624
          %v3716 = vunpack.c.h.b16 %v3624
          %v3717 = vunpack.c.l.b16 %v3625
          %v3718 = vunpack.c.h.b16 %v3625
          %v3719 = vunpack.c.l.b16 %v3626
          %v3720 = vunpack.c.h.b16 %v3626
          %v3721 = vunpack.c.l.b16 %v3627
          %v3722 = vunpack.c.h.b16 %v3627
          %v3723 = vunpack.c.l.b16 %v3628
          %v3724 = vunpack.c.h.b16 %v3628
          %v3725 = vpack.c.b16 %v3663, %v3661
          %v3726 = vpack.c.b16 %v3664, %v3662
          %v3727 = vpack.c.b16 %v3667, %v3665
          %v3728 = vpack.c.b16 %v3668, %v3666
          %v3729 = vpack.c.b16 %v3671, %v3669
          %v3730 = vpack.c.b16 %v3672, %v3670
          %v3731 = vpack.c.b16 %v3675, %v3673
          %v3732 = vpack.c.b16 %v3676, %v3674
          %v3733 = vpack.c.b16 %v3679, %v3677
          %v3734 = vpack.c.b16 %v3680, %v3678
          %v3735 = vpack.c.b16 %v3683, %v3681
          %v3736 = vpack.c.b16 %v3684, %v3682
          %v3737 = vpack.c.b16 %v3687, %v3685
          %v3738 = vpack.c.b16 %v3688, %v3686
          %v3739 = vpack.c.b16 %v3691, %v3689
          %v3740 = vpack.c.b16 %v3692, %v3690
          %v3741 = vpack.c.b16 %v3695, %v3693
          %v3742 = vpack.c.b16 %v3696, %v3694
          %v3743 = vpack.c.b16 %v3699, %v3697
          %v3744 = vpack.c.b16 %v3700, %v3698
          %v3745 = vpack.c.b16 %v3703, %v3701
          %v3746 = vpack.c.b16 %v3704, %v3702
          %v3747 = vpack.c.b16 %v3707, %v3705
          %v3748 = vpack.c.b16 %v3708, %v3706
          %v3749 = vpack.c.b16 %v3711, %v3709
          %v3750 = vpack.c.b16 %v3712, %v3710
          %v3751 = vpack.c.b16 %v3715, %v3713
          %v3752 = vpack.c.b16 %v3716, %v3714
          %v3753 = vpack.c.b16 %v3719, %v3717
          %v3754 = vpack.c.b16 %v3720, %v3718
          %v3755 = vpack.c.b16 %v3723, %v3721
          %v3756 = vpack.c.b16 %v3724, %v3722
          %3789 = vmatpush.bf16.msra.mxu0 %v3739
          %3790 = vmatpush.bf16.msra.mxu0 %v3737
          %3791 = vmatpush.bf16.msra.mxu0 %v3735
          %3792 = vmatpush.bf16.msra.mxu0 %v3733
          %3793 = vmatpush.bf16.msra.mxu0 %v3731
          %3794 = vmatpush.bf16.msra.mxu0 %v3729
          %3795 = vmatpush.bf16.msra.mxu0 %v3727
          %3796 = vmatpush.bf16.msra.mxu0 %v3725
          %3797 = vmatmul.bf16.gmra.mxu0 %v3595
          %v3798 = vpop.f32.mrf.mxu0
          %v3799 = vadd.f32 0.0, %v3798
          %v3800 = vpop.f32.mrf.mxu0
          %3801 = vdwg.mxu0
          %3802 = vmatpush.bf16.msra.mxu0 %v3755
          %3803 = vmatpush.bf16.msra.mxu0 %v3753
          %3804 = vmatpush.bf16.msra.mxu0 %v3751
          %3805 = vmatpush.bf16.msra.mxu0 %v3749
          %3806 = vmatpush.bf16.msra.mxu0 %v3747
          %3807 = vmatpush.bf16.msra.mxu0 %v3745
          %3808 = vmatpush.bf16.msra.mxu0 %v3743
          %3809 = vmatpush.bf16.msra.mxu0 %v3741
          %3810 = vmatmul.bf16.gmra.mxu0 %v3596
          %v3811 = vpop.f32.mrf.mxu0
          %v3812 = vadd.f32 %v3799, %v3811
          %v3813 = vpop.f32.mrf.mxu0
          %3814 = vdwg.mxu0
          %3815 = vmatpush.bf16.msra.mxu0 %v3740
          %3816 = vmatpush.bf16.msra.mxu0 %v3738
          %3817 = vmatpush.bf16.msra.mxu0 %v3736
          %3818 = vmatpush.bf16.msra.mxu0 %v3734
          %3819 = vmatpush.bf16.msra.mxu0 %v3732
          %3820 = vmatpush.bf16.msra.mxu0 %v3730
          %3821 = vmatpush.bf16.msra.mxu0 %v3728
          %3822 = vmatpush.bf16.msra.mxu0 %v3726
          %3823 = vmatmul.bf16.gmra.mxu0 %v3595
          %v3824 = vpop.f32.mrf.mxu0
          %v3825 = vadd.f32 0.0, %v3824
          %v3826 = vpop.f32.mrf.mxu0
          %3827 = vdwg.mxu0
          %3828 = vmatpush.bf16.msra.mxu0 %v3756
          %3829 = vmatpush.bf16.msra.mxu0 %v3754
          %3830 = vmatpush.bf16.msra.mxu0 %v3752
          %3831 = vmatpush.bf16.msra.mxu0 %v3750
          %3832 = vmatpush.bf16.msra.mxu0 %v3748
          %3833 = vmatpush.bf16.msra.mxu0 %v3746
          %3834 = vmatpush.bf16.msra.mxu0 %v3744
          %3835 = vmatpush.bf16.msra.mxu0 %v3742
          %3836 = vmatmul.bf16.gmra.mxu0 %v3596
          %v3837 = vpop.f32.mrf.mxu0
          %v3838 = vadd.f32 %v3825, %v3837
          %v3839 = vpop.f32.mrf.mxu0
          %3840 = vdwg.mxu0
          %v3843 = vrot.slane %v3838, 7
          %vm3844 = vcmask 1040384
          %v3845 = vsel %vm3844, %v3812, %v3843
          %v3847 = vlaneseq
          %vm3848 = vcmp.ge.s32.totalorder %v3847, 0
          %vm3849 = vcmp.lt.s32.totalorder %v3847, 256
          %vm3850 = vmand %vm3848, %vm3849
          %3851 = vst.msk [vmem:[%s362] sm:$0x3] %vm3850, %v3845
        $region60: #{tpu_custom_call.1} parent=35 // pred_fallthru
          _
        %s3852 = sand.u32 %s145, 1
        %s3853 = scalar_lea.sflag [#allocation4], %s3852
        %s3854 = sand.u32 %s145, 1
        %s3855 = smul.addr %s3854, 32
        %s3856 = scalar_lea.vmem [#allocation10], %s3855
        %s3857 = sand.u32 %s29, 1
        %s3858 = scalar_lea.sflag [#allocation12], %s3857
        %s3859 = sand.u32 %s171, 1
        %s3860 = smul.addr %s3859, 32
        %s3861 = scalar_lea.vmem [#allocation11], %s3860
        %s3862 = sand.u32 %s29, 1
        %s3863 = scalar_lea.sflag [#allocation12], %s3862
        %s3864 = sand.u32 %s197, 1
        %s3865 = smul.addr %s3864, 2
        %s3866 = scalar_lea.vmem [#allocation13], %s3865
        // Predicated region
        $region61: #{tpu_custom_call.1} parent=35 // pred_check
          %p3867 = pneg %p155
        $region62: #{tpu_custom_call.1} parent=35 // pred_check_branch
          %3869 = sbr.rel (%p3867) target = $region64
        $region63: #{tpu_custom_call.1} parent=35 // pred_region
          %3871 = vsyncadd %s3853, 0
          %s3872 = smul.addr %s33, 4
          %s3873 = smul.addr %s3872, 8
          %s3874 = scalar_lea.hbm %s4, %s3873
          %s3875 = sshll.u32 %s3856, 4
          %s3876 = int_to_ptr.vmem [resolvable:$true] %s3875
          %s3877 = sshll.u32 %s3874, 4
          %s3878 = int_to_ptr.hbm [resolvable:$true] %s3877
          %3883 = dma.vmem_to_hbm [thread:$0]  %s3876, 512, %s3878, %s3853, 256, 256, 16
        $region64: #{tpu_custom_call.1} parent=35 // pred_fallthru
          _
        // Predicated region
        $region65: #{tpu_custom_call.1} parent=35 // pred_check
          %p3884 = pneg %p181
        $region66: #{tpu_custom_call.1} parent=35 // pred_check_branch
          %3886 = sbr.rel (%p3884) target = $region68
        $region67: #{tpu_custom_call.1} parent=35 // pred_region
          %3888 = vsyncadd %s3858, 0
          %s3889 = smul.addr %s33, 4
          %s3890 = smul.addr %s3889, 8
          %s3891 = scalar_lea.hbm %s5, %s3890
          %s3892 = sshll.u32 %s3861, 4
          %s3893 = int_to_ptr.vmem [resolvable:$true] %s3892
          %s3894 = sshll.u32 %s3891, 4
          %s3895 = int_to_ptr.hbm [resolvable:$true] %s3894
          %3900 = dma.vmem_to_hbm [thread:$0]  %s3893, 512, %s3895, %s3858, 256, 256, 16
        $region68: #{tpu_custom_call.1} parent=35 // pred_fallthru
          _
        // Predicated region
        $region69: #{tpu_custom_call.1} parent=35 // pred_check
          %p3901 = pneg %p207
        $region70: #{tpu_custom_call.1} parent=35 // pred_check_branch
          %3903 = sbr.rel (%p3901) target = $region72
        $region71: #{tpu_custom_call.1} parent=35 // pred_region
          %3905 = vsyncadd %s3863, 0
          %s3906 = smul.addr %s33, 2
          %s3907 = scalar_lea.hbm %s6, %s3906
          %s3909 = sshll.u32 %s3866, 4
          %s3910 = int_to_ptr.vmem [resolvable:$true] %s3909
          %s3911 = sshll.u32 %s3907, 4
          %s3912 = int_to_ptr.hbm [resolvable:$true] %s3911
          %3914 = dma.vmem_to_hbm [thread:$0]  %s3910, 32, %s3912, %s3863
        $region72: #{tpu_custom_call.1} parent=35 // pred_fallthru
          _
      $region36: #{tpu_custom_call.1} parent=5 // pred_fallthru
        _
      %p3915 = scmp.le.s32.totalorder 2, %s24
      // Predicated region
      $region73: #{tpu_custom_call.1} parent=5 // pred_check
        %p3916 = pneg %p3915
      $region74: #{tpu_custom_call.1} parent=5 // pred_check_branch
        %3918 = sbr.rel (%p3916) target = $region76
      $region75: #{tpu_custom_call.1} parent=5 // pred_region
        %s3919 = ssub.s32 %s24, 2
        // Predicated region
        $region77: #{tpu_custom_call.1} parent=75 // pred_check
          %p3920 = pneg %p161
        $region78: #{tpu_custom_call.1} parent=75 // pred_check_branch
          %3922 = sbr.rel (%p3920) target = $region80
        $region79: #{tpu_custom_call.1} parent=75 // pred_region
          %s3923 = sand.u32 %s146, 1
          %s3924 = scalar_lea.sflag [#allocation4], %s3923
          %s3925 = sand.u32 %s146, 1
          %s3926 = smul.addr %s3925, 32
          %s3927 = scalar_lea.vmem [#allocation10], %s3926
          %3929 = dma.done %s3924, 512
        $region80: #{tpu_custom_call.1} parent=75 // pred_fallthru
          _
        // Predicated region
        $region81: #{tpu_custom_call.1} parent=75 // pred_check
          %p3930 = pneg %p187
        $region82: #{tpu_custom_call.1} parent=75 // pred_check_branch
          %3932 = sbr.rel (%p3930) target = $region84
        $region83: #{tpu_custom_call.1} parent=75 // pred_region
          %s3933 = sand.u32 %s30, 1
          %s3934 = scalar_lea.sflag [#allocation12], %s3933
          %s3935 = sand.u32 %s172, 1
          %s3936 = smul.addr %s3935, 32
          %s3937 = scalar_lea.vmem [#allocation11], %s3936
          %3939 = dma.done %s3934, 512
        $region84: #{tpu_custom_call.1} parent=75 // pred_fallthru
          _
        // Predicated region
        $region85: #{tpu_custom_call.1} parent=75 // pred_check
          %p3940 = pneg %p213
        $region86: #{tpu_custom_call.1} parent=75 // pred_check_branch
          %3942 = sbr.rel (%p3940) target = $region88
        $region87: #{tpu_custom_call.1} parent=75 // pred_region
          %s3943 = sand.u32 %s30, 1
          %s3944 = scalar_lea.sflag [#allocation12], %s3943
          %s3945 = sand.u32 %s198, 1
          %s3946 = smul.addr %s3945, 2
          %s3947 = scalar_lea.vmem [#allocation13], %s3946
          %3949 = dma.done %s3944, 32
        $region88: #{tpu_custom_call.1} parent=75 // pred_fallthru
          _
      $region76: #{tpu_custom_call.1} parent=5 // pred_fallthru
        _
    $region6: #{tpu_custom_call.1} parent=1 // loop_footer
      %s28 = sadd.s32 1, %s24
    $region7: #{tpu_custom_call.1} parent=1 // loop_footer_branch
      %23 = sbr.rel target = $region3
    $region8: #{tpu_custom_call.1} parent=1 // loop_exit
      _
    %3950 = vsyncpa [#allocation3], 1
    %s3951 = scalar_lea.sflag [#allocation3], 1
    %3952 = vsyncpa %s3951, 1
    %3953 = vsyncpa [#allocation6], 1
    %3954 = vsyncpa [#allocation9], 1
    %3955 = vsyncpa [#allocation4], 1
    %s3956 = scalar_lea.sflag [#allocation4], 1
    %3957 = vsyncpa %s3956, 1
    %3958 = vsyncpa [#allocation12], 1
    %s3959 = scalar_lea.sflag [#allocation12], 1
    %3960 = vsyncpa %s3959, 1

</llo_original>
